<compile_context>
chip_gen: v5e
topology: v5e:2x2
jax: 0.10.0
libtpu: 0.0.40
codegen_flags: <defaults>
</compile_context>

<pallas_src>
import jax
import jax.numpy as jnp
from jax import lax
from jax.experimental import pallas as pl
from jax.experimental.pallas import tpu as pltpu

# ----------------------------- configuration --------------------------------
IMG_SHAPE = (4, 16, 16)     # (C_in, H, W) -- small synthetic version of (40, 50, 50)
KSIZES = (7, 5)             # valid-conv kernel sizes
CHANS = (8, 8)
RNN_CHANS = (2,)
N_UNITS = 5
BATCH = 4                   # 2 grid steps x 2 batches folded into lanes per step

C_IN, H, W = IMG_SHAPE
K1, K2 = KSIZES
C0, C1 = CHANS
RNN = RNN_CHANS[0]

H1, W1 = H - K1 + 1, W - K1 + 1          # bipolar grid
H2, W2 = H1 - K2 + 1, W1 - K2 + 1        # amacrine grid
S1, S2 = H1 * W1, H2 * W2
L_BI, L_AM = C0 * S1, C1 * S2


def _ceil_to(v, m):
    return ((v + m - 1) // m) * m


# lane-dense, full-width flat lengths (all multiples of 128 -> unmasked stores,
# aligned per-batch lane slices).  Extra tail columns cover the largest window
# shift so every slice is statically in bounds.
CP = _ceil_to(C_IN, 8)                                        # sublane-aligned input channels
NAP = _ceil_to(H2 * W, 128)                                   # amacrine flat width
NBP = _ceil_to(max(H1 * W + K2 - 1, (K2 - 1) * (W + 1) + NAP), 128)   # bipolar flat width
NXP = _ceil_to((K1 - 1) * (W + 1) + NBP, 128)                 # padded input flat width


# ----------------------------- Pallas kernel ---------------------------------
def _vpu_matmul(w, x):
    """(M, K) @ (K, N) with tiny static K as a VPU broadcast-FMA chain
    (keeps these small contractions off the MXU)."""
    acc = w[:, 0:1] * x[0:1, :]
    for j in range(1, w.shape[1]):
        acc = acc + w[:, j:j + 1] * x[j:j + 1, :]
    return acc


def _fused_kernel(x_ref, hbi_ref, ham_ref,
                  w1_ref, b1_ref, wam_ref, bam_ref,
                  wxh_ref, whh_ref, bh_ref, wfb_ref, bfb_ref,
                  wgb_ref, wga_ref, shift_ref,
                  gang_ref, hbin_ref, hamn_ref):
    bt = x_ref.shape[0]
    f32 = jnp.float32

    xs = [x_ref[b] for b in range(bt)]                       # (CP, NXP) flat frames

    # ---- bipolar valid conv: K1 shifted-window matmuls, batch folded in lanes
    # TODO(synk): at the production 40x50x50 config convert this unrolled loop
    #   into a lax.fori_loop so the per-dh column-block live ranges stay bounded.
    z = jnp.zeros((C0, bt * NBP), dtype=f32)
    for dh in range(K1):
        base = dh * W
        cols = []
        for b in range(bt):
            win = [xs[b][:, base + dw:base + dw + NBP] for dw in range(K1)]
            cols.append(jnp.concatenate(win, axis=0))        # (K1*CP, NBP), rows (dw, c)
        rhs = cols[0] if bt == 1 else jnp.concatenate(cols, axis=1)
        z = z + jnp.dot(w1_ref[dh], rhs, preferred_element_type=f32)

    # bipolar = ReLU(conv + bias + h_bi)   (GaussianNoise is identity in eval)
    hbi_all = hbi_ref[0] if bt == 1 else jnp.concatenate(
        [hbi_ref[b] for b in range(bt)], axis=1)
    bip = jnp.maximum(z + b1_ref[...] + hbi_all, 0.0)        # (C0, bt*NBP)

    # ---- amacrine RNN state update (per-pixel 1x1 convs; tiny K -> VPU) ----
    ham_all = ham_ref[0] if bt == 1 else jnp.concatenate(
        [ham_ref[b] for b in range(bt)], axis=1)
    pre = (_vpu_matmul(wxh_ref[...], bip)
           + _vpu_matmul(whh_ref[...], ham_all)
           + bh_ref[...])
    h_am_new = jnp.tanh(pre)                                  # (RNN, bt*NBP)
    h_bi_new = _vpu_matmul(wfb_ref[...], h_am_new) + bfb_ref[...]   # (C0, bt*NBP)
    for b in range(bt):
        hamn_ref[b] = h_am_new[:, b * NBP:(b + 1) * NBP]
        hbin_ref[b] = h_bi_new[:, b * NBP:(b + 1) * NBP]

    # ---- amacrine output conv on the VMEM-resident bipolar (never hits HBM) ----
    bips = [bip[:, b * NBP:(b + 1) * NBP] for b in range(bt)] if bt > 1 else [bip]
    z2 = jnp.zeros((C1, bt * NAP), dtype=f32)
    for dh in range(K2):
        base = dh * W
        cols = []
        for b in range(bt):
            win = [bips[b][:, base + dw:base + dw + NAP] for dw in range(K2)]
            cols.append(jnp.concatenate(win, axis=0))         # (K2*C0, NAP), rows (dw, c)
        rhs = cols[0] if bt == 1 else jnp.concatenate(cols, axis=1)
        z2 = z2 + jnp.dot(wam_ref[dh], rhs, preferred_element_type=f32)
    am2 = -jnp.maximum(z2 + bam_ref[...], 0.0)                # amacrine2 = InvertSign(ReLU(.))

    # ---- ganglion head: VPU elementwise accumulation, one reduction per group ----
    # scale (ScaleShift) and |.| (AbsLinear) are folded into wgb/wga; zero weights
    # on garbage columns make the full-width layout exact.
    for b in range(bt):
        bip_b = bips[b]
        am_b = am2[:, b * NAP:(b + 1) * NAP] if bt > 1 else am2
        gb = wgb_ref[0] * bip_b[0:1, :]
        for c in range(1, C0):
            gb = gb + wgb_ref[c] * bip_b[c:c + 1, :]          # (N_UNITS, NBP)
        ga = wga_ref[0] * am_b[0:1, :]
        for c in range(1, C1):
            ga = ga + wga_ref[c] * am_b[c:c + 1, :]           # (N_UNITS, NAP)
        y = (jnp.sum(gb, axis=1, keepdims=True)
             + jnp.sum(ga, axis=1, keepdims=True)
             + shift_ref[...])
        # PyTorch Softplus (beta=1, threshold=20)
        gang_ref[b] = jnp.where(y > 20.0, y,
                                jnp.log1p(jnp.exp(jnp.minimum(y, 20.0))))


# ----------------------------- parameters ------------------------------------
def init_params(key):
    def u(k, shape, fan_in):
        bound = 1.0 / jnp.sqrt(float(fan_in))
        return jax.random.uniform(k, shape, jnp.float32, -bound, bound)

    ks = jax.random.split(key, 12)
    length = L_BI + L_AM
    return {
        "w_bip": u(ks[0], (C0, C_IN, K1, K1), C_IN * K1 * K1),
        "b_bip": u(ks[1], (C0,), C_IN * K1 * K1),
        "w_am": u(ks[2], (C1, C0, K2, K2), C0 * K2 * K2),
        "b_am": u(ks[3], (C1,), C0 * K2 * K2),
        "w_xh": u(ks[4], (RNN, C0), C0),
        "w_hh": u(ks[5], (RNN, RNN), RNN),
        "b_h": u(ks[6], (RNN,), RNN),
        "w_fb": u(ks[7], (C0, RNN), RNN),
        "b_fb": u(ks[8], (C0,), RNN),
        "w_g": u(ks[9], (N_UNITS, length), length),
        "scale": jnp.ones((N_UNITS,), jnp.float32),
        "shift": jnp.zeros((N_UNITS,), jnp.float32),
    }


def prepare_params(params):
    """One-time kernel-native re-layout (hoisted out of the per-timestep forward):
    per-dh conv weight blocks with (dw, c) K-ordering, |W_g| with ScaleShift's
    scale folded in, split/zero-padded into the kernel's full-width flat layout."""
    # bipolar conv weight, input channels zero-padded to CP for aligned concat
    w1p = jnp.pad(params["w_bip"], ((0, 0), (0, CP - C_IN), (0, 0), (0, 0)))
    w1d = w1p.transpose(2, 0, 3, 1).reshape(K1, C0, K1 * CP)          # [dh, o, dw*CP+c]
    wamd = params["w_am"].transpose(2, 0, 3, 1).reshape(K2, C1, K2 * C0)  # [dh, o, dw*C0+c]

    wg = jnp.abs(params["w_g"]) * params["scale"][:, None]            # AbsLinear + scale fold
    wgb = wg[:, :L_BI].reshape(N_UNITS, C0, H1, W1)
    wgb = jnp.pad(wgb, ((0, 0), (0, 0), (0, 0), (0, W - W1))).reshape(N_UNITS, C0, H1 * W)
    wgb = jnp.pad(wgb, ((0, 0), (0, 0), (0, NBP - H1 * W))).transpose(1, 0, 2)   # (C0,N_UNITS,NBP)
    wga = wg[:, L_BI:].reshape(N_UNITS, C1, H2, W2)
    wga = jnp.pad(wga, ((0, 0), (0, 0), (0, 0), (0, W - W2))).reshape(N_UNITS, C1, H2 * W)
    wga = jnp.pad(wga, ((0, 0), (0, 0), (0, NAP - H2 * W))).transpose(1, 0, 2)   # (C1,N_UNITS,NAP)

    return {
        "w1d": w1d, "b1": params["b_bip"].reshape(C0, 1),
        "wamd": wamd, "bam": params["b_am"].reshape(C1, 1),
        "wxh": params["w_xh"], "whh": params["w_hh"], "bh": params["b_h"].reshape(RNN, 1),
        "wfb": params["w_fb"], "bfb": params["b_fb"].reshape(C0, 1),
        "wgb": wgb, "wga": wga, "shift": params["shift"].reshape(N_UNITS, 1),
    }


# ----------------------------- forward pass -----------------------------------
@jax.jit
def proto_amac_rnn_forward(prep, x, h_bi, h_am):
    """x: (B, C_in, H, W); h_bi: (B, C0, H1, W1); h_am: (B, RNN, H1, W1).
    Returns (ganglion (B, n_units), [h_bi_new, h_am_new])."""
    B = x.shape[0]
    f32 = jnp.float32

    # cheap host-side re-layout (flatten + zero pad only; no im2col inflation)
    x2 = jnp.pad(x.astype(f32), ((0, 0), (0, CP - C_IN), (0, 0), (0, 0)))
    x2 = jnp.pad(x2.reshape(B, CP, H * W), ((0, 0), (0, 0), (0, NXP - H * W)))

    def state_to_full(hh, c):
        hf = jnp.pad(hh.astype(f32), ((0, 0), (0, 0), (0, 0), (0, W - W1)))
        return jnp.pad(hf.reshape(B, c, H1 * W), ((0, 0), (0, 0), (0, NBP - H1 * W)))

    hbi_f = state_to_full(h_bi, C0)
    ham_f = state_to_full(h_am, RNN)

    # 2-way "parallel" grid (one shard per v7x TensorCore); within a grid step
    # the remaining batches are folded into the matmul lane dimension.
    ng = 2 if (B % 2 == 0 and B >= 2) else 1
    bt = B // ng

    def batched(c, n):
        return pl.BlockSpec((bt, c, n), lambda g: (g, 0, 0))

    def full2(r, c):
        return pl.BlockSpec((r, c), lambda g: (0, 0))

    def full3(a, r, c):
        return pl.BlockSpec((a, r, c), lambda g: (0, 0, 0))

    gang, hbi_new_f, ham_new_f = pl.pallas_call(
        _fused_kernel,
        out_shape=(jax.ShapeDtypeStruct((B, N_UNITS, 1), f32),
                   jax.ShapeDtypeStruct((B, C0, NBP), f32),
                   jax.ShapeDtypeStruct((B, RNN, NBP), f32)),
        grid=(ng,),
        in_specs=[batched(CP, NXP), batched(C0, NBP), batched(RNN, NBP),
                  full3(K1, C0, K1 * CP), full2(C0, 1),
                  full3(K2, C1, K2 * C0), full2(C1, 1),
                  full2(RNN, C0), full2(RNN, RNN), full2(RNN, 1),
                  full2(C0, RNN), full2(C0, 1),
                  full3(C0, N_UNITS, NBP), full3(C1, N_UNITS, NAP),
                  full2(N_UNITS, 1)],
        out_specs=(batched(N_UNITS, 1), batched(C0, NBP), batched(RNN, NBP)),
        compiler_params=pltpu.CompilerParams(dimension_semantics=("parallel",)),
    )(x2, hbi_f, ham_f,
      prep["w1d"], prep["b1"], prep["wamd"], prep["bam"],
      prep["wxh"], prep["whh"], prep["bh"], prep["wfb"], prep["bfb"],
      prep["wgb"], prep["wga"], prep["shift"])

    ganglion = gang.reshape(B, N_UNITS)
    h_bi_new = hbi_new_f[:, :, :H1 * W].reshape(B, C0, H1, W)[:, :, :, :W1]
    h_am_new = ham_new_f[:, :, :H1 * W].reshape(B, RNN, H1, W)[:, :, :, :W1]
    return ganglion, [h_bi_new, h_am_new]


# ----------------------------- pure-JAX reference -----------------------------
def reference_forward(params, x, h_bi, h_am):
    hi = lax.Precision.HIGHEST

    def conv(t, w, b):
        out = lax.conv_general_dilated(t, w, (1, 1), "VALID",
                                       dimension_numbers=("NCHW", "OIHW", "NCHW"),
                                       precision=hi)
        return out + b[None, :, None, None]

    bip = jnp.maximum(conv(x, params["w_bip"], params["b_bip"]) + h_bi, 0.0)
    pre = (jnp.einsum("rc,bchw->brhw", params["w_xh"], bip, precision=hi)
           + jnp.einsum("rs,bshw->brhw", params["w_hh"], h_am, precision=hi)
           + params["b_h"][None, :, None, None])
    h_am_new = jnp.tanh(pre)
    h_bi_new = (jnp.einsum("cr,brhw->bchw", params["w_fb"], h_am_new, precision=hi)
                + params["b_fb"][None, :, None, None])
    am2 = -jnp.maximum(conv(bip, params["w_am"], params["b_am"]), 0.0)
    cat = jnp.concatenate([bip.reshape(x.shape[0], -1), am2.reshape(x.shape[0], -1)], axis=-1)
    g = jnp.einsum("ul,bl->bu", jnp.abs(params["w_g"]), cat, precision=hi)
    y = g * params["scale"][None, :] + params["shift"][None, :]
    gang = jnp.where(y > 20.0, y, jnp.log1p(jnp.exp(jnp.minimum(y, 20.0))))
    return gang, h_bi_new, h_am_new


# ----------------------------- main -------------------------------------------
if __name__ == "__main__":
    key = jax.random.PRNGKey(0)
    kp, kx, kb, ka = jax.random.split(key, 4)

    params = init_params(kp)
    prep = prepare_params(params)   # one-time re-layout, outside the RNN step

    x = jax.random.normal(kx, (BATCH, C_IN, H, W), jnp.float32)
    h_bi = jax.random.normal(kb, (BATCH, C0, H1, W1), jnp.float32)
    h_am = jax.random.normal(ka, (BATCH, RNN, H1, W1), jnp.float32)

    ganglion, (h_bi_new, h_am_new) = proto_amac_rnn_forward(prep, x, h_bi, h_am)
    jax.block_until_ready((ganglion, h_bi_new, h_am_new))

    assert ganglion.shape == (BATCH, N_UNITS)
    assert h_bi_new.shape == h_bi.shape
    assert h_am_new.shape == h_am.shape
    assert bool(jnp.all(jnp.isfinite(ganglion)))
    assert bool(jnp.all(ganglion >= 0.0))          # softplus output is non-negative

    ref_g, ref_hbi, ref_ham = reference_forward(params, x, h_bi, h_am)
    assert bool(jnp.allclose(ganglion, ref_g, rtol=5e-2, atol=5e-2))
    assert bool(jnp.allclose(h_bi_new, ref_hbi, rtol=5e-2, atol=5e-2))
    assert bool(jnp.allclose(h_am_new, ref_ham, rtol=5e-2, atol=5e-2))

    print("KERNEL_OK")
</pallas_src>

<mosaic_0001>
module attributes {stable_mosaic.version = 11 : i64} {
  func.func @_fused_kernel(%arg0: i32, %arg1: memref<2x8x384xf32, #tpu.memory_space<vmem>>, %arg2: memref<2x8x256xf32, #tpu.memory_space<vmem>>, %arg3: memref<2x2x256xf32, #tpu.memory_space<vmem>>, %arg4: memref<7x8x56xf32, #tpu.memory_space<vmem>>, %arg5: memref<8x1xf32, #tpu.memory_space<vmem>>, %arg6: memref<5x8x40xf32, #tpu.memory_space<vmem>>, %arg7: memref<8x1xf32, #tpu.memory_space<vmem>>, %arg8: memref<2x8xf32, #tpu.memory_space<vmem>>, %arg9: memref<2x2xf32, #tpu.memory_space<vmem>>, %arg10: memref<2x1xf32, #tpu.memory_space<vmem>>, %arg11: memref<8x2xf32, #tpu.memory_space<vmem>>, %arg12: memref<8x1xf32, #tpu.memory_space<vmem>>, %arg13: memref<8x5x256xf32, #tpu.memory_space<vmem>>, %arg14: memref<8x5x128xf32, #tpu.memory_space<vmem>>, %arg15: memref<5x1xf32, #tpu.memory_space<vmem>>, %arg16: memref<2x5x1xf32, #tpu.memory_space<vmem>>, %arg17: memref<2x8x256xf32, #tpu.memory_space<vmem>>, %arg18: memref<2x2x256xf32, #tpu.memory_space<vmem>>) attributes {dimension_semantics = [#tpu.dimension_semantics<parallel>], iteration_bounds = array<i64: 2>, scalar_prefetch = 0 : i64, scratch_operands = 0 : i64, tpu.core_type = #tpu.core_type<tc>, window_params = [{transform_indices = @transform_0, window_bounds = array<i64: 2, 8, 384>}, {transform_indices = @transform_1, window_bounds = array<i64: 2, 8, 256>}, {transform_indices = @transform_2, window_bounds = array<i64: 2, 2, 256>}, {pipeline_mode = #tpu.pipeline_mode<synchronous>, transform_indices = @transform_3, window_bounds = array<i64: 7, 8, 56>}, {pipeline_mode = #tpu.pipeline_mode<synchronous>, transform_indices = @transform_4, window_bounds = array<i64: 8, 1>}, {pipeline_mode = #tpu.pipeline_mode<synchronous>, transform_indices = @transform_5, window_bounds = array<i64: 5, 8, 40>}, {pipeline_mode = #tpu.pipeline_mode<synchronous>, transform_indices = @transform_6, window_bounds = array<i64: 8, 1>}, {pipeline_mode = #tpu.pipeline_mode<synchronous>, transform_indices = @transform_7, window_bounds = array<i64: 2, 8>}, {pipeline_mode = #tpu.pipeline_mode<synchronous>, transform_indices = @transform_8, window_bounds = array<i64: 2, 2>}, {pipeline_mode = #tpu.pipeline_mode<synchronous>, transform_indices = @transform_9, window_bounds = array<i64: 2, 1>}, {pipeline_mode = #tpu.pipeline_mode<synchronous>, transform_indices = @transform_10, window_bounds = array<i64: 8, 2>}, {pipeline_mode = #tpu.pipeline_mode<synchronous>, transform_indices = @transform_11, window_bounds = array<i64: 8, 1>}, {pipeline_mode = #tpu.pipeline_mode<synchronous>, transform_indices = @transform_12, window_bounds = array<i64: 8, 5, 256>}, {pipeline_mode = #tpu.pipeline_mode<synchronous>, transform_indices = @transform_13, window_bounds = array<i64: 8, 5, 128>}, {pipeline_mode = #tpu.pipeline_mode<synchronous>, transform_indices = @transform_14, window_bounds = array<i64: 5, 1>}, {transform_indices = @transform_15, window_bounds = array<i64: 2, 5, 1>}, {transform_indices = @transform_16, window_bounds = array<i64: 2, 8, 256>}, {transform_indices = @transform_17, window_bounds = array<i64: 2, 2, 256>}]} {
    %c0 = arith.constant 0 : index
    %c0_0 = arith.constant 0 : index
    %c0_1 = arith.constant 0 : index
    %0 = vector.load %arg1[%c0, %c0_0, %c0_1] : memref<2x8x384xf32, #tpu.memory_space<vmem>>, vector<1x8x384xf32>
    %1 = vector.shape_cast %0 : vector<1x8x384xf32> to vector<8x384xf32>
    %c1 = arith.constant 1 : index
    %c0_2 = arith.constant 0 : index
    %c0_3 = arith.constant 0 : index
    %2 = vector.load %arg1[%c1, %c0_2, %c0_3] : memref<2x8x384xf32, #tpu.memory_space<vmem>>, vector<1x8x384xf32>
    %3 = vector.shape_cast %2 : vector<1x8x384xf32> to vector<8x384xf32>
    %cst = arith.constant 0.000000e+00 : f32
    %4 = vector.broadcast %cst : f32 to vector<8x512xf32>
    %5 = vector.extract_strided_slice %1 {offsets = [0, 0], sizes = [8, 256], strides = [1, 1]} : vector<8x384xf32> to vector<8x256xf32>
    %6 = vector.extract_strided_slice %1 {offsets = [0, 1], sizes = [8, 256], strides = [1, 1]} : vector<8x384xf32> to vector<8x256xf32>
    %7 = vector.extract_strided_slice %1 {offsets = [0, 2], sizes = [8, 256], strides = [1, 1]} : vector<8x384xf32> to vector<8x256xf32>
    %8 = vector.extract_strided_slice %1 {offsets = [0, 3], sizes = [8, 256], strides = [1, 1]} : vector<8x384xf32> to vector<8x256xf32>
    %9 = vector.extract_strided_slice %1 {offsets = [0, 4], sizes = [8, 256], strides = [1, 1]} : vector<8x384xf32> to vector<8x256xf32>
    %10 = vector.extract_strided_slice %1 {offsets = [0, 5], sizes = [8, 256], strides = [1, 1]} : vector<8x384xf32> to vector<8x256xf32>
    %11 = vector.extract_strided_slice %1 {offsets = [0, 6], sizes = [8, 256], strides = [1, 1]} : vector<8x384xf32> to vector<8x256xf32>
    %12 = tpu.concatenate %5, %6, %7, %8, %9, %10, %11 in 0 : vector<8x256xf32>, vector<8x256xf32>, vector<8x256xf32>, vector<8x256xf32>, vector<8x256xf32>, vector<8x256xf32>, vector<8x256xf32> -> vector<56x256xf32>
    %13 = vector.extract_strided_slice %3 {offsets = [0, 0], sizes = [8, 256], strides = [1, 1]} : vector<8x384xf32> to vector<8x256xf32>
    %14 = vector.extract_strided_slice %3 {offsets = [0, 1], sizes = [8, 256], strides = [1, 1]} : vector<8x384xf32> to vector<8x256xf32>
    %15 = vector.extract_strided_slice %3 {offsets = [0, 2], sizes = [8, 256], strides = [1, 1]} : vector<8x384xf32> to vector<8x256xf32>
    %16 = vector.extract_strided_slice %3 {offsets = [0, 3], sizes = [8, 256], strides = [1, 1]} : vector<8x384xf32> to vector<8x256xf32>
    %17 = vector.extract_strided_slice %3 {offsets = [0, 4], sizes = [8, 256], strides = [1, 1]} : vector<8x384xf32> to vector<8x256xf32>
    %18 = vector.extract_strided_slice %3 {offsets = [0, 5], sizes = [8, 256], strides = [1, 1]} : vector<8x384xf32> to vector<8x256xf32>
    %19 = vector.extract_strided_slice %3 {offsets = [0, 6], sizes = [8, 256], strides = [1, 1]} : vector<8x384xf32> to vector<8x256xf32>
    %20 = tpu.concatenate %13, %14, %15, %16, %17, %18, %19 in 0 : vector<8x256xf32>, vector<8x256xf32>, vector<8x256xf32>, vector<8x256xf32>, vector<8x256xf32>, vector<8x256xf32>, vector<8x256xf32> -> vector<56x256xf32>
    %21 = tpu.concatenate %12, %20 in 1 : vector<56x256xf32>, vector<56x256xf32> -> vector<56x512xf32>
    %c0_4 = arith.constant 0 : index
    %c0_5 = arith.constant 0 : index
    %c0_6 = arith.constant 0 : index
    %22 = vector.load %arg4[%c0_4, %c0_5, %c0_6] : memref<7x8x56xf32, #tpu.memory_space<vmem>>, vector<1x8x56xf32>
    %23 = vector.shape_cast %22 : vector<1x8x56xf32> to vector<8x56xf32>
    %cst_7 = arith.constant dense<0.000000e+00> : vector<8x512xf32>
    %24 = tpu.matmul %23, %21, %cst_7 {dimension_numbers = #tpu.dot_dimension_numbers<[1], [0], [0], [1], [0, 0, 1, 1], [], []>} : vector<8x56xf32>, vector<56x512xf32>, vector<8x512xf32> -> vector<8x512xf32>
    %25 = arith.addf %4, %24 : vector<8x512xf32>
    %26 = vector.extract_strided_slice %1 {offsets = [0, 16], sizes = [8, 256], strides = [1, 1]} : vector<8x384xf32> to vector<8x256xf32>
    %27 = vector.extract_strided_slice %1 {offsets = [0, 17], sizes = [8, 256], strides = [1, 1]} : vector<8x384xf32> to vector<8x256xf32>
    %28 = vector.extract_strided_slice %1 {offsets = [0, 18], sizes = [8, 256], strides = [1, 1]} : vector<8x384xf32> to vector<8x256xf32>
    %29 = vector.extract_strided_slice %1 {offsets = [0, 19], sizes = [8, 256], strides = [1, 1]} : vector<8x384xf32> to vector<8x256xf32>
    %30 = vector.extract_strided_slice %1 {offsets = [0, 20], sizes = [8, 256], strides = [1, 1]} : vector<8x384xf32> to vector<8x256xf32>
    %31 = vector.extract_strided_slice %1 {offsets = [0, 21], sizes = [8, 256], strides = [1, 1]} : vector<8x384xf32> to vector<8x256xf32>
    %32 = vector.extract_strided_slice %1 {offsets = [0, 22], sizes = [8, 256], strides = [1, 1]} : vector<8x384xf32> to vector<8x256xf32>
    %33 = tpu.concatenate %26, %27, %28, %29, %30, %31, %32 in 0 : vector<8x256xf32>, vector<8x256xf32>, vector<8x256xf32>, vector<8x256xf32>, vector<8x256xf32>, vector<8x256xf32>, vector<8x256xf32> -> vector<56x256xf32>
    %34 = vector.extract_strided_slice %3 {offsets = [0, 16], sizes = [8, 256], strides = [1, 1]} : vector<8x384xf32> to vector<8x256xf32>
    %35 = vector.extract_strided_slice %3 {offsets = [0, 17], sizes = [8, 256], strides = [1, 1]} : vector<8x384xf32> to vector<8x256xf32>
    %36 = vector.extract_strided_slice %3 {offsets = [0, 18], sizes = [8, 256], strides = [1, 1]} : vector<8x384xf32> to vector<8x256xf32>
    %37 = vector.extract_strided_slice %3 {offsets = [0, 19], sizes = [8, 256], strides = [1, 1]} : vector<8x384xf32> to vector<8x256xf32>
    %38 = vector.extract_strided_slice %3 {offsets = [0, 20], sizes = [8, 256], strides = [1, 1]} : vector<8x384xf32> to vector<8x256xf32>
    %39 = vector.extract_strided_slice %3 {offsets = [0, 21], sizes = [8, 256], strides = [1, 1]} : vector<8x384xf32> to vector<8x256xf32>
    %40 = vector.extract_strided_slice %3 {offsets = [0, 22], sizes = [8, 256], strides = [1, 1]} : vector<8x384xf32> to vector<8x256xf32>
    %41 = tpu.concatenate %34, %35, %36, %37, %38, %39, %40 in 0 : vector<8x256xf32>, vector<8x256xf32>, vector<8x256xf32>, vector<8x256xf32>, vector<8x256xf32>, vector<8x256xf32>, vector<8x256xf32> -> vector<56x256xf32>
    %42 = tpu.concatenate %33, %41 in 1 : vector<56x256xf32>, vector<56x256xf32> -> vector<56x512xf32>
    %c1_8 = arith.constant 1 : index
    %c0_9 = arith.constant 0 : index
    %c0_10 = arith.constant 0 : index
    %43 = vector.load %arg4[%c1_8, %c0_9, %c0_10] : memref<7x8x56xf32, #tpu.memory_space<vmem>>, vector<1x8x56xf32>
    %44 = vector.shape_cast %43 : vector<1x8x56xf32> to vector<8x56xf32>
    %cst_11 = arith.constant dense<0.000000e+00> : vector<8x512xf32>
    %45 = tpu.matmul %44, %42, %cst_11 {dimension_numbers = #tpu.dot_dimension_numbers<[1], [0], [0], [1], [0, 0, 1, 1], [], []>} : vector<8x56xf32>, vector<56x512xf32>, vector<8x512xf32> -> vector<8x512xf32>
    %46 = arith.addf %25, %45 : vector<8x512xf32>
    %47 = vector.extract_strided_slice %1 {offsets = [0, 32], sizes = [8, 256], strides = [1, 1]} : vector<8x384xf32> to vector<8x256xf32>
    %48 = vector.extract_strided_slice %1 {offsets = [0, 33], sizes = [8, 256], strides = [1, 1]} : vector<8x384xf32> to vector<8x256xf32>
    %49 = vector.extract_strided_slice %1 {offsets = [0, 34], sizes = [8, 256], strides = [1, 1]} : vector<8x384xf32> to vector<8x256xf32>
    %50 = vector.extract_strided_slice %1 {offsets = [0, 35], sizes = [8, 256], strides = [1, 1]} : vector<8x384xf32> to vector<8x256xf32>
    %51 = vector.extract_strided_slice %1 {offsets = [0, 36], sizes = [8, 256], strides = [1, 1]} : vector<8x384xf32> to vector<8x256xf32>
    %52 = vector.extract_strided_slice %1 {offsets = [0, 37], sizes = [8, 256], strides = [1, 1]} : vector<8x384xf32> to vector<8x256xf32>
    %53 = vector.extract_strided_slice %1 {offsets = [0, 38], sizes = [8, 256], strides = [1, 1]} : vector<8x384xf32> to vector<8x256xf32>
    %54 = tpu.concatenate %47, %48, %49, %50, %51, %52, %53 in 0 : vector<8x256xf32>, vector<8x256xf32>, vector<8x256xf32>, vector<8x256xf32>, vector<8x256xf32>, vector<8x256xf32>, vector<8x256xf32> -> vector<56x256xf32>
    %55 = vector.extract_strided_slice %3 {offsets = [0, 32], sizes = [8, 256], strides = [1, 1]} : vector<8x384xf32> to vector<8x256xf32>
    %56 = vector.extract_strided_slice %3 {offsets = [0, 33], sizes = [8, 256], strides = [1, 1]} : vector<8x384xf32> to vector<8x256xf32>
    %57 = vector.extract_strided_slice %3 {offsets = [0, 34], sizes = [8, 256], strides = [1, 1]} : vector<8x384xf32> to vector<8x256xf32>
    %58 = vector.extract_strided_slice %3 {offsets = [0, 35], sizes = [8, 256], strides = [1, 1]} : vector<8x384xf32> to vector<8x256xf32>
    %59 = vector.extract_strided_slice %3 {offsets = [0, 36], sizes = [8, 256], strides = [1, 1]} : vector<8x384xf32> to vector<8x256xf32>
    %60 = vector.extract_strided_slice %3 {offsets = [0, 37], sizes = [8, 256], strides = [1, 1]} : vector<8x384xf32> to vector<8x256xf32>
    %61 = vector.extract_strided_slice %3 {offsets = [0, 38], sizes = [8, 256], strides = [1, 1]} : vector<8x384xf32> to vector<8x256xf32>
    %62 = tpu.concatenate %55, %56, %57, %58, %59, %60, %61 in 0 : vector<8x256xf32>, vector<8x256xf32>, vector<8x256xf32>, vector<8x256xf32>, vector<8x256xf32>, vector<8x256xf32>, vector<8x256xf32> -> vector<56x256xf32>
    %63 = tpu.concatenate %54, %62 in 1 : vector<56x256xf32>, vector<56x256xf32> -> vector<56x512xf32>
    %c2 = arith.constant 2 : index
    %c0_12 = arith.constant 0 : index
    %c0_13 = arith.constant 0 : index
    %64 = vector.load %arg4[%c2, %c0_12, %c0_13] : memref<7x8x56xf32, #tpu.memory_space<vmem>>, vector<1x8x56xf32>
    %65 = vector.shape_cast %64 : vector<1x8x56xf32> to vector<8x56xf32>
    %cst_14 = arith.constant dense<0.000000e+00> : vector<8x512xf32>
    %66 = tpu.matmul %65, %63, %cst_14 {dimension_numbers = #tpu.dot_dimension_numbers<[1], [0], [0], [1], [0, 0, 1, 1], [], []>} : vector<8x56xf32>, vector<56x512xf32>, vector<8x512xf32> -> vector<8x512xf32>
    %67 = arith.addf %46, %66 : vector<8x512xf32>
    %68 = vector.extract_strided_slice %1 {offsets = [0, 48], sizes = [8, 256], strides = [1, 1]} : vector<8x384xf32> to vector<8x256xf32>
    %69 = vector.extract_strided_slice %1 {offsets = [0, 49], sizes = [8, 256], strides = [1, 1]} : vector<8x384xf32> to vector<8x256xf32>
    %70 = vector.extract_strided_slice %1 {offsets = [0, 50], sizes = [8, 256], strides = [1, 1]} : vector<8x384xf32> to vector<8x256xf32>
    %71 = vector.extract_strided_slice %1 {offsets = [0, 51], sizes = [8, 256], strides = [1, 1]} : vector<8x384xf32> to vector<8x256xf32>
    %72 = vector.extract_strided_slice %1 {offsets = [0, 52], sizes = [8, 256], strides = [1, 1]} : vector<8x384xf32> to vector<8x256xf32>
    %73 = vector.extract_strided_slice %1 {offsets = [0, 53], sizes = [8, 256], strides = [1, 1]} : vector<8x384xf32> to vector<8x256xf32>
    %74 = vector.extract_strided_slice %1 {offsets = [0, 54], sizes = [8, 256], strides = [1, 1]} : vector<8x384xf32> to vector<8x256xf32>
    %75 = tpu.concatenate %68, %69, %70, %71, %72, %73, %74 in 0 : vector<8x256xf32>, vector<8x256xf32>, vector<8x256xf32>, vector<8x256xf32>, vector<8x256xf32>, vector<8x256xf32>, vector<8x256xf32> -> vector<56x256xf32>
    %76 = vector.extract_strided_slice %3 {offsets = [0, 48], sizes = [8, 256], strides = [1, 1]} : vector<8x384xf32> to vector<8x256xf32>
    %77 = vector.extract_strided_slice %3 {offsets = [0, 49], sizes = [8, 256], strides = [1, 1]} : vector<8x384xf32> to vector<8x256xf32>
    %78 = vector.extract_strided_slice %3 {offsets = [0, 50], sizes = [8, 256], strides = [1, 1]} : vector<8x384xf32> to vector<8x256xf32>
    %79 = vector.extract_strided_slice %3 {offsets = [0, 51], sizes = [8, 256], strides = [1, 1]} : vector<8x384xf32> to vector<8x256xf32>
    %80 = vector.extract_strided_slice %3 {offsets = [0, 52], sizes = [8, 256], strides = [1, 1]} : vector<8x384xf32> to vector<8x256xf32>
    %81 = vector.extract_strided_slice %3 {offsets = [0, 53], sizes = [8, 256], strides = [1, 1]} : vector<8x384xf32> to vector<8x256xf32>
    %82 = vector.extract_strided_slice %3 {offsets = [0, 54], sizes = [8, 256], strides = [1, 1]} : vector<8x384xf32> to vector<8x256xf32>
    %83 = tpu.concatenate %76, %77, %78, %79, %80, %81, %82 in 0 : vector<8x256xf32>, vector<8x256xf32>, vector<8x256xf32>, vector<8x256xf32>, vector<8x256xf32>, vector<8x256xf32>, vector<8x256xf32> -> vector<56x256xf32>
    %84 = tpu.concatenate %75, %83 in 1 : vector<56x256xf32>, vector<56x256xf32> -> vector<56x512xf32>
    %c3 = arith.constant 3 : index
    %c0_15 = arith.constant 0 : index
    %c0_16 = arith.constant 0 : index
    %85 = vector.load %arg4[%c3, %c0_15, %c0_16] : memref<7x8x56xf32, #tpu.memory_space<vmem>>, vector<1x8x56xf32>
    %86 = vector.shape_cast %85 : vector<1x8x56xf32> to vector<8x56xf32>
    %cst_17 = arith.constant dense<0.000000e+00> : vector<8x512xf32>
    %87 = tpu.matmul %86, %84, %cst_17 {dimension_numbers = #tpu.dot_dimension_numbers<[1], [0], [0], [1], [0, 0, 1, 1], [], []>} : vector<8x56xf32>, vector<56x512xf32>, vector<8x512xf32> -> vector<8x512xf32>
    %88 = arith.addf %67, %87 : vector<8x512xf32>
    %89 = vector.extract_strided_slice %1 {offsets = [0, 64], sizes = [8, 256], strides = [1, 1]} : vector<8x384xf32> to vector<8x256xf32>
    %90 = vector.extract_strided_slice %1 {offsets = [0, 65], sizes = [8, 256], strides = [1, 1]} : vector<8x384xf32> to vector<8x256xf32>
    %91 = vector.extract_strided_slice %1 {offsets = [0, 66], sizes = [8, 256], strides = [1, 1]} : vector<8x384xf32> to vector<8x256xf32>
    %92 = vector.extract_strided_slice %1 {offsets = [0, 67], sizes = [8, 256], strides = [1, 1]} : vector<8x384xf32> to vector<8x256xf32>
    %93 = vector.extract_strided_slice %1 {offsets = [0, 68], sizes = [8, 256], strides = [1, 1]} : vector<8x384xf32> to vector<8x256xf32>
    %94 = vector.extract_strided_slice %1 {offsets = [0, 69], sizes = [8, 256], strides = [1, 1]} : vector<8x384xf32> to vector<8x256xf32>
    %95 = vector.extract_strided_slice %1 {offsets = [0, 70], sizes = [8, 256], strides = [1, 1]} : vector<8x384xf32> to vector<8x256xf32>
    %96 = tpu.concatenate %89, %90, %91, %92, %93, %94, %95 in 0 : vector<8x256xf32>, vector<8x256xf32>, vector<8x256xf32>, vector<8x256xf32>, vector<8x256xf32>, vector<8x256xf32>, vector<8x256xf32> -> vector<56x256xf32>
    %97 = vector.extract_strided_slice %3 {offsets = [0, 64], sizes = [8, 256], strides = [1, 1]} : vector<8x384xf32> to vector<8x256xf32>
    %98 = vector.extract_strided_slice %3 {offsets = [0, 65], sizes = [8, 256], strides = [1, 1]} : vector<8x384xf32> to vector<8x256xf32>
    %99 = vector.extract_strided_slice %3 {offsets = [0, 66], sizes = [8, 256], strides = [1, 1]} : vector<8x384xf32> to vector<8x256xf32>
    %100 = vector.extract_strided_slice %3 {offsets = [0, 67], sizes = [8, 256], strides = [1, 1]} : vector<8x384xf32> to vector<8x256xf32>
    %101 = vector.extract_strided_slice %3 {offsets = [0, 68], sizes = [8, 256], strides = [1, 1]} : vector<8x384xf32> to vector<8x256xf32>
    %102 = vector.extract_strided_slice %3 {offsets = [0, 69], sizes = [8, 256], strides = [1, 1]} : vector<8x384xf32> to vector<8x256xf32>
    %103 = vector.extract_strided_slice %3 {offsets = [0, 70], sizes = [8, 256], strides = [1, 1]} : vector<8x384xf32> to vector<8x256xf32>
    %104 = tpu.concatenate %97, %98, %99, %100, %101, %102, %103 in 0 : vector<8x256xf32>, vector<8x256xf32>, vector<8x256xf32>, vector<8x256xf32>, vector<8x256xf32>, vector<8x256xf32>, vector<8x256xf32> -> vector<56x256xf32>
    %105 = tpu.concatenate %96, %104 in 1 : vector<56x256xf32>, vector<56x256xf32> -> vector<56x512xf32>
    %c4 = arith.constant 4 : index
    %c0_18 = arith.constant 0 : index
    %c0_19 = arith.constant 0 : index
    %106 = vector.load %arg4[%c4, %c0_18, %c0_19] : memref<7x8x56xf32, #tpu.memory_space<vmem>>, vector<1x8x56xf32>
    %107 = vector.shape_cast %106 : vector<1x8x56xf32> to vector<8x56xf32>
    %cst_20 = arith.constant dense<0.000000e+00> : vector<8x512xf32>
    %108 = tpu.matmul %107, %105, %cst_20 {dimension_numbers = #tpu.dot_dimension_numbers<[1], [0], [0], [1], [0, 0, 1, 1], [], []>} : vector<8x56xf32>, vector<56x512xf32>, vector<8x512xf32> -> vector<8x512xf32>
    %109 = arith.addf %88, %108 : vector<8x512xf32>
    %110 = vector.extract_strided_slice %1 {offsets = [0, 80], sizes = [8, 256], strides = [1, 1]} : vector<8x384xf32> to vector<8x256xf32>
    %111 = vector.extract_strided_slice %1 {offsets = [0, 81], sizes = [8, 256], strides = [1, 1]} : vector<8x384xf32> to vector<8x256xf32>
    %112 = vector.extract_strided_slice %1 {offsets = [0, 82], sizes = [8, 256], strides = [1, 1]} : vector<8x384xf32> to vector<8x256xf32>
    %113 = vector.extract_strided_slice %1 {offsets = [0, 83], sizes = [8, 256], strides = [1, 1]} : vector<8x384xf32> to vector<8x256xf32>
    %114 = vector.extract_strided_slice %1 {offsets = [0, 84], sizes = [8, 256], strides = [1, 1]} : vector<8x384xf32> to vector<8x256xf32>
    %115 = vector.extract_strided_slice %1 {offsets = [0, 85], sizes = [8, 256], strides = [1, 1]} : vector<8x384xf32> to vector<8x256xf32>
    %116 = vector.extract_strided_slice %1 {offsets = [0, 86], sizes = [8, 256], strides = [1, 1]} : vector<8x384xf32> to vector<8x256xf32>
    %117 = tpu.concatenate %110, %111, %112, %113, %114, %115, %116 in 0 : vector<8x256xf32>, vector<8x256xf32>, vector<8x256xf32>, vector<8x256xf32>, vector<8x256xf32>, vector<8x256xf32>, vector<8x256xf32> -> vector<56x256xf32>
    %118 = vector.extract_strided_slice %3 {offsets = [0, 80], sizes = [8, 256], strides = [1, 1]} : vector<8x384xf32> to vector<8x256xf32>
    %119 = vector.extract_strided_slice %3 {offsets = [0, 81], sizes = [8, 256], strides = [1, 1]} : vector<8x384xf32> to vector<8x256xf32>
    %120 = vector.extract_strided_slice %3 {offsets = [0, 82], sizes = [8, 256], strides = [1, 1]} : vector<8x384xf32> to vector<8x256xf32>
    %121 = vector.extract_strided_slice %3 {offsets = [0, 83], sizes = [8, 256], strides = [1, 1]} : vector<8x384xf32> to vector<8x256xf32>
    %122 = vector.extract_strided_slice %3 {offsets = [0, 84], sizes = [8, 256], strides = [1, 1]} : vector<8x384xf32> to vector<8x256xf32>
    %123 = vector.extract_strided_slice %3 {offsets = [0, 85], sizes = [8, 256], strides = [1, 1]} : vector<8x384xf32> to vector<8x256xf32>
    %124 = vector.extract_strided_slice %3 {offsets = [0, 86], sizes = [8, 256], strides = [1, 1]} : vector<8x384xf32> to vector<8x256xf32>
    %125 = tpu.concatenate %118, %119, %120, %121, %122, %123, %124 in 0 : vector<8x256xf32>, vector<8x256xf32>, vector<8x256xf32>, vector<8x256xf32>, vector<8x256xf32>, vector<8x256xf32>, vector<8x256xf32> -> vector<56x256xf32>
    %126 = tpu.concatenate %117, %125 in 1 : vector<56x256xf32>, vector<56x256xf32> -> vector<56x512xf32>
    %c5 = arith.constant 5 : index
    %c0_21 = arith.constant 0 : index
    %c0_22 = arith.constant 0 : index
    %127 = vector.load %arg4[%c5, %c0_21, %c0_22] : memref<7x8x56xf32, #tpu.memory_space<vmem>>, vector<1x8x56xf32>
    %128 = vector.shape_cast %127 : vector<1x8x56xf32> to vector<8x56xf32>
    %cst_23 = arith.constant dense<0.000000e+00> : vector<8x512xf32>
    %129 = tpu.matmul %128, %126, %cst_23 {dimension_numbers = #tpu.dot_dimension_numbers<[1], [0], [0], [1], [0, 0, 1, 1], [], []>} : vector<8x56xf32>, vector<56x512xf32>, vector<8x512xf32> -> vector<8x512xf32>
    %130 = arith.addf %109, %129 : vector<8x512xf32>
    %131 = vector.extract_strided_slice %1 {offsets = [0, 96], sizes = [8, 256], strides = [1, 1]} : vector<8x384xf32> to vector<8x256xf32>
    %132 = vector.extract_strided_slice %1 {offsets = [0, 97], sizes = [8, 256], strides = [1, 1]} : vector<8x384xf32> to vector<8x256xf32>
    %133 = vector.extract_strided_slice %1 {offsets = [0, 98], sizes = [8, 256], strides = [1, 1]} : vector<8x384xf32> to vector<8x256xf32>
    %134 = vector.extract_strided_slice %1 {offsets = [0, 99], sizes = [8, 256], strides = [1, 1]} : vector<8x384xf32> to vector<8x256xf32>
    %135 = vector.extract_strided_slice %1 {offsets = [0, 100], sizes = [8, 256], strides = [1, 1]} : vector<8x384xf32> to vector<8x256xf32>
    %136 = vector.extract_strided_slice %1 {offsets = [0, 101], sizes = [8, 256], strides = [1, 1]} : vector<8x384xf32> to vector<8x256xf32>
    %137 = vector.extract_strided_slice %1 {offsets = [0, 102], sizes = [8, 256], strides = [1, 1]} : vector<8x384xf32> to vector<8x256xf32>
    %138 = tpu.concatenate %131, %132, %133, %134, %135, %136, %137 in 0 : vector<8x256xf32>, vector<8x256xf32>, vector<8x256xf32>, vector<8x256xf32>, vector<8x256xf32>, vector<8x256xf32>, vector<8x256xf32> -> vector<56x256xf32>
    %139 = vector.extract_strided_slice %3 {offsets = [0, 96], sizes = [8, 256], strides = [1, 1]} : vector<8x384xf32> to vector<8x256xf32>
    %140 = vector.extract_strided_slice %3 {offsets = [0, 97], sizes = [8, 256], strides = [1, 1]} : vector<8x384xf32> to vector<8x256xf32>
    %141 = vector.extract_strided_slice %3 {offsets = [0, 98], sizes = [8, 256], strides = [1, 1]} : vector<8x384xf32> to vector<8x256xf32>
    %142 = vector.extract_strided_slice %3 {offsets = [0, 99], sizes = [8, 256], strides = [1, 1]} : vector<8x384xf32> to vector<8x256xf32>
    %143 = vector.extract_strided_slice %3 {offsets = [0, 100], sizes = [8, 256], strides = [1, 1]} : vector<8x384xf32> to vector<8x256xf32>
    %144 = vector.extract_strided_slice %3 {offsets = [0, 101], sizes = [8, 256], strides = [1, 1]} : vector<8x384xf32> to vector<8x256xf32>
    %145 = vector.extract_strided_slice %3 {offsets = [0, 102], sizes = [8, 256], strides = [1, 1]} : vector<8x384xf32> to vector<8x256xf32>
    %146 = tpu.concatenate %139, %140, %141, %142, %143, %144, %145 in 0 : vector<8x256xf32>, vector<8x256xf32>, vector<8x256xf32>, vector<8x256xf32>, vector<8x256xf32>, vector<8x256xf32>, vector<8x256xf32> -> vector<56x256xf32>
    %147 = tpu.concatenate %138, %146 in 1 : vector<56x256xf32>, vector<56x256xf32> -> vector<56x512xf32>
    %c6 = arith.constant 6 : index
    %c0_24 = arith.constant 0 : index
    %c0_25 = arith.constant 0 : index
    %148 = vector.load %arg4[%c6, %c0_24, %c0_25] : memref<7x8x56xf32, #tpu.memory_space<vmem>>, vector<1x8x56xf32>
    %149 = vector.shape_cast %148 : vector<1x8x56xf32> to vector<8x56xf32>
    %cst_26 = arith.constant dense<0.000000e+00> : vector<8x512xf32>
    %150 = tpu.matmul %149, %147, %cst_26 {dimension_numbers = #tpu.dot_dimension_numbers<[1], [0], [0], [1], [0, 0, 1, 1], [], []>} : vector<8x56xf32>, vector<56x512xf32>, vector<8x512xf32> -> vector<8x512xf32>
    %151 = arith.addf %130, %150 : vector<8x512xf32>
    %c0_27 = arith.constant 0 : index
    %c0_28 = arith.constant 0 : index
    %c0_29 = arith.constant 0 : index
    %152 = vector.load %arg2[%c0_27, %c0_28, %c0_29] : memref<2x8x256xf32, #tpu.memory_space<vmem>>, vector<1x8x256xf32>
    %153 = vector.shape_cast %152 : vector<1x8x256xf32> to vector<8x256xf32>
    %c1_30 = arith.constant 1 : index
    %c0_31 = arith.constant 0 : index
    %c0_32 = arith.constant 0 : index
    %154 = vector.load %arg2[%c1_30, %c0_31, %c0_32] : memref<2x8x256xf32, #tpu.memory_space<vmem>>, vector<1x8x256xf32>
    %155 = vector.shape_cast %154 : vector<1x8x256xf32> to vector<8x256xf32>
    %156 = tpu.concatenate %153, %155 in 1 : vector<8x256xf32>, vector<8x256xf32> -> vector<8x512xf32>
    %c0_33 = arith.constant 0 : index
    %c0_34 = arith.constant 0 : index
    %157 = vector.load %arg5[%c0_33, %c0_34] : memref<8x1xf32, #tpu.memory_space<vmem>>, vector<8x1xf32>
    %158 = vector.broadcast %157 : vector<8x1xf32> to vector<8x512xf32>
    %159 = arith.addf %151, %158 : vector<8x512xf32>
    %160 = arith.addf %159, %156 : vector<8x512xf32>
    %cst_35 = arith.constant 0.000000e+00 : f32
    %161 = vector.broadcast %cst_35 : f32 to vector<8x512xf32>
    %162 = arith.maximumf %160, %161 : vector<8x512xf32>
    %c0_36 = arith.constant 0 : index
    %c0_37 = arith.constant 0 : index
    %c0_38 = arith.constant 0 : index
    %163 = vector.load %arg3[%c0_36, %c0_37, %c0_38] : memref<2x2x256xf32, #tpu.memory_space<vmem>>, vector<1x2x256xf32>
    %164 = vector.shape_cast %163 : vector<1x2x256xf32> to vector<2x256xf32>
    %c1_39 = arith.constant 1 : index
    %c0_40 = arith.constant 0 : index
    %c0_41 = arith.constant 0 : index
    %165 = vector.load %arg3[%c1_39, %c0_40, %c0_41] : memref<2x2x256xf32, #tpu.memory_space<vmem>>, vector<1x2x256xf32>
    %166 = vector.shape_cast %165 : vector<1x2x256xf32> to vector<2x256xf32>
    %167 = tpu.concatenate %164, %166 in 1 : vector<2x256xf32>, vector<2x256xf32> -> vector<2x512xf32>
    %c0_42 = arith.constant 0 : index
    %c0_43 = arith.constant 0 : index
    %168 = vector.load %arg8[%c0_42, %c0_43] : memref<2x8xf32, #tpu.memory_space<vmem>>, vector<2x8xf32>
    %169 = vector.extract_strided_slice %168 {offsets = [0, 0], sizes = [2, 1], strides = [1, 1]} : vector<2x8xf32> to vector<2x1xf32>
    %170 = vector.extract_strided_slice %162 {offsets = [0, 0], sizes = [1, 512], strides = [1, 1]} : vector<8x512xf32> to vector<1x512xf32>
    %171 = vector.broadcast %169 : vector<2x1xf32> to vector<2x512xf32>
    %172 = vector.broadcast %170 : vector<1x512xf32> to vector<2x512xf32>
    %173 = arith.mulf %171, %172 : vector<2x512xf32>
    %174 = vector.extract_strided_slice %168 {offsets = [0, 1], sizes = [2, 1], strides = [1, 1]} : vector<2x8xf32> to vector<2x1xf32>
    %175 = vector.extract_strided_slice %162 {offsets = [1, 0], sizes = [1, 512], strides = [1, 1]} : vector<8x512xf32> to vector<1x512xf32>
    %176 = vector.broadcast %174 : vector<2x1xf32> to vector<2x512xf32>
    %177 = vector.broadcast %175 : vector<1x512xf32> to vector<2x512xf32>
    %178 = arith.mulf %176, %177 : vector<2x512xf32>
    %179 = arith.addf %173, %178 : vector<2x512xf32>
    %180 = vector.extract_strided_slice %168 {offsets = [0, 2], sizes = [2, 1], strides = [1, 1]} : vector<2x8xf32> to vector<2x1xf32>
    %181 = vector.extract_strided_slice %162 {offsets = [2, 0], sizes = [1, 512], strides = [1, 1]} : vector<8x512xf32> to vector<1x512xf32>
    %182 = vector.broadcast %180 : vector<2x1xf32> to vector<2x512xf32>
    %183 = vector.broadcast %181 : vector<1x512xf32> to vector<2x512xf32>
    %184 = arith.mulf %182, %183 : vector<2x512xf32>
    %185 = arith.addf %179, %184 : vector<2x512xf32>
    %186 = vector.extract_strided_slice %168 {offsets = [0, 3], sizes = [2, 1], strides = [1, 1]} : vector<2x8xf32> to vector<2x1xf32>
    %187 = vector.extract_strided_slice %162 {offsets = [3, 0], sizes = [1, 512], strides = [1, 1]} : vector<8x512xf32> to vector<1x512xf32>
    %188 = vector.broadcast %186 : vector<2x1xf32> to vector<2x512xf32>
    %189 = vector.broadcast %187 : vector<1x512xf32> to vector<2x512xf32>
    %190 = arith.mulf %188, %189 : vector<2x512xf32>
    %191 = arith.addf %185, %190 : vector<2x512xf32>
    %192 = vector.extract_strided_slice %168 {offsets = [0, 4], sizes = [2, 1], strides = [1, 1]} : vector<2x8xf32> to vector<2x1xf32>
    %193 = vector.extract_strided_slice %162 {offsets = [4, 0], sizes = [1, 512], strides = [1, 1]} : vector<8x512xf32> to vector<1x512xf32>
    %194 = vector.broadcast %192 : vector<2x1xf32> to vector<2x512xf32>
    %195 = vector.broadcast %193 : vector<1x512xf32> to vector<2x512xf32>
    %196 = arith.mulf %194, %195 : vector<2x512xf32>
    %197 = arith.addf %191, %196 : vector<2x512xf32>
    %198 = vector.extract_strided_slice %168 {offsets = [0, 5], sizes = [2, 1], strides = [1, 1]} : vector<2x8xf32> to vector<2x1xf32>
    %199 = vector.extract_strided_slice %162 {offsets = [5, 0], sizes = [1, 512], strides = [1, 1]} : vector<8x512xf32> to vector<1x512xf32>
    %200 = vector.broadcast %198 : vector<2x1xf32> to vector<2x512xf32>
    %201 = vector.broadcast %199 : vector<1x512xf32> to vector<2x512xf32>
    %202 = arith.mulf %200, %201 : vector<2x512xf32>
    %203 = arith.addf %197, %202 : vector<2x512xf32>
    %204 = vector.extract_strided_slice %168 {offsets = [0, 6], sizes = [2, 1], strides = [1, 1]} : vector<2x8xf32> to vector<2x1xf32>
    %205 = vector.extract_strided_slice %162 {offsets = [6, 0], sizes = [1, 512], strides = [1, 1]} : vector<8x512xf32> to vector<1x512xf32>
    %206 = vector.broadcast %204 : vector<2x1xf32> to vector<2x512xf32>
    %207 = vector.broadcast %205 : vector<1x512xf32> to vector<2x512xf32>
    %208 = arith.mulf %206, %207 : vector<2x512xf32>
    %209 = arith.addf %203, %208 : vector<2x512xf32>
    %210 = vector.extract_strided_slice %168 {offsets = [0, 7], sizes = [2, 1], strides = [1, 1]} : vector<2x8xf32> to vector<2x1xf32>
    %211 = vector.extract_strided_slice %162 {offsets = [7, 0], sizes = [1, 512], strides = [1, 1]} : vector<8x512xf32> to vector<1x512xf32>
    %212 = vector.broadcast %210 : vector<2x1xf32> to vector<2x512xf32>
    %213 = vector.broadcast %211 : vector<1x512xf32> to vector<2x512xf32>
    %214 = arith.mulf %212, %213 : vector<2x512xf32>
    %215 = arith.addf %209, %214 : vector<2x512xf32>
    %c0_44 = arith.constant 0 : index
    %c0_45 = arith.constant 0 : index
    %216 = vector.load %arg9[%c0_44, %c0_45] : memref<2x2xf32, #tpu.memory_space<vmem>>, vector<2x2xf32>
    %217 = vector.extract_strided_slice %216 {offsets = [0, 0], sizes = [2, 1], strides = [1, 1]} : vector<2x2xf32> to vector<2x1xf32>
    %218 = vector.extract_strided_slice %167 {offsets = [0, 0], sizes = [1, 512], strides = [1, 1]} : vector<2x512xf32> to vector<1x512xf32>
    %219 = vector.broadcast %217 : vector<2x1xf32> to vector<2x512xf32>
    %220 = vector.broadcast %218 : vector<1x512xf32> to vector<2x512xf32>
    %221 = arith.mulf %219, %220 : vector<2x512xf32>
    %222 = vector.extract_strided_slice %216 {offsets = [0, 1], sizes = [2, 1], strides = [1, 1]} : vector<2x2xf32> to vector<2x1xf32>
    %223 = vector.extract_strided_slice %167 {offsets = [1, 0], sizes = [1, 512], strides = [1, 1]} : vector<2x512xf32> to vector<1x512xf32>
    %224 = vector.broadcast %222 : vector<2x1xf32> to vector<2x512xf32>
    %225 = vector.broadcast %223 : vector<1x512xf32> to vector<2x512xf32>
    %226 = arith.mulf %224, %225 : vector<2x512xf32>
    %227 = arith.addf %221, %226 : vector<2x512xf32>
    %228 = arith.addf %215, %227 : vector<2x512xf32>
    %c0_46 = arith.constant 0 : index
    %c0_47 = arith.constant 0 : index
    %229 = vector.load %arg10[%c0_46, %c0_47] : memref<2x1xf32, #tpu.memory_space<vmem>>, vector<2x1xf32>
    %230 = vector.broadcast %229 : vector<2x1xf32> to vector<2x512xf32>
    %231 = arith.addf %228, %230 : vector<2x512xf32>
    %232 = math.tanh %231 : vector<2x512xf32>
    %c0_48 = arith.constant 0 : index
    %c0_49 = arith.constant 0 : index
    %233 = vector.load %arg11[%c0_48, %c0_49] : memref<8x2xf32, #tpu.memory_space<vmem>>, vector<8x2xf32>
    %234 = vector.extract_strided_slice %233 {offsets = [0, 0], sizes = [8, 1], strides = [1, 1]} : vector<8x2xf32> to vector<8x1xf32>
    %235 = vector.extract_strided_slice %232 {offsets = [0, 0], sizes = [1, 512], strides = [1, 1]} : vector<2x512xf32> to vector<1x512xf32>
    %236 = vector.broadcast %234 : vector<8x1xf32> to vector<8x512xf32>
    %237 = vector.broadcast %235 : vector<1x512xf32> to vector<8x512xf32>
    %238 = arith.mulf %236, %237 : vector<8x512xf32>
    %239 = vector.extract_strided_slice %233 {offsets = [0, 1], sizes = [8, 1], strides = [1, 1]} : vector<8x2xf32> to vector<8x1xf32>
    %240 = vector.extract_strided_slice %232 {offsets = [1, 0], sizes = [1, 512], strides = [1, 1]} : vector<2x512xf32> to vector<1x512xf32>
    %241 = vector.broadcast %239 : vector<8x1xf32> to vector<8x512xf32>
    %242 = vector.broadcast %240 : vector<1x512xf32> to vector<8x512xf32>
    %243 = arith.mulf %241, %242 : vector<8x512xf32>
    %244 = arith.addf %238, %243 : vector<8x512xf32>
    %c0_50 = arith.constant 0 : index
    %c0_51 = arith.constant 0 : index
    %245 = vector.load %arg12[%c0_50, %c0_51] : memref<8x1xf32, #tpu.memory_space<vmem>>, vector<8x1xf32>
    %246 = vector.broadcast %245 : vector<8x1xf32> to vector<8x512xf32>
    %247 = arith.addf %244, %246 : vector<8x512xf32>
    %248 = vector.extract_strided_slice %232 {offsets = [0, 0], sizes = [2, 256], strides = [1, 1]} : vector<2x512xf32> to vector<2x256xf32>
    %c0_52 = arith.constant 0 : index
    %c0_53 = arith.constant 0 : index
    %c0_54 = arith.constant 0 : index
    %249 = vector.load %arg18[%c0_52, %c0_53, %c0_54] : memref<2x2x256xf32, #tpu.memory_space<vmem>>, vector<1x2x256xf32>
    %250 = vector.shape_cast %249 : vector<1x2x256xf32> to vector<2x256xf32>
    %251 = vector.shape_cast %248 : vector<2x256xf32> to vector<1x2x256xf32>
    tpu.vector_store %arg18[%c0_52, %c0_53, %c0_54], %251 {strides = array<i32>} : memref<2x2x256xf32, #tpu.memory_space<vmem>>, vector<1x2x256xf32>,
    %252 = vector.extract_strided_slice %247 {offsets = [0, 0], sizes = [8, 256], strides = [1, 1]} : vector<8x512xf32> to vector<8x256xf32>
    %c0_55 = arith.constant 0 : index
    %c0_56 = arith.constant 0 : index
    %c0_57 = arith.constant 0 : index
    %253 = vector.load %arg17[%c0_55, %c0_56, %c0_57] : memref<2x8x256xf32, #tpu.memory_space<vmem>>, vector<1x8x256xf32>
    %254 = vector.shape_cast %253 : vector<1x8x256xf32> to vector<8x256xf32>
    %255 = vector.shape_cast %252 : vector<8x256xf32> to vector<1x8x256xf32>
    tpu.vector_store %arg17[%c0_55, %c0_56, %c0_57], %255 {strides = array<i32>} : memref<2x8x256xf32, #tpu.memory_space<vmem>>, vector<1x8x256xf32>,
    %256 = vector.extract_strided_slice %232 {offsets = [0, 256], sizes = [2, 256], strides = [1, 1]} : vector<2x512xf32> to vector<2x256xf32>
    %c1_58 = arith.constant 1 : index
    %c0_59 = arith.constant 0 : index
    %c0_60 = arith.constant 0 : index
    %257 = vector.load %arg18[%c1_58, %c0_59, %c0_60] : memref<2x2x256xf32, #tpu.memory_space<vmem>>, vector<1x2x256xf32>
    %258 = vector.shape_cast %257 : vector<1x2x256xf32> to vector<2x256xf32>
    %259 = vector.shape_cast %256 : vector<2x256xf32> to vector<1x2x256xf32>
    tpu.vector_store %arg18[%c1_58, %c0_59, %c0_60], %259 {strides = array<i32>} : memref<2x2x256xf32, #tpu.memory_space<vmem>>, vector<1x2x256xf32>,
    %260 = vector.extract_strided_slice %247 {offsets = [0, 256], sizes = [8, 256], strides = [1, 1]} : vector<8x512xf32> to vector<8x256xf32>
    %c1_61 = arith.constant 1 : index
    %c0_62 = arith.constant 0 : index
    %c0_63 = arith.constant 0 : index
    %261 = vector.load %arg17[%c1_61, %c0_62, %c0_63] : memref<2x8x256xf32, #tpu.memory_space<vmem>>, vector<1x8x256xf32>
    %262 = vector.shape_cast %261 : vector<1x8x256xf32> to vector<8x256xf32>
    %263 = vector.shape_cast %260 : vector<8x256xf32> to vector<1x8x256xf32>
    tpu.vector_store %arg17[%c1_61, %c0_62, %c0_63], %263 {strides = array<i32>} : memref<2x8x256xf32, #tpu.memory_space<vmem>>, vector<1x8x256xf32>,
    %264 = vector.extract_strided_slice %162 {offsets = [0, 0], sizes = [8, 256], strides = [1, 1]} : vector<8x512xf32> to vector<8x256xf32>
    %265 = vector.extract_strided_slice %162 {offsets = [0, 256], sizes = [8, 256], strides = [1, 1]} : vector<8x512xf32> to vector<8x256xf32>
    %cst_64 = arith.constant 0.000000e+00 : f32
    %266 = vector.broadcast %cst_64 : f32 to vector<8x256xf32>
    %267 = vector.extract_strided_slice %264 {offsets = [0, 0], sizes = [8, 128], strides = [1, 1]} : vector<8x256xf32> to vector<8x128xf32>
    %268 = vector.extract_strided_slice %264 {offsets = [0, 1], sizes = [8, 128], strides = [1, 1]} : vector<8x256xf32> to vector<8x128xf32>
    %269 = vector.extract_strided_slice %264 {offsets = [0, 2], sizes = [8, 128], strides = [1, 1]} : vector<8x256xf32> to vector<8x128xf32>
    %270 = vector.extract_strided_slice %264 {offsets = [0, 3], sizes = [8, 128], strides = [1, 1]} : vector<8x256xf32> to vector<8x128xf32>
    %271 = vector.extract_strided_slice %264 {offsets = [0, 4], sizes = [8, 128], strides = [1, 1]} : vector<8x256xf32> to vector<8x128xf32>
    %272 = tpu.concatenate %267, %268, %269, %270, %271 in 0 : vector<8x128xf32>, vector<8x128xf32>, vector<8x128xf32>, vector<8x128xf32>, vector<8x128xf32> -> vector<40x128xf32>
    %273 = vector.extract_strided_slice %265 {offsets = [0, 0], sizes = [8, 128], strides = [1, 1]} : vector<8x256xf32> to vector<8x128xf32>
    %274 = vector.extract_strided_slice %265 {offsets = [0, 1], sizes = [8, 128], strides = [1, 1]} : vector<8x256xf32> to vector<8x128xf32>
    %275 = vector.extract_strided_slice %265 {offsets = [0, 2], sizes = [8, 128], strides = [1, 1]} : vector<8x256xf32> to vector<8x128xf32>
    %276 = vector.extract_strided_slice %265 {offsets = [0, 3], sizes = [8, 128], strides = [1, 1]} : vector<8x256xf32> to vector<8x128xf32>
    %277 = vector.extract_strided_slice %265 {offsets = [0, 4], sizes = [8, 128], strides = [1, 1]} : vector<8x256xf32> to vector<8x128xf32>
    %278 = tpu.concatenate %273, %274, %275, %276, %277 in 0 : vector<8x128xf32>, vector<8x128xf32>, vector<8x128xf32>, vector<8x128xf32>, vector<8x128xf32> -> vector<40x128xf32>
    %279 = tpu.concatenate %272, %278 in 1 : vector<40x128xf32>, vector<40x128xf32> -> vector<40x256xf32>
    %c0_65 = arith.constant 0 : index
    %c0_66 = arith.constant 0 : index
    %c0_67 = arith.constant 0 : index
    %280 = vector.load %arg6[%c0_65, %c0_66, %c0_67] : memref<5x8x40xf32, #tpu.memory_space<vmem>>, vector<1x8x40xf32>
    %281 = vector.shape_cast %280 : vector<1x8x40xf32> to vector<8x40xf32>
    %cst_68 = arith.constant dense<0.000000e+00> : vector<8x256xf32>
    %282 = tpu.matmul %281, %279, %cst_68 {dimension_numbers = #tpu.dot_dimension_numbers<[1], [0], [0], [1], [0, 0, 1, 1], [], []>} : vector<8x40xf32>, vector<40x256xf32>, vector<8x256xf32> -> vector<8x256xf32>
    %283 = arith.addf %266, %282 : vector<8x256xf32>
    %284 = vector.extract_strided_slice %264 {offsets = [0, 16], sizes = [8, 128], strides = [1, 1]} : vector<8x256xf32> to vector<8x128xf32>
    %285 = vector.extract_strided_slice %264 {offsets = [0, 17], sizes = [8, 128], strides = [1, 1]} : vector<8x256xf32> to vector<8x128xf32>
    %286 = vector.extract_strided_slice %264 {offsets = [0, 18], sizes = [8, 128], strides = [1, 1]} : vector<8x256xf32> to vector<8x128xf32>
    %287 = vector.extract_strided_slice %264 {offsets = [0, 19], sizes = [8, 128], strides = [1, 1]} : vector<8x256xf32> to vector<8x128xf32>
    %288 = vector.extract_strided_slice %264 {offsets = [0, 20], sizes = [8, 128], strides = [1, 1]} : vector<8x256xf32> to vector<8x128xf32>
    %289 = tpu.concatenate %284, %285, %286, %287, %288 in 0 : vector<8x128xf32>, vector<8x128xf32>, vector<8x128xf32>, vector<8x128xf32>, vector<8x128xf32> -> vector<40x128xf32>
    %290 = vector.extract_strided_slice %265 {offsets = [0, 16], sizes = [8, 128], strides = [1, 1]} : vector<8x256xf32> to vector<8x128xf32>
    %291 = vector.extract_strided_slice %265 {offsets = [0, 17], sizes = [8, 128], strides = [1, 1]} : vector<8x256xf32> to vector<8x128xf32>
    %292 = vector.extract_strided_slice %265 {offsets = [0, 18], sizes = [8, 128], strides = [1, 1]} : vector<8x256xf32> to vector<8x128xf32>
    %293 = vector.extract_strided_slice %265 {offsets = [0, 19], sizes = [8, 128], strides = [1, 1]} : vector<8x256xf32> to vector<8x128xf32>
    %294 = vector.extract_strided_slice %265 {offsets = [0, 20], sizes = [8, 128], strides = [1, 1]} : vector<8x256xf32> to vector<8x128xf32>
    %295 = tpu.concatenate %290, %291, %292, %293, %294 in 0 : vector<8x128xf32>, vector<8x128xf32>, vector<8x128xf32>, vector<8x128xf32>, vector<8x128xf32> -> vector<40x128xf32>
    %296 = tpu.concatenate %289, %295 in 1 : vector<40x128xf32>, vector<40x128xf32> -> vector<40x256xf32>
    %c1_69 = arith.constant 1 : index
    %c0_70 = arith.constant 0 : index
    %c0_71 = arith.constant 0 : index
    %297 = vector.load %arg6[%c1_69, %c0_70, %c0_71] : memref<5x8x40xf32, #tpu.memory_space<vmem>>, vector<1x8x40xf32>
    %298 = vector.shape_cast %297 : vector<1x8x40xf32> to vector<8x40xf32>
    %cst_72 = arith.constant dense<0.000000e+00> : vector<8x256xf32>
    %299 = tpu.matmul %298, %296, %cst_72 {dimension_numbers = #tpu.dot_dimension_numbers<[1], [0], [0], [1], [0, 0, 1, 1], [], []>} : vector<8x40xf32>, vector<40x256xf32>, vector<8x256xf32> -> vector<8x256xf32>
    %300 = arith.addf %283, %299 : vector<8x256xf32>
    %301 = vector.extract_strided_slice %264 {offsets = [0, 32], sizes = [8, 128], strides = [1, 1]} : vector<8x256xf32> to vector<8x128xf32>
    %302 = vector.extract_strided_slice %264 {offsets = [0, 33], sizes = [8, 128], strides = [1, 1]} : vector<8x256xf32> to vector<8x128xf32>
    %303 = vector.extract_strided_slice %264 {offsets = [0, 34], sizes = [8, 128], strides = [1, 1]} : vector<8x256xf32> to vector<8x128xf32>
    %304 = vector.extract_strided_slice %264 {offsets = [0, 35], sizes = [8, 128], strides = [1, 1]} : vector<8x256xf32> to vector<8x128xf32>
    %305 = vector.extract_strided_slice %264 {offsets = [0, 36], sizes = [8, 128], strides = [1, 1]} : vector<8x256xf32> to vector<8x128xf32>
    %306 = tpu.concatenate %301, %302, %303, %304, %305 in 0 : vector<8x128xf32>, vector<8x128xf32>, vector<8x128xf32>, vector<8x128xf32>, vector<8x128xf32> -> vector<40x128xf32>
    %307 = vector.extract_strided_slice %265 {offsets = [0, 32], sizes = [8, 128], strides = [1, 1]} : vector<8x256xf32> to vector<8x128xf32>
    %308 = vector.extract_strided_slice %265 {offsets = [0, 33], sizes = [8, 128], strides = [1, 1]} : vector<8x256xf32> to vector<8x128xf32>
    %309 = vector.extract_strided_slice %265 {offsets = [0, 34], sizes = [8, 128], strides = [1, 1]} : vector<8x256xf32> to vector<8x128xf32>
    %310 = vector.extract_strided_slice %265 {offsets = [0, 35], sizes = [8, 128], strides = [1, 1]} : vector<8x256xf32> to vector<8x128xf32>
    %311 = vector.extract_strided_slice %265 {offsets = [0, 36], sizes = [8, 128], strides = [1, 1]} : vector<8x256xf32> to vector<8x128xf32>
    %312 = tpu.concatenate %307, %308, %309, %310, %311 in 0 : vector<8x128xf32>, vector<8x128xf32>, vector<8x128xf32>, vector<8x128xf32>, vector<8x128xf32> -> vector<40x128xf32>
    %313 = tpu.concatenate %306, %312 in 1 : vector<40x128xf32>, vector<40x128xf32> -> vector<40x256xf32>
    %c2_73 = arith.constant 2 : index
    %c0_74 = arith.constant 0 : index
    %c0_75 = arith.constant 0 : index
    %314 = vector.load %arg6[%c2_73, %c0_74, %c0_75] : memref<5x8x40xf32, #tpu.memory_space<vmem>>, vector<1x8x40xf32>
    %315 = vector.shape_cast %314 : vector<1x8x40xf32> to vector<8x40xf32>
    %cst_76 = arith.constant dense<0.000000e+00> : vector<8x256xf32>
    %316 = tpu.matmul %315, %313, %cst_76 {dimension_numbers = #tpu.dot_dimension_numbers<[1], [0], [0], [1], [0, 0, 1, 1], [], []>} : vector<8x40xf32>, vector<40x256xf32>, vector<8x256xf32> -> vector<8x256xf32>
    %317 = arith.addf %300, %316 : vector<8x256xf32>
    %318 = vector.extract_strided_slice %264 {offsets = [0, 48], sizes = [8, 128], strides = [1, 1]} : vector<8x256xf32> to vector<8x128xf32>
    %319 = vector.extract_strided_slice %264 {offsets = [0, 49], sizes = [8, 128], strides = [1, 1]} : vector<8x256xf32> to vector<8x128xf32>
    %320 = vector.extract_strided_slice %264 {offsets = [0, 50], sizes = [8, 128], strides = [1, 1]} : vector<8x256xf32> to vector<8x128xf32>
    %321 = vector.extract_strided_slice %264 {offsets = [0, 51], sizes = [8, 128], strides = [1, 1]} : vector<8x256xf32> to vector<8x128xf32>
    %322 = vector.extract_strided_slice %264 {offsets = [0, 52], sizes = [8, 128], strides = [1, 1]} : vector<8x256xf32> to vector<8x128xf32>
    %323 = tpu.concatenate %318, %319, %320, %321, %322 in 0 : vector<8x128xf32>, vector<8x128xf32>, vector<8x128xf32>, vector<8x128xf32>, vector<8x128xf32> -> vector<40x128xf32>
    %324 = vector.extract_strided_slice %265 {offsets = [0, 48], sizes = [8, 128], strides = [1, 1]} : vector<8x256xf32> to vector<8x128xf32>
    %325 = vector.extract_strided_slice %265 {offsets = [0, 49], sizes = [8, 128], strides = [1, 1]} : vector<8x256xf32> to vector<8x128xf32>
    %326 = vector.extract_strided_slice %265 {offsets = [0, 50], sizes = [8, 128], strides = [1, 1]} : vector<8x256xf32> to vector<8x128xf32>
    %327 = vector.extract_strided_slice %265 {offsets = [0, 51], sizes = [8, 128], strides = [1, 1]} : vector<8x256xf32> to vector<8x128xf32>
    %328 = vector.extract_strided_slice %265 {offsets = [0, 52], sizes = [8, 128], strides = [1, 1]} : vector<8x256xf32> to vector<8x128xf32>
    %329 = tpu.concatenate %324, %325, %326, %327, %328 in 0 : vector<8x128xf32>, vector<8x128xf32>, vector<8x128xf32>, vector<8x128xf32>, vector<8x128xf32> -> vector<40x128xf32>
    %330 = tpu.concatenate %323, %329 in 1 : vector<40x128xf32>, vector<40x128xf32> -> vector<40x256xf32>
    %c3_77 = arith.constant 3 : index
    %c0_78 = arith.constant 0 : index
    %c0_79 = arith.constant 0 : index
    %331 = vector.load %arg6[%c3_77, %c0_78, %c0_79] : memref<5x8x40xf32, #tpu.memory_space<vmem>>, vector<1x8x40xf32>
    %332 = vector.shape_cast %331 : vector<1x8x40xf32> to vector<8x40xf32>
    %cst_80 = arith.constant dense<0.000000e+00> : vector<8x256xf32>
    %333 = tpu.matmul %332, %330, %cst_80 {dimension_numbers = #tpu.dot_dimension_numbers<[1], [0], [0], [1], [0, 0, 1, 1], [], []>} : vector<8x40xf32>, vector<40x256xf32>, vector<8x256xf32> -> vector<8x256xf32>
    %334 = arith.addf %317, %333 : vector<8x256xf32>
    %335 = vector.extract_strided_slice %264 {offsets = [0, 64], sizes = [8, 128], strides = [1, 1]} : vector<8x256xf32> to vector<8x128xf32>
    %336 = vector.extract_strided_slice %264 {offsets = [0, 65], sizes = [8, 128], strides = [1, 1]} : vector<8x256xf32> to vector<8x128xf32>
    %337 = vector.extract_strided_slice %264 {offsets = [0, 66], sizes = [8, 128], strides = [1, 1]} : vector<8x256xf32> to vector<8x128xf32>
    %338 = vector.extract_strided_slice %264 {offsets = [0, 67], sizes = [8, 128], strides = [1, 1]} : vector<8x256xf32> to vector<8x128xf32>
    %339 = vector.extract_strided_slice %264 {offsets = [0, 68], sizes = [8, 128], strides = [1, 1]} : vector<8x256xf32> to vector<8x128xf32>
    %340 = tpu.concatenate %335, %336, %337, %338, %339 in 0 : vector<8x128xf32>, vector<8x128xf32>, vector<8x128xf32>, vector<8x128xf32>, vector<8x128xf32> -> vector<40x128xf32>
    %341 = vector.extract_strided_slice %265 {offsets = [0, 64], sizes = [8, 128], strides = [1, 1]} : vector<8x256xf32> to vector<8x128xf32>
    %342 = vector.extract_strided_slice %265 {offsets = [0, 65], sizes = [8, 128], strides = [1, 1]} : vector<8x256xf32> to vector<8x128xf32>
    %343 = vector.extract_strided_slice %265 {offsets = [0, 66], sizes = [8, 128], strides = [1, 1]} : vector<8x256xf32> to vector<8x128xf32>
    %344 = vector.extract_strided_slice %265 {offsets = [0, 67], sizes = [8, 128], strides = [1, 1]} : vector<8x256xf32> to vector<8x128xf32>
    %345 = vector.extract_strided_slice %265 {offsets = [0, 68], sizes = [8, 128], strides = [1, 1]} : vector<8x256xf32> to vector<8x128xf32>
    %346 = tpu.concatenate %341, %342, %343, %344, %345 in 0 : vector<8x128xf32>, vector<8x128xf32>, vector<8x128xf32>, vector<8x128xf32>, vector<8x128xf32> -> vector<40x128xf32>
    %347 = tpu.concatenate %340, %346 in 1 : vector<40x128xf32>, vector<40x128xf32> -> vector<40x256xf32>
    %c4_81 = arith.constant 4 : index
    %c0_82 = arith.constant 0 : index
    %c0_83 = arith.constant 0 : index
    %348 = vector.load %arg6[%c4_81, %c0_82, %c0_83] : memref<5x8x40xf32, #tpu.memory_space<vmem>>, vector<1x8x40xf32>
    %349 = vector.shape_cast %348 : vector<1x8x40xf32> to vector<8x40xf32>
    %cst_84 = arith.constant dense<0.000000e+00> : vector<8x256xf32>
    %350 = tpu.matmul %349, %347, %cst_84 {dimension_numbers = #tpu.dot_dimension_numbers<[1], [0], [0], [1], [0, 0, 1, 1], [], []>} : vector<8x40xf32>, vector<40x256xf32>, vector<8x256xf32> -> vector<8x256xf32>
    %351 = arith.addf %334, %350 : vector<8x256xf32>
    %c0_85 = arith.constant 0 : index
    %c0_86 = arith.constant 0 : index
    %352 = vector.load %arg7[%c0_85, %c0_86] : memref<8x1xf32, #tpu.memory_space<vmem>>, vector<8x1xf32>
    %353 = vector.broadcast %352 : vector<8x1xf32> to vector<8x256xf32>
    %354 = arith.addf %351, %353 : vector<8x256xf32>
    %cst_87 = arith.constant 0.000000e+00 : f32
    %355 = vector.broadcast %cst_87 : f32 to vector<8x256xf32>
    %356 = arith.maximumf %354, %355 : vector<8x256xf32>
    %cst_88 = arith.constant 0.000000e+00 : f32
    %357 = vector.broadcast %cst_88 : f32 to vector<8x256xf32>
    %358 = arith.subf %357, %356 : vector<8x256xf32>
    %359 = vector.extract_strided_slice %358 {offsets = [0, 0], sizes = [8, 128], strides = [1, 1]} : vector<8x256xf32> to vector<8x128xf32>
    %c0_89 = arith.constant 0 : index
    %c0_90 = arith.constant 0 : index
    %c0_91 = arith.constant 0 : index
    %360 = vector.load %arg13[%c0_89, %c0_90, %c0_91] : memref<8x5x256xf32, #tpu.memory_space<vmem>>, vector<1x5x256xf32>
    %361 = vector.shape_cast %360 : vector<1x5x256xf32> to vector<5x256xf32>
    %362 = vector.extract_strided_slice %264 {offsets = [0, 0], sizes = [1, 256], strides = [1, 1]} : vector<8x256xf32> to vector<1x256xf32>
    %363 = vector.broadcast %362 : vector<1x256xf32> to vector<5x256xf32>
    %364 = arith.mulf %361, %363 : vector<5x256xf32>
    %c1_92 = arith.constant 1 : index
    %c0_93 = arith.constant 0 : index
    %c0_94 = arith.constant 0 : index
    %365 = vector.load %arg13[%c1_92, %c0_93, %c0_94] : memref<8x5x256xf32, #tpu.memory_space<vmem>>, vector<1x5x256xf32>
    %366 = vector.shape_cast %365 : vector<1x5x256xf32> to vector<5x256xf32>
    %367 = vector.extract_strided_slice %264 {offsets = [1, 0], sizes = [1, 256], strides = [1, 1]} : vector<8x256xf32> to vector<1x256xf32>
    %368 = vector.broadcast %367 : vector<1x256xf32> to vector<5x256xf32>
    %369 = arith.mulf %366, %368 : vector<5x256xf32>
    %370 = arith.addf %364, %369 : vector<5x256xf32>
    %c2_95 = arith.constant 2 : index
    %c0_96 = arith.constant 0 : index
    %c0_97 = arith.constant 0 : index
    %371 = vector.load %arg13[%c2_95, %c0_96, %c0_97] : memref<8x5x256xf32, #tpu.memory_space<vmem>>, vector<1x5x256xf32>
    %372 = vector.shape_cast %371 : vector<1x5x256xf32> to vector<5x256xf32>
    %373 = vector.extract_strided_slice %264 {offsets = [2, 0], sizes = [1, 256], strides = [1, 1]} : vector<8x256xf32> to vector<1x256xf32>
    %374 = vector.broadcast %373 : vector<1x256xf32> to vector<5x256xf32>
    %375 = arith.mulf %372, %374 : vector<5x256xf32>
    %376 = arith.addf %370, %375 : vector<5x256xf32>
    %c3_98 = arith.constant 3 : index
    %c0_99 = arith.constant 0 : index
    %c0_100 = arith.constant 0 : index
    %377 = vector.load %arg13[%c3_98, %c0_99, %c0_100] : memref<8x5x256xf32, #tpu.memory_space<vmem>>, vector<1x5x256xf32>
    %378 = vector.shape_cast %377 : vector<1x5x256xf32> to vector<5x256xf32>
    %379 = vector.extract_strided_slice %264 {offsets = [3, 0], sizes = [1, 256], strides = [1, 1]} : vector<8x256xf32> to vector<1x256xf32>
    %380 = vector.broadcast %379 : vector<1x256xf32> to vector<5x256xf32>
    %381 = arith.mulf %378, %380 : vector<5x256xf32>
    %382 = arith.addf %376, %381 : vector<5x256xf32>
    %c4_101 = arith.constant 4 : index
    %c0_102 = arith.constant 0 : index
    %c0_103 = arith.constant 0 : index
    %383 = vector.load %arg13[%c4_101, %c0_102, %c0_103] : memref<8x5x256xf32, #tpu.memory_space<vmem>>, vector<1x5x256xf32>
    %384 = vector.shape_cast %383 : vector<1x5x256xf32> to vector<5x256xf32>
    %385 = vector.extract_strided_slice %264 {offsets = [4, 0], sizes = [1, 256], strides = [1, 1]} : vector<8x256xf32> to vector<1x256xf32>
    %386 = vector.broadcast %385 : vector<1x256xf32> to vector<5x256xf32>
    %387 = arith.mulf %384, %386 : vector<5x256xf32>
    %388 = arith.addf %382, %387 : vector<5x256xf32>
    %c5_104 = arith.constant 5 : index
    %c0_105 = arith.constant 0 : index
    %c0_106 = arith.constant 0 : index
    %389 = vector.load %arg13[%c5_104, %c0_105, %c0_106] : memref<8x5x256xf32, #tpu.memory_space<vmem>>, vector<1x5x256xf32>
    %390 = vector.shape_cast %389 : vector<1x5x256xf32> to vector<5x256xf32>
    %391 = vector.extract_strided_slice %264 {offsets = [5, 0], sizes = [1, 256], strides = [1, 1]} : vector<8x256xf32> to vector<1x256xf32>
    %392 = vector.broadcast %391 : vector<1x256xf32> to vector<5x256xf32>
    %393 = arith.mulf %390, %392 : vector<5x256xf32>
    %394 = arith.addf %388, %393 : vector<5x256xf32>
    %c6_107 = arith.constant 6 : index
    %c0_108 = arith.constant 0 : index
    %c0_109 = arith.constant 0 : index
    %395 = vector.load %arg13[%c6_107, %c0_108, %c0_109] : memref<8x5x256xf32, #tpu.memory_space<vmem>>, vector<1x5x256xf32>
    %396 = vector.shape_cast %395 : vector<1x5x256xf32> to vector<5x256xf32>
    %397 = vector.extract_strided_slice %264 {offsets = [6, 0], sizes = [1, 256], strides = [1, 1]} : vector<8x256xf32> to vector<1x256xf32>
    %398 = vector.broadcast %397 : vector<1x256xf32> to vector<5x256xf32>
    %399 = arith.mulf %396, %398 : vector<5x256xf32>
    %400 = arith.addf %394, %399 : vector<5x256xf32>
    %c7 = arith.constant 7 : index
    %c0_110 = arith.constant 0 : index
    %c0_111 = arith.constant 0 : index
    %401 = vector.load %arg13[%c7, %c0_110, %c0_111] : memref<8x5x256xf32, #tpu.memory_space<vmem>>, vector<1x5x256xf32>
    %402 = vector.shape_cast %401 : vector<1x5x256xf32> to vector<5x256xf32>
    %403 = vector.extract_strided_slice %264 {offsets = [7, 0], sizes = [1, 256], strides = [1, 1]} : vector<8x256xf32> to vector<1x256xf32>
    %404 = vector.broadcast %403 : vector<1x256xf32> to vector<5x256xf32>
    %405 = arith.mulf %402, %404 : vector<5x256xf32>
    %406 = arith.addf %400, %405 : vector<5x256xf32>
    %c0_112 = arith.constant 0 : index
    %c0_113 = arith.constant 0 : index
    %c0_114 = arith.constant 0 : index
    %407 = vector.load %arg14[%c0_112, %c0_113, %c0_114] : memref<8x5x128xf32, #tpu.memory_space<vmem>>, vector<1x5x128xf32>
    %408 = vector.shape_cast %407 : vector<1x5x128xf32> to vector<5x128xf32>
    %409 = vector.extract_strided_slice %359 {offsets = [0, 0], sizes = [1, 128], strides = [1, 1]} : vector<8x128xf32> to vector<1x128xf32>
    %410 = vector.broadcast %409 : vector<1x128xf32> to vector<5x128xf32>
    %411 = arith.mulf %408, %410 : vector<5x128xf32>
    %c1_115 = arith.constant 1 : index
    %c0_116 = arith.constant 0 : index
    %c0_117 = arith.constant 0 : index
    %412 = vector.load %arg14[%c1_115, %c0_116, %c0_117] : memref<8x5x128xf32, #tpu.memory_space<vmem>>, vector<1x5x128xf32>
    %413 = vector.shape_cast %412 : vector<1x5x128xf32> to vector<5x128xf32>
    %414 = vector.extract_strided_slice %359 {offsets = [1, 0], sizes = [1, 128], strides = [1, 1]} : vector<8x128xf32> to vector<1x128xf32>
    %415 = vector.broadcast %414 : vector<1x128xf32> to vector<5x128xf32>
    %416 = arith.mulf %413, %415 : vector<5x128xf32>
    %417 = arith.addf %411, %416 : vector<5x128xf32>
    %c2_118 = arith.constant 2 : index
    %c0_119 = arith.constant 0 : index
    %c0_120 = arith.constant 0 : index
    %418 = vector.load %arg14[%c2_118, %c0_119, %c0_120] : memref<8x5x128xf32, #tpu.memory_space<vmem>>, vector<1x5x128xf32>
    %419 = vector.shape_cast %418 : vector<1x5x128xf32> to vector<5x128xf32>
    %420 = vector.extract_strided_slice %359 {offsets = [2, 0], sizes = [1, 128], strides = [1, 1]} : vector<8x128xf32> to vector<1x128xf32>
    %421 = vector.broadcast %420 : vector<1x128xf32> to vector<5x128xf32>
    %422 = arith.mulf %419, %421 : vector<5x128xf32>
    %423 = arith.addf %417, %422 : vector<5x128xf32>
    %c3_121 = arith.constant 3 : index
    %c0_122 = arith.constant 0 : index
    %c0_123 = arith.constant 0 : index
    %424 = vector.load %arg14[%c3_121, %c0_122, %c0_123] : memref<8x5x128xf32, #tpu.memory_space<vmem>>, vector<1x5x128xf32>
    %425 = vector.shape_cast %424 : vector<1x5x128xf32> to vector<5x128xf32>
    %426 = vector.extract_strided_slice %359 {offsets = [3, 0], sizes = [1, 128], strides = [1, 1]} : vector<8x128xf32> to vector<1x128xf32>
    %427 = vector.broadcast %426 : vector<1x128xf32> to vector<5x128xf32>
    %428 = arith.mulf %425, %427 : vector<5x128xf32>
    %429 = arith.addf %423, %428 : vector<5x128xf32>
    %c4_124 = arith.constant 4 : index
    %c0_125 = arith.constant 0 : index
    %c0_126 = arith.constant 0 : index
    %430 = vector.load %arg14[%c4_124, %c0_125, %c0_126] : memref<8x5x128xf32, #tpu.memory_space<vmem>>, vector<1x5x128xf32>
    %431 = vector.shape_cast %430 : vector<1x5x128xf32> to vector<5x128xf32>
    %432 = vector.extract_strided_slice %359 {offsets = [4, 0], sizes = [1, 128], strides = [1, 1]} : vector<8x128xf32> to vector<1x128xf32>
    %433 = vector.broadcast %432 : vector<1x128xf32> to vector<5x128xf32>
    %434 = arith.mulf %431, %433 : vector<5x128xf32>
    %435 = arith.addf %429, %434 : vector<5x128xf32>
    %c5_127 = arith.constant 5 : index
    %c0_128 = arith.constant 0 : index
    %c0_129 = arith.constant 0 : index
    %436 = vector.load %arg14[%c5_127, %c0_128, %c0_129] : memref<8x5x128xf32, #tpu.memory_space<vmem>>, vector<1x5x128xf32>
    %437 = vector.shape_cast %436 : vector<1x5x128xf32> to vector<5x128xf32>
    %438 = vector.extract_strided_slice %359 {offsets = [5, 0], sizes = [1, 128], strides = [1, 1]} : vector<8x128xf32> to vector<1x128xf32>
    %439 = vector.broadcast %438 : vector<1x128xf32> to vector<5x128xf32>
    %440 = arith.mulf %437, %439 : vector<5x128xf32>
    %441 = arith.addf %435, %440 : vector<5x128xf32>
    %c6_130 = arith.constant 6 : index
    %c0_131 = arith.constant 0 : index
    %c0_132 = arith.constant 0 : index
    %442 = vector.load %arg14[%c6_130, %c0_131, %c0_132] : memref<8x5x128xf32, #tpu.memory_space<vmem>>, vector<1x5x128xf32>
    %443 = vector.shape_cast %442 : vector<1x5x128xf32> to vector<5x128xf32>
    %444 = vector.extract_strided_slice %359 {offsets = [6, 0], sizes = [1, 128], strides = [1, 1]} : vector<8x128xf32> to vector<1x128xf32>
    %445 = vector.broadcast %444 : vector<1x128xf32> to vector<5x128xf32>
    %446 = arith.mulf %443, %445 : vector<5x128xf32>
    %447 = arith.addf %441, %446 : vector<5x128xf32>
    %c7_133 = arith.constant 7 : index
    %c0_134 = arith.constant 0 : index
    %c0_135 = arith.constant 0 : index
    %448 = vector.load %arg14[%c7_133, %c0_134, %c0_135] : memref<8x5x128xf32, #tpu.memory_space<vmem>>, vector<1x5x128xf32>
    %449 = vector.shape_cast %448 : vector<1x5x128xf32> to vector<5x128xf32>
    %450 = vector.extract_strided_slice %359 {offsets = [7, 0], sizes = [1, 128], strides = [1, 1]} : vector<8x128xf32> to vector<1x128xf32>
    %451 = vector.broadcast %450 : vector<1x128xf32> to vector<5x128xf32>
    %452 = arith.mulf %449, %451 : vector<5x128xf32>
    %453 = arith.addf %447, %452 : vector<5x128xf32>
    %cst_136 = arith.constant dense<0.000000e+00> : vector<5xf32>
    %454 = vector.multi_reduction <add>, %406, %cst_136 [1] : vector<5x256xf32> to vector<5xf32>
    %455 = vector.shape_cast %454 : vector<5xf32> to vector<5x1xf32>
    %cst_137 = arith.constant dense<0.000000e+00> : vector<5xf32>
    %456 = vector.multi_reduction <add>, %453, %cst_137 [1] : vector<5x128xf32> to vector<5xf32>
    %457 = vector.shape_cast %456 : vector<5xf32> to vector<5x1xf32>
    %458 = arith.addf %455, %457 : vector<5x1xf32>
    %c0_138 = arith.constant 0 : index
    %c0_139 = arith.constant 0 : index
    %459 = vector.load %arg15[%c0_138, %c0_139] : memref<5x1xf32, #tpu.memory_space<vmem>>, vector<5x1xf32>
    %460 = arith.addf %458, %459 : vector<5x1xf32>
    %cst_140 = arith.constant 2.000000e+01 : f32
    %461 = vector.broadcast %cst_140 : f32 to vector<5x1xf32>
    %462 = arith.cmpf ogt, %460, %461 : vector<5x1xf32>
    %cst_141 = arith.constant 2.000000e+01 : f32
    %463 = vector.broadcast %cst_141 : f32 to vector<5x1xf32>
    %464 = arith.minimumf %460, %463 : vector<5x1xf32>
    %465 = math.exp %464 : vector<5x1xf32>
    %466 = math.log1p %465 : vector<5x1xf32>
    %467 = arith.select %462, %460, %466 : vector<5x1xi1>, vector<5x1xf32>
    %c0_142 = arith.constant 0 : index
    %c0_143 = arith.constant 0 : index
    %c0_144 = arith.constant 0 : index
    %468 = vector.load %arg16[%c0_142, %c0_143, %c0_144] : memref<2x5x1xf32, #tpu.memory_space<vmem>>, vector<1x5x1xf32>
    %469 = vector.shape_cast %468 : vector<1x5x1xf32> to vector<5x1xf32>
    %470 = vector.shape_cast %467 : vector<5x1xf32> to vector<1x5x1xf32>
    tpu.vector_store %arg16[%c0_142, %c0_143, %c0_144], %470 {strides = array<i32>} : memref<2x5x1xf32, #tpu.memory_space<vmem>>, vector<1x5x1xf32>,
    %471 = vector.extract_strided_slice %358 {offsets = [0, 128], sizes = [8, 128], strides = [1, 1]} : vector<8x256xf32> to vector<8x128xf32>
    %c0_145 = arith.constant 0 : index
    %c0_146 = arith.constant 0 : index
    %c0_147 = arith.constant 0 : index
    %472 = vector.load %arg13[%c0_145, %c0_146, %c0_147] : memref<8x5x256xf32, #tpu.memory_space<vmem>>, vector<1x5x256xf32>
    %473 = vector.shape_cast %472 : vector<1x5x256xf32> to vector<5x256xf32>
    %474 = vector.extract_strided_slice %265 {offsets = [0, 0], sizes = [1, 256], strides = [1, 1]} : vector<8x256xf32> to vector<1x256xf32>
    %475 = vector.broadcast %474 : vector<1x256xf32> to vector<5x256xf32>
    %476 = arith.mulf %473, %475 : vector<5x256xf32>
    %c1_148 = arith.constant 1 : index
    %c0_149 = arith.constant 0 : index
    %c0_150 = arith.constant 0 : index
    %477 = vector.load %arg13[%c1_148, %c0_149, %c0_150] : memref<8x5x256xf32, #tpu.memory_space<vmem>>, vector<1x5x256xf32>
    %478 = vector.shape_cast %477 : vector<1x5x256xf32> to vector<5x256xf32>
    %479 = vector.extract_strided_slice %265 {offsets = [1, 0], sizes = [1, 256], strides = [1, 1]} : vector<8x256xf32> to vector<1x256xf32>
    %480 = vector.broadcast %479 : vector<1x256xf32> to vector<5x256xf32>
    %481 = arith.mulf %478, %480 : vector<5x256xf32>
    %482 = arith.addf %476, %481 : vector<5x256xf32>
    %c2_151 = arith.constant 2 : index
    %c0_152 = arith.constant 0 : index
    %c0_153 = arith.constant 0 : index
    %483 = vector.load %arg13[%c2_151, %c0_152, %c0_153] : memref<8x5x256xf32, #tpu.memory_space<vmem>>, vector<1x5x256xf32>
    %484 = vector.shape_cast %483 : vector<1x5x256xf32> to vector<5x256xf32>
    %485 = vector.extract_strided_slice %265 {offsets = [2, 0], sizes = [1, 256], strides = [1, 1]} : vector<8x256xf32> to vector<1x256xf32>
    %486 = vector.broadcast %485 : vector<1x256xf32> to vector<5x256xf32>
    %487 = arith.mulf %484, %486 : vector<5x256xf32>
    %488 = arith.addf %482, %487 : vector<5x256xf32>
    %c3_154 = arith.constant 3 : index
    %c0_155 = arith.constant 0 : index
    %c0_156 = arith.constant 0 : index
    %489 = vector.load %arg13[%c3_154, %c0_155, %c0_156] : memref<8x5x256xf32, #tpu.memory_space<vmem>>, vector<1x5x256xf32>
    %490 = vector.shape_cast %489 : vector<1x5x256xf32> to vector<5x256xf32>
    %491 = vector.extract_strided_slice %265 {offsets = [3, 0], sizes = [1, 256], strides = [1, 1]} : vector<8x256xf32> to vector<1x256xf32>
    %492 = vector.broadcast %491 : vector<1x256xf32> to vector<5x256xf32>
    %493 = arith.mulf %490, %492 : vector<5x256xf32>
    %494 = arith.addf %488, %493 : vector<5x256xf32>
    %c4_157 = arith.constant 4 : index
    %c0_158 = arith.constant 0 : index
    %c0_159 = arith.constant 0 : index
    %495 = vector.load %arg13[%c4_157, %c0_158, %c0_159] : memref<8x5x256xf32, #tpu.memory_space<vmem>>, vector<1x5x256xf32>
    %496 = vector.shape_cast %495 : vector<1x5x256xf32> to vector<5x256xf32>
    %497 = vector.extract_strided_slice %265 {offsets = [4, 0], sizes = [1, 256], strides = [1, 1]} : vector<8x256xf32> to vector<1x256xf32>
    %498 = vector.broadcast %497 : vector<1x256xf32> to vector<5x256xf32>
    %499 = arith.mulf %496, %498 : vector<5x256xf32>
    %500 = arith.addf %494, %499 : vector<5x256xf32>
    %c5_160 = arith.constant 5 : index
    %c0_161 = arith.constant 0 : index
    %c0_162 = arith.constant 0 : index
    %501 = vector.load %arg13[%c5_160, %c0_161, %c0_162] : memref<8x5x256xf32, #tpu.memory_space<vmem>>, vector<1x5x256xf32>
    %502 = vector.shape_cast %501 : vector<1x5x256xf32> to vector<5x256xf32>
    %503 = vector.extract_strided_slice %265 {offsets = [5, 0], sizes = [1, 256], strides = [1, 1]} : vector<8x256xf32> to vector<1x256xf32>
    %504 = vector.broadcast %503 : vector<1x256xf32> to vector<5x256xf32>
    %505 = arith.mulf %502, %504 : vector<5x256xf32>
    %506 = arith.addf %500, %505 : vector<5x256xf32>
    %c6_163 = arith.constant 6 : index
    %c0_164 = arith.constant 0 : index
    %c0_165 = arith.constant 0 : index
    %507 = vector.load %arg13[%c6_163, %c0_164, %c0_165] : memref<8x5x256xf32, #tpu.memory_space<vmem>>, vector<1x5x256xf32>
    %508 = vector.shape_cast %507 : vector<1x5x256xf32> to vector<5x256xf32>
    %509 = vector.extract_strided_slice %265 {offsets = [6, 0], sizes = [1, 256], strides = [1, 1]} : vector<8x256xf32> to vector<1x256xf32>
    %510 = vector.broadcast %509 : vector<1x256xf32> to vector<5x256xf32>
    %511 = arith.mulf %508, %510 : vector<5x256xf32>
    %512 = arith.addf %506, %511 : vector<5x256xf32>
    %c7_166 = arith.constant 7 : index
    %c0_167 = arith.constant 0 : index
    %c0_168 = arith.constant 0 : index
    %513 = vector.load %arg13[%c7_166, %c0_167, %c0_168] : memref<8x5x256xf32, #tpu.memory_space<vmem>>, vector<1x5x256xf32>
    %514 = vector.shape_cast %513 : vector<1x5x256xf32> to vector<5x256xf32>
    %515 = vector.extract_strided_slice %265 {offsets = [7, 0], sizes = [1, 256], strides = [1, 1]} : vector<8x256xf32> to vector<1x256xf32>
    %516 = vector.broadcast %515 : vector<1x256xf32> to vector<5x256xf32>
    %517 = arith.mulf %514, %516 : vector<5x256xf32>
    %518 = arith.addf %512, %517 : vector<5x256xf32>
    %c0_169 = arith.constant 0 : index
    %c0_170 = arith.constant 0 : index
    %c0_171 = arith.constant 0 : index
    %519 = vector.load %arg14[%c0_169, %c0_170, %c0_171] : memref<8x5x128xf32, #tpu.memory_space<vmem>>, vector<1x5x128xf32>
    %520 = vector.shape_cast %519 : vector<1x5x128xf32> to vector<5x128xf32>
    %521 = vector.extract_strided_slice %471 {offsets = [0, 0], sizes = [1, 128], strides = [1, 1]} : vector<8x128xf32> to vector<1x128xf32>
    %522 = vector.broadcast %521 : vector<1x128xf32> to vector<5x128xf32>
    %523 = arith.mulf %520, %522 : vector<5x128xf32>
    %c1_172 = arith.constant 1 : index
    %c0_173 = arith.constant 0 : index
    %c0_174 = arith.constant 0 : index
    %524 = vector.load %arg14[%c1_172, %c0_173, %c0_174] : memref<8x5x128xf32, #tpu.memory_space<vmem>>, vector<1x5x128xf32>
    %525 = vector.shape_cast %524 : vector<1x5x128xf32> to vector<5x128xf32>
    %526 = vector.extract_strided_slice %471 {offsets = [1, 0], sizes = [1, 128], strides = [1, 1]} : vector<8x128xf32> to vector<1x128xf32>
    %527 = vector.broadcast %526 : vector<1x128xf32> to vector<5x128xf32>
    %528 = arith.mulf %525, %527 : vector<5x128xf32>
    %529 = arith.addf %523, %528 : vector<5x128xf32>
    %c2_175 = arith.constant 2 : index
    %c0_176 = arith.constant 0 : index
    %c0_177 = arith.constant 0 : index
    %530 = vector.load %arg14[%c2_175, %c0_176, %c0_177] : memref<8x5x128xf32, #tpu.memory_space<vmem>>, vector<1x5x128xf32>
    %531 = vector.shape_cast %530 : vector<1x5x128xf32> to vector<5x128xf32>
    %532 = vector.extract_strided_slice %471 {offsets = [2, 0], sizes = [1, 128], strides = [1, 1]} : vector<8x128xf32> to vector<1x128xf32>
    %533 = vector.broadcast %532 : vector<1x128xf32> to vector<5x128xf32>
    %534 = arith.mulf %531, %533 : vector<5x128xf32>
    %535 = arith.addf %529, %534 : vector<5x128xf32>
    %c3_178 = arith.constant 3 : index
    %c0_179 = arith.constant 0 : index
    %c0_180 = arith.constant 0 : index
    %536 = vector.load %arg14[%c3_178, %c0_179, %c0_180] : memref<8x5x128xf32, #tpu.memory_space<vmem>>, vector<1x5x128xf32>
    %537 = vector.shape_cast %536 : vector<1x5x128xf32> to vector<5x128xf32>
    %538 = vector.extract_strided_slice %471 {offsets = [3, 0], sizes = [1, 128], strides = [1, 1]} : vector<8x128xf32> to vector<1x128xf32>
    %539 = vector.broadcast %538 : vector<1x128xf32> to vector<5x128xf32>
    %540 = arith.mulf %537, %539 : vector<5x128xf32>
    %541 = arith.addf %535, %540 : vector<5x128xf32>
    %c4_181 = arith.constant 4 : index
    %c0_182 = arith.constant 0 : index
    %c0_183 = arith.constant 0 : index
    %542 = vector.load %arg14[%c4_181, %c0_182, %c0_183] : memref<8x5x128xf32, #tpu.memory_space<vmem>>, vector<1x5x128xf32>
    %543 = vector.shape_cast %542 : vector<1x5x128xf32> to vector<5x128xf32>
    %544 = vector.extract_strided_slice %471 {offsets = [4, 0], sizes = [1, 128], strides = [1, 1]} : vector<8x128xf32> to vector<1x128xf32>
    %545 = vector.broadcast %544 : vector<1x128xf32> to vector<5x128xf32>
    %546 = arith.mulf %543, %545 : vector<5x128xf32>
    %547 = arith.addf %541, %546 : vector<5x128xf32>
    %c5_184 = arith.constant 5 : index
    %c0_185 = arith.constant 0 : index
    %c0_186 = arith.constant 0 : index
    %548 = vector.load %arg14[%c5_184, %c0_185, %c0_186] : memref<8x5x128xf32, #tpu.memory_space<vmem>>, vector<1x5x128xf32>
    %549 = vector.shape_cast %548 : vector<1x5x128xf32> to vector<5x128xf32>
    %550 = vector.extract_strided_slice %471 {offsets = [5, 0], sizes = [1, 128], strides = [1, 1]} : vector<8x128xf32> to vector<1x128xf32>
    %551 = vector.broadcast %550 : vector<1x128xf32> to vector<5x128xf32>
    %552 = arith.mulf %549, %551 : vector<5x128xf32>
    %553 = arith.addf %547, %552 : vector<5x128xf32>
    %c6_187 = arith.constant 6 : index
    %c0_188 = arith.constant 0 : index
    %c0_189 = arith.constant 0 : index
    %554 = vector.load %arg14[%c6_187, %c0_188, %c0_189] : memref<8x5x128xf32, #tpu.memory_space<vmem>>, vector<1x5x128xf32>
    %555 = vector.shape_cast %554 : vector<1x5x128xf32> to vector<5x128xf32>
    %556 = vector.extract_strided_slice %471 {offsets = [6, 0], sizes = [1, 128], strides = [1, 1]} : vector<8x128xf32> to vector<1x128xf32>
    %557 = vector.broadcast %556 : vector<1x128xf32> to vector<5x128xf32>
    %558 = arith.mulf %555, %557 : vector<5x128xf32>
    %559 = arith.addf %553, %558 : vector<5x128xf32>
    %c7_190 = arith.constant 7 : index
    %c0_191 = arith.constant 0 : index
    %c0_192 = arith.constant 0 : index
    %560 = vector.load %arg14[%c7_190, %c0_191, %c0_192] : memref<8x5x128xf32, #tpu.memory_space<vmem>>, vector<1x5x128xf32>
    %561 = vector.shape_cast %560 : vector<1x5x128xf32> to vector<5x128xf32>
    %562 = vector.extract_strided_slice %471 {offsets = [7, 0], sizes = [1, 128], strides = [1, 1]} : vector<8x128xf32> to vector<1x128xf32>
    %563 = vector.broadcast %562 : vector<1x128xf32> to vector<5x128xf32>
    %564 = arith.mulf %561, %563 : vector<5x128xf32>
    %565 = arith.addf %559, %564 : vector<5x128xf32>
    %cst_193 = arith.constant dense<0.000000e+00> : vector<5xf32>
    %566 = vector.multi_reduction <add>, %518, %cst_193 [1] : vector<5x256xf32> to vector<5xf32>
    %567 = vector.shape_cast %566 : vector<5xf32> to vector<5x1xf32>
    %cst_194 = arith.constant dense<0.000000e+00> : vector<5xf32>
    %568 = vector.multi_reduction <add>, %565, %cst_194 [1] : vector<5x128xf32> to vector<5xf32>
    %569 = vector.shape_cast %568 : vector<5xf32> to vector<5x1xf32>
    %570 = arith.addf %567, %569 : vector<5x1xf32>
    %c0_195 = arith.constant 0 : index
    %c0_196 = arith.constant 0 : index
    %571 = vector.load %arg15[%c0_195, %c0_196] : memref<5x1xf32, #tpu.memory_space<vmem>>, vector<5x1xf32>
    %572 = arith.addf %570, %571 : vector<5x1xf32>
    %cst_197 = arith.constant 2.000000e+01 : f32
    %573 = vector.broadcast %cst_197 : f32 to vector<5x1xf32>
    %574 = arith.cmpf ogt, %572, %573 : vector<5x1xf32>
    %cst_198 = arith.constant 2.000000e+01 : f32
    %575 = vector.broadcast %cst_198 : f32 to vector<5x1xf32>
    %576 = arith.minimumf %572, %575 : vector<5x1xf32>
    %577 = math.exp %576 : vector<5x1xf32>
    %578 = math.log1p %577 : vector<5x1xf32>
    %579 = arith.select %574, %572, %578 : vector<5x1xi1>, vector<5x1xf32>
    %c1_199 = arith.constant 1 : index
    %c0_200 = arith.constant 0 : index
    %c0_201 = arith.constant 0 : index
    %580 = vector.load %arg16[%c1_199, %c0_200, %c0_201] : memref<2x5x1xf32, #tpu.memory_space<vmem>>, vector<1x5x1xf32>
    %581 = vector.shape_cast %580 : vector<1x5x1xf32> to vector<5x1xf32>
    %582 = vector.shape_cast %579 : vector<5x1xf32> to vector<1x5x1xf32>
    tpu.vector_store %arg16[%c1_199, %c0_200, %c0_201], %582 {strides = array<i32>} : memref<2x5x1xf32, #tpu.memory_space<vmem>>, vector<1x5x1xf32>,
    return
  }
  func.func @transform_0(%arg0: i32) -> (i32, i32, i32) {
    %c0_i32 = arith.constant 0 : i32
    %c0_i32_0 = arith.constant 0 : i32
    %c0_i32_1 = arith.constant 0 : i32
    return %arg0, %c0_i32, %c0_i32_0 : i32, i32, i32
  }
  func.func @transform_1(%arg0: i32) -> (i32, i32, i32) {
    %c0_i32 = arith.constant 0 : i32
    %c0_i32_0 = arith.constant 0 : i32
    %c0_i32_1 = arith.constant 0 : i32
    return %arg0, %c0_i32, %c0_i32_0 : i32, i32, i32
  }
  func.func @transform_2(%arg0: i32) -> (i32, i32, i32) {
    %c0_i32 = arith.constant 0 : i32
    %c0_i32_0 = arith.constant 0 : i32
    %c0_i32_1 = arith.constant 0 : i32
    return %arg0, %c0_i32, %c0_i32_0 : i32, i32, i32
  }
  func.func @transform_3(%arg0: i32) -> (i32, i32, i32) {
    %c0_i32 = arith.constant 0 : i32
    %c0_i32_0 = arith.constant 0 : i32
    %c0_i32_1 = arith.constant 0 : i32
    %c0_i32_2 = arith.constant 0 : i32
    return %c0_i32, %c0_i32_0, %c0_i32_1 : i32, i32, i32
  }
  func.func @transform_4(%arg0: i32) -> (i32, i32) {
    %c0_i32 = arith.constant 0 : i32
    %c0_i32_0 = arith.constant 0 : i32
    %c0_i32_1 = arith.constant 0 : i32
    return %c0_i32, %c0_i32_0 : i32, i32
  }
  func.func @transform_5(%arg0: i32) -> (i32, i32, i32) {
    %c0_i32 = arith.constant 0 : i32
    %c0_i32_0 = arith.constant 0 : i32
    %c0_i32_1 = arith.constant 0 : i32
    %c0_i32_2 = arith.constant 0 : i32
    return %c0_i32, %c0_i32_0, %c0_i32_1 : i32, i32, i32
  }
  func.func @transform_6(%arg0: i32) -> (i32, i32) {
    %c0_i32 = arith.constant 0 : i32
    %c0_i32_0 = arith.constant 0 : i32
    %c0_i32_1 = arith.constant 0 : i32
    return %c0_i32, %c0_i32_0 : i32, i32
  }
  func.func @transform_7(%arg0: i32) -> (i32, i32) {
    %c0_i32 = arith.constant 0 : i32
    %c0_i32_0 = arith.constant 0 : i32
    %c0_i32_1 = arith.constant 0 : i32
    return %c0_i32, %c0_i32_0 : i32, i32
  }
  func.func @transform_8(%arg0: i32) -> (i32, i32) {
    %c0_i32 = arith.constant 0 : i32
    %c0_i32_0 = arith.constant 0 : i32
    %c0_i32_1 = arith.constant 0 : i32
    return %c0_i32, %c0_i32_0 : i32, i32
  }
  func.func @transform_9(%arg0: i32) -> (i32, i32) {
    %c0_i32 = arith.constant 0 : i32
    %c0_i32_0 = arith.constant 0 : i32
    %c0_i32_1 = arith.constant 0 : i32
    return %c0_i32, %c0_i32_0 : i32, i32
  }
  func.func @transform_10(%arg0: i32) -> (i32, i32) {
    %c0_i32 = arith.constant 0 : i32
    %c0_i32_0 = arith.constant 0 : i32
    %c0_i32_1 = arith.constant 0 : i32
    return %c0_i32, %c0_i32_0 : i32, i32
  }
  func.func @transform_11(%arg0: i32) -> (i32, i32) {
    %c0_i32 = arith.constant 0 : i32
    %c0_i32_0 = arith.constant 0 : i32
    %c0_i32_1 = arith.constant 0 : i32
    return %c0_i32, %c0_i32_0 : i32, i32
  }
  func.func @transform_12(%arg0: i32) -> (i32, i32, i32) {
    %c0_i32 = arith.constant 0 : i32
    %c0_i32_0 = arith.constant 0 : i32
    %c0_i32_1 = arith.constant 0 : i32
    %c0_i32_2 = arith.constant 0 : i32
    return %c0_i32, %c0_i32_0, %c0_i32_1 : i32, i32, i32
  }
  func.func @transform_13(%arg0: i32) -> (i32, i32, i32) {
    %c0_i32 = arith.constant 0 : i32
    %c0_i32_0 = arith.constant 0 : i32
    %c0_i32_1 = arith.constant 0 : i32
    %c0_i32_2 = arith.constant 0 : i32
    return %c0_i32, %c0_i32_0, %c0_i32_1 : i32, i32, i32
  }
  func.func @transform_14(%arg0: i32) -> (i32, i32) {
    %c0_i32 = arith.constant 0 : i32
    %c0_i32_0 = arith.constant 0 : i32
    %c0_i32_1 = arith.constant 0 : i32
    return %c0_i32, %c0_i32_0 : i32, i32
  }
  func.func @transform_15(%arg0: i32) -> (i32, i32, i32) {
    %c0_i32 = arith.constant 0 : i32
    %c0_i32_0 = arith.constant 0 : i32
    %c0_i32_1 = arith.constant 0 : i32
    return %arg0, %c0_i32, %c0_i32_0 : i32, i32, i32
  }
  func.func @transform_16(%arg0: i32) -> (i32, i32, i32) {
    %c0_i32 = arith.constant 0 : i32
    %c0_i32_0 = arith.constant 0 : i32
    %c0_i32_1 = arith.constant 0 : i32
    return %arg0, %c0_i32, %c0_i32_0 : i32, i32, i32
  }
  func.func @transform_17(%arg0: i32) -> (i32, i32, i32) {
    %c0_i32 = arith.constant 0 : i32
    %c0_i32_0 = arith.constant 0 : i32
    %c0_i32_1 = arith.constant 0 : i32
    return %arg0, %c0_i32, %c0_i32_0 : i32, i32, i32
  }
}

</mosaic_0001>

<llo_original>
// kernel: proto_amac_rnn_forward.1
$region0: #{proto_amac_rnn_forward.1}
  #allocation0 [shape = 'u32[]', space=smem, size = 0x4, offset = 0x4, fixed_abs, tag = 'smem constant byte address 0x4 - core index']
  #allocation1 [shape = 'u32[72,128]{1,0:T(1,128)}', space=vmem, size = 0x9000, scoped, tag = 'internal scratch']
  %s0 = inlined_call_operand.vmem [shape: f32[4,8,384], index: 0, kind: input, shape index: {}]
  %s1 = inlined_call_operand.vmem [shape: f32[4,8,256], index: 1, kind: input, shape index: {}]
  %s2 = inlined_call_operand.vmem [shape: f32[4,2,256], index: 2, kind: input, shape index: {}]
  %s3 = inlined_call_operand.vmem [shape: f32[7,8,56], index: 3, kind: input, shape index: {}]
  %s4 = inlined_call_operand.vmem [shape: f32[8,1], index: 4, kind: input, shape index: {}]
  %s5 = inlined_call_operand.vmem [shape: f32[5,8,40], index: 5, kind: input, shape index: {}]
  %s6 = inlined_call_operand.vmem [shape: f32[8,1], index: 6, kind: input, shape index: {}]
  %s7 = inlined_call_operand.vmem [shape: f32[2,8], index: 7, kind: input, shape index: {}]
  %s8 = inlined_call_operand.vmem [shape: f32[2,2], index: 8, kind: input, shape index: {}]
  %s9 = inlined_call_operand.vmem [shape: f32[2,1], index: 9, kind: input, shape index: {}]
  %s10 = inlined_call_operand.vmem [shape: f32[8,2], index: 10, kind: input, shape index: {}]
  %s11 = inlined_call_operand.vmem [shape: f32[8,1], index: 11, kind: input, shape index: {}]
  %s12 = inlined_call_operand.vmem [shape: f32[8,5,256], index: 12, kind: input, shape index: {}]
  %s13 = inlined_call_operand.vmem [shape: f32[8,5,128], index: 13, kind: input, shape index: {}]
  %s14 = inlined_call_operand.vmem [shape: f32[5,1], index: 14, kind: input, shape index: {}]
  %s15 = inlined_call_operand.vmem [shape: f32[4,5,1], index: 15, kind: output, shape index: {0}]
  %s16 = inlined_call_operand.vmem [shape: f32[4,8,256], index: 16, kind: output, shape index: {1}]
  %s17 = inlined_call_operand.vmem [shape: f32[4,2,256], index: 17, kind: output, shape index: {2}]
  %18 = xla_tuple %s15, %s16, %s17
  %s19 = sld [smem:[#allocation0]]
  $region109: #{proto_amac_rnn_forward.1} parent=0
    _
  %s21 = ssub.s32 1, %s19
  %s22 = scalar_select 0, %s21, %s19
  loop: start=0, step=1, limit=4
  $region2: #{proto_amac_rnn_forward.1} parent=0 // loop_pre_header
    _
  $region3: #{proto_amac_rnn_forward.1} parent=0 // loop_header
    %s24 = sphi 0, %s28
    %p25 = scmp.ge.s32.totalorder %s24, 4
    %s34 = sphi 0, %s36
    %s37 = sphi 0, %s34
    %s38 = sphi 0, %s37
    %s54 = sphi 0, %s38
    %s60 = sphi 0, %s62
    %s63 = sphi 0, %s60
    %s64 = sphi 0, %s63
    %s80 = sphi 0, %s64
    %s86 = sphi 0, %s88
    %s89 = sphi 0, %s86
    %s90 = sphi 0, %s89
    %s106 = sphi 0, %s90
    %s110 = sphi 0, %s110
    %s112 = sphi 0, %s110
    %s113 = sphi 0, %s112
    %s127 = sphi 0, %s113
    %s131 = sphi 0, %s131
    %s133 = sphi 0, %s131
    %s134 = sphi 0, %s133
    %s148 = sphi 0, %s134
    %s152 = sphi 0, %s152
    %s154 = sphi 0, %s152
    %s155 = sphi 0, %s154
    %s169 = sphi 0, %s155
    %s173 = sphi 0, %s173
    %s175 = sphi 0, %s173
    %s176 = sphi 0, %s175
    %s190 = sphi 0, %s176
    %s194 = sphi 0, %s194
    %s196 = sphi 0, %s194
    %s197 = sphi 0, %s196
    %s211 = sphi 0, %s197
    %s215 = sphi 0, %s215
    %s217 = sphi 0, %s215
    %s218 = sphi 0, %s217
    %s232 = sphi 0, %s218
    %s236 = sphi 0, %s236
    %s238 = sphi 0, %s236
    %s239 = sphi 0, %s238
    %s253 = sphi 0, %s239
    %s257 = sphi 0, %s257
    %s259 = sphi 0, %s257
    %s260 = sphi 0, %s259
    %s274 = sphi 0, %s260
    %s278 = sphi 0, %s278
    %s280 = sphi 0, %s278
    %s281 = sphi 0, %s280
    %s295 = sphi 0, %s281
    %s299 = sphi 0, %s299
    %s301 = sphi 0, %s299
    %s302 = sphi 0, %s301
    %s316 = sphi 0, %s302
    %s320 = sphi 0, %s320
    %s322 = sphi 0, %s320
    %s323 = sphi 0, %s322
    %s337 = sphi 0, %s323
    %s341 = sphi 0, %s341
    %s343 = sphi 0, %s341
    %s344 = sphi 0, %s343
    %s358 = sphi 0, %s344
    %s364 = sphi 0, %s366
    %s367 = sphi 0, %s364
    %s368 = sphi 0, %s367
    %s384 = sphi 0, %s368
    %s390 = sphi 0, %s392
    %s393 = sphi 0, %s390
    %s394 = sphi 0, %s393
    %s410 = sphi 0, %s394
    %s416 = sphi 0, %s418
    %s419 = sphi 0, %s416
    %s420 = sphi 0, %s419
    %s436 = sphi 0, %s420
  $region4: #{proto_amac_rnn_forward.1} parent=0 // loop_header_branch
    %27 = sbr.rel (%p25) target = $region8
  $region5: #{proto_amac_rnn_forward.1} parent=0 // loop_body
    %s29 = ssub.s32 %s24, 1
    %s30 = ssub.s32 %s24, 2
    %s31 = sadd.s32 %s24, 1
    %s32 = ssub.s32 %s24, %s31
    %p33 = scmp.eq.s32.totalorder %s32, 0
    %s35 = sadd.s32 %s34, 1
    %s36 = scalar_select %p33, %s34, %s35
    %p39 = pneg %p33
    %p40 = scmp.eq.s32.totalorder %s24, 1
    %p41 = por %p39, %p40
    %p42 = scmp.ne.s32.totalorder %s34, %s37
    %p43 = scmp.eq.s32.totalorder %s24, 0
    %p44 = por %p42, %p43
    %p45 = scmp.ne.s32.totalorder %s34, %s37
    %p46 = scmp.eq.s32.totalorder %s29, 1
    %p47 = por %p45, %p46
    %p48 = scmp.ne.s32.totalorder %s37, %s38
    %p49 = scmp.eq.s32.totalorder %s29, 0
    %p50 = por %p48, %p49
    %p51 = scmp.ne.s32.totalorder %s37, %s38
    %p52 = scmp.eq.s32.totalorder %s30, 1
    %p53 = por %p51, %p52
    %p55 = scmp.ne.s32.totalorder %s38, %s54
    %p56 = scmp.eq.s32.totalorder %s30, 0
    %p57 = por %p55, %p56
    %s58 = ssub.s32 %s24, %s31
    %p59 = scmp.eq.s32.totalorder %s58, 0
    %s61 = sadd.s32 %s60, 1
    %s62 = scalar_select %p59, %s60, %s61
    %p65 = pneg %p59
    %p66 = scmp.eq.s32.totalorder %s24, 1
    %p67 = por %p65, %p66
    %p68 = scmp.ne.s32.totalorder %s60, %s63
    %p69 = scmp.eq.s32.totalorder %s24, 0
    %p70 = por %p68, %p69
    %p71 = scmp.ne.s32.totalorder %s60, %s63
    %p72 = scmp.eq.s32.totalorder %s29, 1
    %p73 = por %p71, %p72
    %p74 = scmp.ne.s32.totalorder %s63, %s64
    %p75 = scmp.eq.s32.totalorder %s29, 0
    %p76 = por %p74, %p75
    %p77 = scmp.ne.s32.totalorder %s63, %s64
    %p78 = scmp.eq.s32.totalorder %s30, 1
    %p79 = por %p77, %p78
    %p81 = scmp.ne.s32.totalorder %s64, %s80
    %p82 = scmp.eq.s32.totalorder %s30, 0
    %p83 = por %p81, %p82
    %s84 = ssub.s32 %s24, %s31
    %p85 = scmp.eq.s32.totalorder %s84, 0
    %s87 = sadd.s32 %s86, 1
    %s88 = scalar_select %p85, %s86, %s87
    %p91 = pneg %p85
    %p92 = scmp.eq.s32.totalorder %s24, 1
    %p93 = por %p91, %p92
    %p94 = scmp.ne.s32.totalorder %s86, %s89
    %p95 = scmp.eq.s32.totalorder %s24, 0
    %p96 = por %p94, %p95
    %p97 = scmp.ne.s32.totalorder %s86, %s89
    %p98 = scmp.eq.s32.totalorder %s29, 1
    %p99 = por %p97, %p98
    %p100 = scmp.ne.s32.totalorder %s89, %s90
    %p101 = scmp.eq.s32.totalorder %s29, 0
    %p102 = por %p100, %p101
    %p103 = scmp.ne.s32.totalorder %s89, %s90
    %p104 = scmp.eq.s32.totalorder %s30, 1
    %p105 = por %p103, %p104
    %p107 = scmp.ne.s32.totalorder %s90, %s106
    %p108 = scmp.eq.s32.totalorder %s30, 0
    %p109 = por %p107, %p108
    %s111 = sadd.s32 %s110, 1
    %p114 = scmp.eq.s32.totalorder %s24, 1
    %p115 = scmp.ne.s32.totalorder %s110, %s112
    %p116 = scmp.eq.s32.totalorder %s24, 0
    %p117 = por %p115, %p116
    %p118 = scmp.ne.s32.totalorder %s110, %s112
    %p119 = scmp.eq.s32.totalorder %s29, 1
    %p120 = por %p118, %p119
    %p121 = scmp.ne.s32.totalorder %s112, %s113
    %p122 = scmp.eq.s32.totalorder %s29, 0
    %p123 = por %p121, %p122
    %p124 = scmp.ne.s32.totalorder %s112, %s113
    %p125 = scmp.eq.s32.totalorder %s30, 1
    %p126 = por %p124, %p125
    %p128 = scmp.ne.s32.totalorder %s113, %s127
    %p129 = scmp.eq.s32.totalorder %s30, 0
    %p130 = por %p128, %p129
    %s132 = sadd.s32 %s131, 1
    %p135 = scmp.eq.s32.totalorder %s24, 1
    %p136 = scmp.ne.s32.totalorder %s131, %s133
    %p137 = scmp.eq.s32.totalorder %s24, 0
    %p138 = por %p136, %p137
    %p139 = scmp.ne.s32.totalorder %s131, %s133
    %p140 = scmp.eq.s32.totalorder %s29, 1
    %p141 = por %p139, %p140
    %p142 = scmp.ne.s32.totalorder %s133, %s134
    %p143 = scmp.eq.s32.totalorder %s29, 0
    %p144 = por %p142, %p143
    %p145 = scmp.ne.s32.totalorder %s133, %s134
    %p146 = scmp.eq.s32.totalorder %s30, 1
    %p147 = por %p145, %p146
    %p149 = scmp.ne.s32.totalorder %s134, %s148
    %p150 = scmp.eq.s32.totalorder %s30, 0
    %p151 = por %p149, %p150
    %s153 = sadd.s32 %s152, 1
    %p156 = scmp.eq.s32.totalorder %s24, 1
    %p157 = scmp.ne.s32.totalorder %s152, %s154
    %p158 = scmp.eq.s32.totalorder %s24, 0
    %p159 = por %p157, %p158
    %p160 = scmp.ne.s32.totalorder %s152, %s154
    %p161 = scmp.eq.s32.totalorder %s29, 1
    %p162 = por %p160, %p161
    %p163 = scmp.ne.s32.totalorder %s154, %s155
    %p164 = scmp.eq.s32.totalorder %s29, 0
    %p165 = por %p163, %p164
    %p166 = scmp.ne.s32.totalorder %s154, %s155
    %p167 = scmp.eq.s32.totalorder %s30, 1
    %p168 = por %p166, %p167
    %p170 = scmp.ne.s32.totalorder %s155, %s169
    %p171 = scmp.eq.s32.totalorder %s30, 0
    %p172 = por %p170, %p171
    %s174 = sadd.s32 %s173, 1
    %p177 = scmp.eq.s32.totalorder %s24, 1
    %p178 = scmp.ne.s32.totalorder %s173, %s175
    %p179 = scmp.eq.s32.totalorder %s24, 0
    %p180 = por %p178, %p179
    %p181 = scmp.ne.s32.totalorder %s173, %s175
    %p182 = scmp.eq.s32.totalorder %s29, 1
    %p183 = por %p181, %p182
    %p184 = scmp.ne.s32.totalorder %s175, %s176
    %p185 = scmp.eq.s32.totalorder %s29, 0
    %p186 = por %p184, %p185
    %p187 = scmp.ne.s32.totalorder %s175, %s176
    %p188 = scmp.eq.s32.totalorder %s30, 1
    %p189 = por %p187, %p188
    %p191 = scmp.ne.s32.totalorder %s176, %s190
    %p192 = scmp.eq.s32.totalorder %s30, 0
    %p193 = por %p191, %p192
    %s195 = sadd.s32 %s194, 1
    %p198 = scmp.eq.s32.totalorder %s24, 1
    %p199 = scmp.ne.s32.totalorder %s194, %s196
    %p200 = scmp.eq.s32.totalorder %s24, 0
    %p201 = por %p199, %p200
    %p202 = scmp.ne.s32.totalorder %s194, %s196
    %p203 = scmp.eq.s32.totalorder %s29, 1
    %p204 = por %p202, %p203
    %p205 = scmp.ne.s32.totalorder %s196, %s197
    %p206 = scmp.eq.s32.totalorder %s29, 0
    %p207 = por %p205, %p206
    %p208 = scmp.ne.s32.totalorder %s196, %s197
    %p209 = scmp.eq.s32.totalorder %s30, 1
    %p210 = por %p208, %p209
    %p212 = scmp.ne.s32.totalorder %s197, %s211
    %p213 = scmp.eq.s32.totalorder %s30, 0
    %p214 = por %p212, %p213
    %s216 = sadd.s32 %s215, 1
    %p219 = scmp.eq.s32.totalorder %s24, 1
    %p220 = scmp.ne.s32.totalorder %s215, %s217
    %p221 = scmp.eq.s32.totalorder %s24, 0
    %p222 = por %p220, %p221
    %p223 = scmp.ne.s32.totalorder %s215, %s217
    %p224 = scmp.eq.s32.totalorder %s29, 1
    %p225 = por %p223, %p224
    %p226 = scmp.ne.s32.totalorder %s217, %s218
    %p227 = scmp.eq.s32.totalorder %s29, 0
    %p228 = por %p226, %p227
    %p229 = scmp.ne.s32.totalorder %s217, %s218
    %p230 = scmp.eq.s32.totalorder %s30, 1
    %p231 = por %p229, %p230
    %p233 = scmp.ne.s32.totalorder %s218, %s232
    %p234 = scmp.eq.s32.totalorder %s30, 0
    %p235 = por %p233, %p234
    %s237 = sadd.s32 %s236, 1
    %p240 = scmp.eq.s32.totalorder %s24, 1
    %p241 = scmp.ne.s32.totalorder %s236, %s238
    %p242 = scmp.eq.s32.totalorder %s24, 0
    %p243 = por %p241, %p242
    %p244 = scmp.ne.s32.totalorder %s236, %s238
    %p245 = scmp.eq.s32.totalorder %s29, 1
    %p246 = por %p244, %p245
    %p247 = scmp.ne.s32.totalorder %s238, %s239
    %p248 = scmp.eq.s32.totalorder %s29, 0
    %p249 = por %p247, %p248
    %p250 = scmp.ne.s32.totalorder %s238, %s239
    %p251 = scmp.eq.s32.totalorder %s30, 1
    %p252 = por %p250, %p251
    %p254 = scmp.ne.s32.totalorder %s239, %s253
    %p255 = scmp.eq.s32.totalorder %s30, 0
    %p256 = por %p254, %p255
    %s258 = sadd.s32 %s257, 1
    %p261 = scmp.eq.s32.totalorder %s24, 1
    %p262 = scmp.ne.s32.totalorder %s257, %s259
    %p263 = scmp.eq.s32.totalorder %s24, 0
    %p264 = por %p262, %p263
    %p265 = scmp.ne.s32.totalorder %s257, %s259
    %p266 = scmp.eq.s32.totalorder %s29, 1
    %p267 = por %p265, %p266
    %p268 = scmp.ne.s32.totalorder %s259, %s260
    %p269 = scmp.eq.s32.totalorder %s29, 0
    %p270 = por %p268, %p269
    %p271 = scmp.ne.s32.totalorder %s259, %s260
    %p272 = scmp.eq.s32.totalorder %s30, 1
    %p273 = por %p271, %p272
    %p275 = scmp.ne.s32.totalorder %s260, %s274
    %p276 = scmp.eq.s32.totalorder %s30, 0
    %p277 = por %p275, %p276
    %s279 = sadd.s32 %s278, 1
    %p282 = scmp.eq.s32.totalorder %s24, 1
    %p283 = scmp.ne.s32.totalorder %s278, %s280
    %p284 = scmp.eq.s32.totalorder %s24, 0
    %p285 = por %p283, %p284
    %p286 = scmp.ne.s32.totalorder %s278, %s280
    %p287 = scmp.eq.s32.totalorder %s29, 1
    %p288 = por %p286, %p287
    %p289 = scmp.ne.s32.totalorder %s280, %s281
    %p290 = scmp.eq.s32.totalorder %s29, 0
    %p291 = por %p289, %p290
    %p292 = scmp.ne.s32.totalorder %s280, %s281
    %p293 = scmp.eq.s32.totalorder %s30, 1
    %p294 = por %p292, %p293
    %p296 = scmp.ne.s32.totalorder %s281, %s295
    %p297 = scmp.eq.s32.totalorder %s30, 0
    %p298 = por %p296, %p297
    %s300 = sadd.s32 %s299, 1
    %p303 = scmp.eq.s32.totalorder %s24, 1
    %p304 = scmp.ne.s32.totalorder %s299, %s301
    %p305 = scmp.eq.s32.totalorder %s24, 0
    %p306 = por %p304, %p305
    %p307 = scmp.ne.s32.totalorder %s299, %s301
    %p308 = scmp.eq.s32.totalorder %s29, 1
    %p309 = por %p307, %p308
    %p310 = scmp.ne.s32.totalorder %s301, %s302
    %p311 = scmp.eq.s32.totalorder %s29, 0
    %p312 = por %p310, %p311
    %p313 = scmp.ne.s32.totalorder %s301, %s302
    %p314 = scmp.eq.s32.totalorder %s30, 1
    %p315 = por %p313, %p314
    %p317 = scmp.ne.s32.totalorder %s302, %s316
    %p318 = scmp.eq.s32.totalorder %s30, 0
    %p319 = por %p317, %p318
    %s321 = sadd.s32 %s320, 1
    %p324 = scmp.eq.s32.totalorder %s24, 1
    %p325 = scmp.ne.s32.totalorder %s320, %s322
    %p326 = scmp.eq.s32.totalorder %s24, 0
    %p327 = por %p325, %p326
    %p328 = scmp.ne.s32.totalorder %s320, %s322
    %p329 = scmp.eq.s32.totalorder %s29, 1
    %p330 = por %p328, %p329
    %p331 = scmp.ne.s32.totalorder %s322, %s323
    %p332 = scmp.eq.s32.totalorder %s29, 0
    %p333 = por %p331, %p332
    %p334 = scmp.ne.s32.totalorder %s322, %s323
    %p335 = scmp.eq.s32.totalorder %s30, 1
    %p336 = por %p334, %p335
    %p338 = scmp.ne.s32.totalorder %s323, %s337
    %p339 = scmp.eq.s32.totalorder %s30, 0
    %p340 = por %p338, %p339
    %s342 = sadd.s32 %s341, 1
    %p345 = scmp.eq.s32.totalorder %s24, 1
    %p346 = scmp.ne.s32.totalorder %s341, %s343
    %p347 = scmp.eq.s32.totalorder %s24, 0
    %p348 = por %p346, %p347
    %p349 = scmp.ne.s32.totalorder %s341, %s343
    %p350 = scmp.eq.s32.totalorder %s29, 1
    %p351 = por %p349, %p350
    %p352 = scmp.ne.s32.totalorder %s343, %s344
    %p353 = scmp.eq.s32.totalorder %s29, 0
    %p354 = por %p352, %p353
    %p355 = scmp.ne.s32.totalorder %s343, %s344
    %p356 = scmp.eq.s32.totalorder %s30, 1
    %p357 = por %p355, %p356
    %p359 = scmp.ne.s32.totalorder %s344, %s358
    %p360 = scmp.eq.s32.totalorder %s30, 0
    %p361 = por %p359, %p360
    %s362 = ssub.s32 %s24, %s31
    %p363 = scmp.eq.s32.totalorder %s362, 0
    %s365 = sadd.s32 %s364, 1
    %s366 = scalar_select %p363, %s364, %s365
    %p369 = pneg %p363
    %p370 = scmp.eq.s32.totalorder %s24, 1
    %p371 = por %p369, %p370
    %p372 = scmp.ne.s32.totalorder %s364, %s367
    %p373 = scmp.eq.s32.totalorder %s24, 0
    %p374 = por %p372, %p373
    %p375 = scmp.ne.s32.totalorder %s364, %s367
    %p376 = scmp.eq.s32.totalorder %s29, 1
    %p377 = por %p375, %p376
    %p378 = scmp.ne.s32.totalorder %s367, %s368
    %p379 = scmp.eq.s32.totalorder %s29, 0
    %p380 = por %p378, %p379
    %p381 = scmp.ne.s32.totalorder %s367, %s368
    %p382 = scmp.eq.s32.totalorder %s30, 1
    %p383 = por %p381, %p382
    %p385 = scmp.ne.s32.totalorder %s368, %s384
    %p386 = scmp.eq.s32.totalorder %s30, 0
    %p387 = por %p385, %p386
    %s388 = ssub.s32 %s24, %s31
    %p389 = scmp.eq.s32.totalorder %s388, 0
    %s391 = sadd.s32 %s390, 1
    %s392 = scalar_select %p389, %s390, %s391
    %p395 = pneg %p389
    %p396 = scmp.eq.s32.totalorder %s24, 1
    %p397 = por %p395, %p396
    %p398 = scmp.ne.s32.totalorder %s390, %s393
    %p399 = scmp.eq.s32.totalorder %s24, 0
    %p400 = por %p398, %p399
    %p401 = scmp.ne.s32.totalorder %s390, %s393
    %p402 = scmp.eq.s32.totalorder %s29, 1
    %p403 = por %p401, %p402
    %p404 = scmp.ne.s32.totalorder %s393, %s394
    %p405 = scmp.eq.s32.totalorder %s29, 0
    %p406 = por %p404, %p405
    %p407 = scmp.ne.s32.totalorder %s393, %s394
    %p408 = scmp.eq.s32.totalorder %s30, 1
    %p409 = por %p407, %p408
    %p411 = scmp.ne.s32.totalorder %s394, %s410
    %p412 = scmp.eq.s32.totalorder %s30, 0
    %p413 = por %p411, %p412
    %s414 = ssub.s32 %s24, %s31
    %p415 = scmp.eq.s32.totalorder %s414, 0
    %s417 = sadd.s32 %s416, 1
    %s418 = scalar_select %p415, %s416, %s417
    %p421 = pneg %p415
    %p422 = scmp.eq.s32.totalorder %s24, 1
    %p423 = por %p421, %p422
    %p424 = scmp.ne.s32.totalorder %s416, %s419
    %p425 = scmp.eq.s32.totalorder %s24, 0
    %p426 = por %p424, %p425
    %p427 = scmp.ne.s32.totalorder %s416, %s419
    %p428 = scmp.eq.s32.totalorder %s29, 1
    %p429 = por %p427, %p428
    %p430 = scmp.ne.s32.totalorder %s419, %s420
    %p431 = scmp.eq.s32.totalorder %s29, 0
    %p432 = por %p430, %p431
    %p433 = scmp.ne.s32.totalorder %s419, %s420
    %p434 = scmp.eq.s32.totalorder %s30, 1
    %p435 = por %p433, %p434
    %p437 = scmp.ne.s32.totalorder %s420, %s436
    %p438 = scmp.eq.s32.totalorder %s30, 0
    %p439 = por %p437, %p438
    %p440 = scmp.le.s32.totalorder 1, %s24
    %p441 = scmp.lt.s32.totalorder %s24, 3
    %p442 = pnand %p440, %p441
    %p443 = pneg %p442
    // Predicated region
    $region9: #{proto_amac_rnn_forward.1} parent=5 // pred_check
      _
    $region10: #{proto_amac_rnn_forward.1} parent=5 // pred_check_branch
      %445 = sbr.rel (%p442) target = $region12
    $region11: #{proto_amac_rnn_forward.1} parent=5 // pred_region
      %s446 = ssub.s32 %s24, 1
      // Predicated region
      $region13: #{proto_amac_rnn_forward.1} parent=11 // pred_check
        %p447 = pneg %p123
      $region14: #{proto_amac_rnn_forward.1} parent=11 // pred_check_branch
        %449 = sbr.rel (%p447) target = $region16
      $region15: #{proto_amac_rnn_forward.1} parent=11 // pred_region
        _
      $region16: #{proto_amac_rnn_forward.1} parent=11 // pred_fallthru
        _
      // Predicated region
      $region17: #{proto_amac_rnn_forward.1} parent=11 // pred_check
        %p450 = pneg %p144
      $region18: #{proto_amac_rnn_forward.1} parent=11 // pred_check_branch
        %452 = sbr.rel (%p450) target = $region20
      $region19: #{proto_amac_rnn_forward.1} parent=11 // pred_region
        _
      $region20: #{proto_amac_rnn_forward.1} parent=11 // pred_fallthru
        _
      // Predicated region
      $region21: #{proto_amac_rnn_forward.1} parent=11 // pred_check
        %p453 = pneg %p165
      $region22: #{proto_amac_rnn_forward.1} parent=11 // pred_check_branch
        %455 = sbr.rel (%p453) target = $region24
      $region23: #{proto_amac_rnn_forward.1} parent=11 // pred_region
        _
      $region24: #{proto_amac_rnn_forward.1} parent=11 // pred_fallthru
        _
      // Predicated region
      $region25: #{proto_amac_rnn_forward.1} parent=11 // pred_check
        %p456 = pneg %p186
      $region26: #{proto_amac_rnn_forward.1} parent=11 // pred_check_branch
        %458 = sbr.rel (%p456) target = $region28
      $region27: #{proto_amac_rnn_forward.1} parent=11 // pred_region
        _
      $region28: #{proto_amac_rnn_forward.1} parent=11 // pred_fallthru
        _
      // Predicated region
      $region29: #{proto_amac_rnn_forward.1} parent=11 // pred_check
        %p459 = pneg %p207
      $region30: #{proto_amac_rnn_forward.1} parent=11 // pred_check_branch
        %461 = sbr.rel (%p459) target = $region32
      $region31: #{proto_amac_rnn_forward.1} parent=11 // pred_region
        _
      $region32: #{proto_amac_rnn_forward.1} parent=11 // pred_fallthru
        _
      // Predicated region
      $region33: #{proto_amac_rnn_forward.1} parent=11 // pred_check
        %p462 = pneg %p228
      $region34: #{proto_amac_rnn_forward.1} parent=11 // pred_check_branch
        %464 = sbr.rel (%p462) target = $region36
      $region35: #{proto_amac_rnn_forward.1} parent=11 // pred_region
        _
      $region36: #{proto_amac_rnn_forward.1} parent=11 // pred_fallthru
        _
      // Predicated region
      $region37: #{proto_amac_rnn_forward.1} parent=11 // pred_check
        %p465 = pneg %p249
      $region38: #{proto_amac_rnn_forward.1} parent=11 // pred_check_branch
        %467 = sbr.rel (%p465) target = $region40
      $region39: #{proto_amac_rnn_forward.1} parent=11 // pred_region
        _
      $region40: #{proto_amac_rnn_forward.1} parent=11 // pred_fallthru
        _
      // Predicated region
      $region41: #{proto_amac_rnn_forward.1} parent=11 // pred_check
        %p468 = pneg %p270
      $region42: #{proto_amac_rnn_forward.1} parent=11 // pred_check_branch
        %470 = sbr.rel (%p468) target = $region44
      $region43: #{proto_amac_rnn_forward.1} parent=11 // pred_region
        _
      $region44: #{proto_amac_rnn_forward.1} parent=11 // pred_fallthru
        _
      // Predicated region
      $region45: #{proto_amac_rnn_forward.1} parent=11 // pred_check
        %p471 = pneg %p291
      $region46: #{proto_amac_rnn_forward.1} parent=11 // pred_check_branch
        %473 = sbr.rel (%p471) target = $region48
      $region47: #{proto_amac_rnn_forward.1} parent=11 // pred_region
        _
      $region48: #{proto_amac_rnn_forward.1} parent=11 // pred_fallthru
        _
      // Predicated region
      $region49: #{proto_amac_rnn_forward.1} parent=11 // pred_check
        %p474 = pneg %p312
      $region50: #{proto_amac_rnn_forward.1} parent=11 // pred_check_branch
        %476 = sbr.rel (%p474) target = $region52
      $region51: #{proto_amac_rnn_forward.1} parent=11 // pred_region
        _
      $region52: #{proto_amac_rnn_forward.1} parent=11 // pred_fallthru
        _
      // Predicated region
      $region53: #{proto_amac_rnn_forward.1} parent=11 // pred_check
        %p477 = pneg %p333
      $region54: #{proto_amac_rnn_forward.1} parent=11 // pred_check_branch
        %479 = sbr.rel (%p477) target = $region56
      $region55: #{proto_amac_rnn_forward.1} parent=11 // pred_region
        _
      $region56: #{proto_amac_rnn_forward.1} parent=11 // pred_fallthru
        _
      // Predicated region
      $region57: #{proto_amac_rnn_forward.1} parent=11 // pred_check
        %p480 = pneg %p354
      $region58: #{proto_amac_rnn_forward.1} parent=11 // pred_check_branch
        %482 = sbr.rel (%p480) target = $region60
      $region59: #{proto_amac_rnn_forward.1} parent=11 // pred_region
        _
      $region60: #{proto_amac_rnn_forward.1} parent=11 // pred_fallthru
        _
    $region12: #{proto_amac_rnn_forward.1} parent=5 // pred_fallthru
      _
    %p483 = scmp.lt.s32.totalorder %s24, 2
    // Predicated region
    $region61: #{proto_amac_rnn_forward.1} parent=5 // pred_check
      %p484 = pneg %p483
    $region62: #{proto_amac_rnn_forward.1} parent=5 // pred_check_branch
      %486 = sbr.rel (%p484) target = $region64
    $region63: #{proto_amac_rnn_forward.1} parent=5 // pred_region
      // Predicated region
      $region65: #{proto_amac_rnn_forward.1} parent=63 // pred_check
        %p487 = pneg %p44
      $region66: #{proto_amac_rnn_forward.1} parent=63 // pred_check_branch
        %489 = sbr.rel (%p487) target = $region68
      $region67: #{proto_amac_rnn_forward.1} parent=63 // pred_region
        %s490 = smul.u32 2, %s24
        %p491 = scmp.lt.s32.totalorder %s490, 3
        %s492 = scalar_select %p491, %s490, 3
        %s493 = smul.addr %s492, 3
        %s494 = smul.addr %s493, 8
        %s495 = scalar_lea.vmem %s0, %s494
        %s496 = smul.u32 2, %s24
      $region68: #{proto_amac_rnn_forward.1} parent=63 // pred_fallthru
        _
      // Predicated region
      $region69: #{proto_amac_rnn_forward.1} parent=63 // pred_check
        %p497 = pneg %p70
      $region70: #{proto_amac_rnn_forward.1} parent=63 // pred_check_branch
        %499 = sbr.rel (%p497) target = $region72
      $region71: #{proto_amac_rnn_forward.1} parent=63 // pred_region
        %s500 = smul.u32 2, %s24
        %p501 = scmp.lt.s32.totalorder %s500, 3
        %s502 = scalar_select %p501, %s500, 3
        %s503 = smul.addr %s502, 2
        %s504 = smul.addr %s503, 8
        %s505 = scalar_lea.vmem %s1, %s504
        %s506 = smul.u32 2, %s24
      $region72: #{proto_amac_rnn_forward.1} parent=63 // pred_fallthru
        _
      // Predicated region
      $region73: #{proto_amac_rnn_forward.1} parent=63 // pred_check
        %p507 = pneg %p96
      $region74: #{proto_amac_rnn_forward.1} parent=63 // pred_check_branch
        %509 = sbr.rel (%p507) target = $region76
      $region75: #{proto_amac_rnn_forward.1} parent=63 // pred_region
        %s510 = smul.u32 2, %s24
        %p511 = scmp.lt.s32.totalorder %s510, 3
        %s512 = scalar_select %p511, %s510, 3
        %s513 = smul.addr %s512, 2
        %s514 = smul.addr %s513, 2
        %s515 = scalar_lea.vmem %s2, %s514
        %s516 = smul.u32 2, %s24
      $region76: #{proto_amac_rnn_forward.1} parent=63 // pred_fallthru
        _
    $region64: #{proto_amac_rnn_forward.1} parent=5 // pred_fallthru
      _
    %p517 = scmp.le.s32.totalorder 1, %s24
    %p518 = scmp.lt.s32.totalorder %s24, 3
    %p519 = pnand %p517, %p518
    %p520 = pneg %p519
    // Predicated region
    $region77: #{proto_amac_rnn_forward.1} parent=5 // pred_check
      _
    $region78: #{proto_amac_rnn_forward.1} parent=5 // pred_check_branch
      %522 = sbr.rel (%p519) target = $region80
    $region79: #{proto_amac_rnn_forward.1} parent=5 // pred_region
      %s523 = ssub.s32 %s24, 1
      %s524 = smul.u32 2, %s29
      %p525 = scmp.lt.s32.totalorder %s524, 3
      %s526 = scalar_select %p525, %s524, 3
      %s527 = smul.addr %s526, 3
      %s528 = smul.addr %s527, 8
      %s529 = scalar_lea.vmem %s0, %s528
      %p530 = pneg %p50
      %p531 = pneg %p47
      %s532 = smul.u32 2, %s29
      %p533 = scmp.lt.s32.totalorder %s532, 3
      %s534 = scalar_select %p533, %s532, 3
      %s535 = smul.addr %s534, 2
      %s536 = smul.addr %s535, 8
      %s537 = scalar_lea.vmem %s1, %s536
      %p538 = pneg %p76
      %p539 = pneg %p73
      %s540 = smul.u32 2, %s29
      %p541 = scmp.lt.s32.totalorder %s540, 3
      %s542 = scalar_select %p541, %s540, 3
      %s543 = smul.addr %s542, 2
      %s544 = smul.addr %s543, 2
      %s545 = scalar_lea.vmem %s2, %s544
      %p546 = pneg %p102
      %p547 = pneg %p99
      %p548 = pneg %p123
      %p549 = pneg %p120
      %p550 = pneg %p144
      %p551 = pneg %p141
      %p552 = pneg %p165
      %p553 = pneg %p162
      %p554 = pneg %p186
      %p555 = pneg %p183
      %p556 = pneg %p207
      %p557 = pneg %p204
      %p558 = pneg %p228
      %p559 = pneg %p225
      %p560 = pneg %p249
      %p561 = pneg %p246
      %p562 = pneg %p270
      %p563 = pneg %p267
      %p564 = pneg %p291
      %p565 = pneg %p288
      %p566 = pneg %p312
      %p567 = pneg %p309
      %p568 = pneg %p333
      %p569 = pneg %p330
      %p570 = pneg %p354
      %p571 = pneg %p351
      %p572 = pneg %p380
      %p573 = pneg %p377
      %s574 = smul.u32 2, %s29
      %p575 = scmp.lt.s32.totalorder %s574, 3
      %s576 = scalar_select %p575, %s574, 3
      %s577 = smul.addr %s576, 8
      %s578 = scalar_lea.vmem %s15, %s577
      %p579 = pneg %p406
      %p580 = pneg %p403
      %s581 = smul.u32 2, %s29
      %p582 = scmp.lt.s32.totalorder %s581, 3
      %s583 = scalar_select %p582, %s581, 3
      %s584 = smul.addr %s583, 2
      %s585 = smul.addr %s584, 8
      %s586 = scalar_lea.vmem %s16, %s585
      %p587 = pneg %p432
      %p588 = pneg %p429
      %s589 = smul.u32 2, %s29
      %p590 = scmp.lt.s32.totalorder %s589, 3
      %s591 = scalar_select %p590, %s589, 3
      %s592 = smul.addr %s591, 2
      %s593 = smul.addr %s592, 2
      %s594 = scalar_lea.vmem %s17, %s593
      %s595 = smul.u32 2, %s29
      %p596 = scmp.lt.s32.totalorder %s595, 3
      %s597 = scalar_select %p596, %s595, 3
      %s598 = smul.addr %s597, 3
      %s599 = smul.addr %s598, 8
      %s600 = scalar_lea.vmem %s0, %s599
      %s601 = smul.u32 2, %s29
      %s602 = smul.u32 2, %s29
      %p603 = scmp.lt.s32.totalorder %s602, 3
      %s604 = scalar_select %p603, %s602, 3
      %s605 = smul.addr %s604, 2
      %s606 = smul.addr %s605, 8
      %s607 = scalar_lea.vmem %s1, %s606
      %s608 = smul.u32 2, %s29
      %s609 = smul.u32 2, %s29
      %p610 = scmp.lt.s32.totalorder %s609, 3
      %s611 = scalar_select %p610, %s609, 3
      %s612 = smul.addr %s611, 2
      %s613 = smul.addr %s612, 2
      %s614 = scalar_lea.vmem %s2, %s613
      %s615 = smul.u32 2, %s29
      %s616 = smul.u32 2, %s29
      %p617 = scmp.lt.s32.totalorder %s616, 3
      %s618 = scalar_select %p617, %s616, 3
      %s619 = smul.addr %s618, 8
      %s620 = scalar_lea.vmem %s15, %s619
      %s621 = smul.u32 2, %s29
      %s622 = smul.u32 2, %s29
      %p623 = scmp.lt.s32.totalorder %s622, 3
      %s624 = scalar_select %p623, %s622, 3
      %s625 = smul.addr %s624, 2
      %s626 = smul.addr %s625, 8
      %s627 = scalar_lea.vmem %s16, %s626
      %s628 = smul.u32 2, %s29
      %s629 = smul.u32 2, %s29
      %p630 = scmp.lt.s32.totalorder %s629, 3
      %s631 = scalar_select %p630, %s629, 3
      %s632 = smul.addr %s631, 2
      %s633 = smul.addr %s632, 2
      %s634 = scalar_lea.vmem %s17, %s633
      %s635 = smul.u32 2, %s29
      %v636 = vld [vmem:[%s600] sm:$0xff]
      %v637 = vld [vmem:[%s600 + $0x8] sm:$0xff]
      %v638 = vld [vmem:[%s600 + $0x10] sm:$0xff]
      %s639 = scalar_lea.vmem %s600, 24
      %v640 = vld [vmem:[%s639] sm:$0xff]
      %v641 = vld [vmem:[%s639 + $0x8] sm:$0xff]
      %v642 = vld [vmem:[%s639 + $0x10] sm:$0xff]
      %646 = vrot.lane.b32.xlu0 %v636, 127
      %v647 = vpop.permute.xlu0 %646
      %648 = vrot.lane.b32.xlu0 %v637, 127
      %v649 = vpop.permute.xlu0 %648
      %650 = vrot.lane.b32.xlu0 %v638, 127
      %v651 = vpop.permute.xlu0 %650
      %vm652 = vcmask 1039360
      %v653 = vsel %vm652, %v647, %v649
      %v654 = vsel %vm652, %v649, %v651
      %657 = vrot.lane.b32.xlu0 %v636, 126
      %v658 = vpop.permute.xlu0 %657
      %659 = vrot.lane.b32.xlu0 %v637, 126
      %v660 = vpop.permute.xlu0 %659
      %661 = vrot.lane.b32.xlu0 %v638, 126
      %v662 = vpop.permute.xlu0 %661
      %vm663 = vcmask 1031168
      %v664 = vsel %vm663, %v658, %v660
      %v665 = vsel %vm663, %v660, %v662
      %668 = vrot.lane.b32.xlu0 %v636, 125
      %v669 = vpop.permute.xlu0 %668
      %670 = vrot.lane.b32.xlu0 %v637, 125
      %v671 = vpop.permute.xlu0 %670
      %672 = vrot.lane.b32.xlu0 %v638, 125
      %v673 = vpop.permute.xlu0 %672
      %vm674 = vcmask 1022976
      %v675 = vsel %vm674, %v669, %v671
      %v676 = vsel %vm674, %v671, %v673
      %679 = vrot.lane.b32.xlu0 %v636, 124
      %v680 = vpop.permute.xlu0 %679
      %681 = vrot.lane.b32.xlu0 %v637, 124
      %v682 = vpop.permute.xlu0 %681
      %683 = vrot.lane.b32.xlu0 %v638, 124
      %v684 = vpop.permute.xlu0 %683
      %vm685 = vcmask 1014784
      %v686 = vsel %vm685, %v680, %v682
      %v687 = vsel %vm685, %v682, %v684
      %690 = vrot.lane.b32.xlu0 %v636, 123
      %v691 = vpop.permute.xlu0 %690
      %692 = vrot.lane.b32.xlu0 %v637, 123
      %v693 = vpop.permute.xlu0 %692
      %694 = vrot.lane.b32.xlu0 %v638, 123
      %v695 = vpop.permute.xlu0 %694
      %vm696 = vcmask 1006592
      %v697 = vsel %vm696, %v691, %v693
      %v698 = vsel %vm696, %v693, %v695
      %701 = vrot.lane.b32.xlu0 %v636, 122
      %v702 = vpop.permute.xlu0 %701
      %703 = vrot.lane.b32.xlu0 %v637, 122
      %v704 = vpop.permute.xlu0 %703
      %705 = vrot.lane.b32.xlu0 %v638, 122
      %v706 = vpop.permute.xlu0 %705
      %vm707 = vcmask 998400
      %v708 = vsel %vm707, %v702, %v704
      %v709 = vsel %vm707, %v704, %v706
      %715 = vrot.lane.b32.xlu0 %v640, 127
      %v716 = vpop.permute.xlu0 %715
      %717 = vrot.lane.b32.xlu0 %v641, 127
      %v718 = vpop.permute.xlu0 %717
      %719 = vrot.lane.b32.xlu0 %v642, 127
      %v720 = vpop.permute.xlu0 %719
      %v721 = vsel %vm652, %v716, %v718
      %v722 = vsel %vm652, %v718, %v720
      %725 = vrot.lane.b32.xlu0 %v640, 126
      %v726 = vpop.permute.xlu0 %725
      %727 = vrot.lane.b32.xlu0 %v641, 126
      %v728 = vpop.permute.xlu0 %727
      %729 = vrot.lane.b32.xlu0 %v642, 126
      %v730 = vpop.permute.xlu0 %729
      %v731 = vsel %vm663, %v726, %v728
      %v732 = vsel %vm663, %v728, %v730
      %735 = vrot.lane.b32.xlu0 %v640, 125
      %v736 = vpop.permute.xlu0 %735
      %737 = vrot.lane.b32.xlu0 %v641, 125
      %v738 = vpop.permute.xlu0 %737
      %739 = vrot.lane.b32.xlu0 %v642, 125
      %v740 = vpop.permute.xlu0 %739
      %v741 = vsel %vm674, %v736, %v738
      %v742 = vsel %vm674, %v738, %v740
      %745 = vrot.lane.b32.xlu0 %v640, 124
      %v746 = vpop.permute.xlu0 %745
      %747 = vrot.lane.b32.xlu0 %v641, 124
      %v748 = vpop.permute.xlu0 %747
      %749 = vrot.lane.b32.xlu0 %v642, 124
      %v750 = vpop.permute.xlu0 %749
      %v751 = vsel %vm685, %v746, %v748
      %v752 = vsel %vm685, %v748, %v750
      %755 = vrot.lane.b32.xlu0 %v640, 123
      %v756 = vpop.permute.xlu0 %755
      %757 = vrot.lane.b32.xlu0 %v641, 123
      %v758 = vpop.permute.xlu0 %757
      %759 = vrot.lane.b32.xlu0 %v642, 123
      %v760 = vpop.permute.xlu0 %759
      %v761 = vsel %vm696, %v756, %v758
      %v762 = vsel %vm696, %v758, %v760
      %765 = vrot.lane.b32.xlu0 %v640, 122
      %v766 = vpop.permute.xlu0 %765
      %767 = vrot.lane.b32.xlu0 %v641, 122
      %v768 = vpop.permute.xlu0 %767
      %769 = vrot.lane.b32.xlu0 %v642, 122
      %v770 = vpop.permute.xlu0 %769
      %v771 = vsel %vm707, %v766, %v768
      %v772 = vsel %vm707, %v768, %v770
      %v775 = vld [vmem:[%s3] sm:$0xff]
      %776 = vrot.lane.b32.xlu0 %v636, 112
      %v777 = vpop.permute.xlu0 %776
      %778 = vrot.lane.b32.xlu0 %v637, 112
      %v779 = vpop.permute.xlu0 %778
      %780 = vrot.lane.b32.xlu0 %v638, 112
      %v781 = vpop.permute.xlu0 %780
      %782 = vrot.lane.b32.xlu0 %v653, 112
      %v783 = vpop.permute.xlu0 %782
      %784 = vrot.lane.b32.xlu0 %v654, 112
      %v785 = vpop.permute.xlu0 %784
      %786 = vrot.lane.b32.xlu0 %v651, 112
      %v787 = vpop.permute.xlu0 %786
      %788 = vrot.lane.b32.xlu0 %v664, 112
      %v789 = vpop.permute.xlu0 %788
      %790 = vrot.lane.b32.xlu0 %v665, 112
      %v791 = vpop.permute.xlu0 %790
      %792 = vrot.lane.b32.xlu0 %v662, 112
      %v793 = vpop.permute.xlu0 %792
      %794 = vrot.lane.b32.xlu0 %v675, 112
      %v795 = vpop.permute.xlu0 %794
      %796 = vrot.lane.b32.xlu0 %v676, 112
      %v797 = vpop.permute.xlu0 %796
      %798 = vrot.lane.b32.xlu0 %v673, 112
      %v799 = vpop.permute.xlu0 %798
      %800 = vrot.lane.b32.xlu0 %v686, 112
      %v801 = vpop.permute.xlu0 %800
      %802 = vrot.lane.b32.xlu0 %v687, 112
      %v803 = vpop.permute.xlu0 %802
      %804 = vrot.lane.b32.xlu0 %v684, 112
      %v805 = vpop.permute.xlu0 %804
      %806 = vrot.lane.b32.xlu0 %v697, 112
      %v807 = vpop.permute.xlu0 %806
      %808 = vrot.lane.b32.xlu0 %v698, 112
      %v809 = vpop.permute.xlu0 %808
      %810 = vrot.lane.b32.xlu0 %v695, 112
      %v811 = vpop.permute.xlu0 %810
      %812 = vrot.lane.b32.xlu0 %v708, 112
      %v813 = vpop.permute.xlu0 %812
      %814 = vrot.lane.b32.xlu0 %v709, 112
      %v815 = vpop.permute.xlu0 %814
      %816 = vrot.lane.b32.xlu0 %v706, 112
      %v817 = vpop.permute.xlu0 %816
      %vm818 = vcmask 916480
      %v819 = vsel %vm818, %v777, %v779
      %v820 = vsel %vm818, %v779, %v781
      %v821 = vsel %vm818, %v783, %v785
      %v822 = vsel %vm818, %v785, %v787
      %v823 = vsel %vm818, %v789, %v791
      %v824 = vsel %vm818, %v791, %v793
      %v825 = vsel %vm818, %v795, %v797
      %v826 = vsel %vm818, %v797, %v799
      %v827 = vsel %vm818, %v801, %v803
      %v828 = vsel %vm818, %v803, %v805
      %v829 = vsel %vm818, %v807, %v809
      %v830 = vsel %vm818, %v809, %v811
      %v831 = vsel %vm818, %v813, %v815
      %v832 = vsel %vm818, %v815, %v817
      %847 = vrot.lane.b32.xlu0 %v640, 112
      %v848 = vpop.permute.xlu0 %847
      %849 = vrot.lane.b32.xlu0 %v641, 112
      %v850 = vpop.permute.xlu0 %849
      %851 = vrot.lane.b32.xlu0 %v642, 112
      %v852 = vpop.permute.xlu0 %851
      %853 = vrot.lane.b32.xlu0 %v721, 112
      %v854 = vpop.permute.xlu0 %853
      %855 = vrot.lane.b32.xlu0 %v722, 112
      %v856 = vpop.permute.xlu0 %855
      %857 = vrot.lane.b32.xlu0 %v720, 112
      %v858 = vpop.permute.xlu0 %857
      %859 = vrot.lane.b32.xlu0 %v731, 112
      %v860 = vpop.permute.xlu0 %859
      %861 = vrot.lane.b32.xlu0 %v732, 112
      %v862 = vpop.permute.xlu0 %861
      %863 = vrot.lane.b32.xlu0 %v730, 112
      %v864 = vpop.permute.xlu0 %863
      %865 = vrot.lane.b32.xlu0 %v741, 112
      %v866 = vpop.permute.xlu0 %865
      %867 = vrot.lane.b32.xlu0 %v742, 112
      %v868 = vpop.permute.xlu0 %867
      %869 = vrot.lane.b32.xlu0 %v740, 112
      %v870 = vpop.permute.xlu0 %869
      %871 = vrot.lane.b32.xlu0 %v751, 112
      %v872 = vpop.permute.xlu0 %871
      %873 = vrot.lane.b32.xlu0 %v752, 112
      %v874 = vpop.permute.xlu0 %873
      %875 = vrot.lane.b32.xlu0 %v750, 112
      %v876 = vpop.permute.xlu0 %875
      %877 = vrot.lane.b32.xlu0 %v761, 112
      %v878 = vpop.permute.xlu0 %877
      %879 = vrot.lane.b32.xlu0 %v762, 112
      %v880 = vpop.permute.xlu0 %879
      %881 = vrot.lane.b32.xlu0 %v760, 112
      %v882 = vpop.permute.xlu0 %881
      %883 = vrot.lane.b32.xlu0 %v771, 112
      %v884 = vpop.permute.xlu0 %883
      %885 = vrot.lane.b32.xlu0 %v772, 112
      %v886 = vpop.permute.xlu0 %885
      %887 = vrot.lane.b32.xlu0 %v770, 112
      %v888 = vpop.permute.xlu0 %887
      %v889 = vsel %vm818, %v848, %v850
      %v890 = vsel %vm818, %v850, %v852
      %v891 = vsel %vm818, %v854, %v856
      %v892 = vsel %vm818, %v856, %v858
      %v893 = vsel %vm818, %v860, %v862
      %v894 = vsel %vm818, %v862, %v864
      %v895 = vsel %vm818, %v866, %v868
      %v896 = vsel %vm818, %v868, %v870
      %v897 = vsel %vm818, %v872, %v874
      %v898 = vsel %vm818, %v874, %v876
      %v899 = vsel %vm818, %v878, %v880
      %v900 = vsel %vm818, %v880, %v882
      %v901 = vsel %vm818, %v884, %v886
      %v902 = vsel %vm818, %v886, %v888
      %s917 = scalar_lea.vmem %s3, 8
      %v918 = vld [vmem:[%s917] sm:$0xff]
      %vm919 = vcmask 457728
      %v921 = vsel %vm919, %v918, 0
      %923 = vmatpush.msra.mxu0 0.0
      %924 = vmatpush.msra.mxu0 0.0
      %925 = vmatpush.msra.mxu0 0.0
      %926 = vmatpush.msra.mxu0 0.0
      %927 = vmatpush.msra.mxu0 0.0
      %928 = vmatpush.msra.mxu0 0.0
      %929 = vmatpush.msra.mxu0 0.0
      %930 = vmatpush.msra.mxu0 0.0
      %931 = vmatpush.msra.mxu0 0.0
      %932 = vmatpush.msra.mxu0 %v831
      %933 = vmatpush.msra.mxu0 %v829
      %934 = vmatpush.msra.mxu0 %v827
      %935 = vmatpush.msra.mxu0 %v825
      %936 = vmatpush.msra.mxu0 %v823
      %937 = vmatpush.msra.mxu0 %v821
      %938 = vmatpush.msra.mxu0 %v819
      %939 = vmatmul.f32.gmra.mxu0 %v921
      %v940 = vpop.f32.mrf.mxu0
      %v941 = vadd.f32 0.0, %v940
      %942 = vdwg.mxu0
      %943 = vmatpush.msra.mxu0 0.0
      %944 = vmatpush.msra.mxu0 0.0
      %945 = vmatpush.msra.mxu0 0.0
      %946 = vmatpush.msra.mxu0 0.0
      %947 = vmatpush.msra.mxu0 0.0
      %948 = vmatpush.msra.mxu0 0.0
      %949 = vmatpush.msra.mxu0 0.0
      %950 = vmatpush.msra.mxu0 0.0
      %951 = vmatpush.msra.mxu0 0.0
      %952 = vmatpush.msra.mxu0 %v832
      %953 = vmatpush.msra.mxu0 %v830
      %954 = vmatpush.msra.mxu0 %v828
      %955 = vmatpush.msra.mxu0 %v826
      %956 = vmatpush.msra.mxu0 %v824
      %957 = vmatpush.msra.mxu0 %v822
      %958 = vmatpush.msra.mxu0 %v820
      %959 = vmatmul.f32.gmra.mxu0 %v921
      %v960 = vpop.f32.mrf.mxu0
      %v961 = vadd.f32 0.0, %v960
      %962 = vdwg.mxu0
      %963 = vmatpush.msra.mxu0 0.0
      %964 = vmatpush.msra.mxu0 0.0
      %965 = vmatpush.msra.mxu0 0.0
      %966 = vmatpush.msra.mxu0 0.0
      %967 = vmatpush.msra.mxu0 0.0
      %968 = vmatpush.msra.mxu0 0.0
      %969 = vmatpush.msra.mxu0 0.0
      %970 = vmatpush.msra.mxu0 0.0
      %971 = vmatpush.msra.mxu0 0.0
      %972 = vmatpush.msra.mxu0 %v901
      %973 = vmatpush.msra.mxu0 %v899
      %974 = vmatpush.msra.mxu0 %v897
      %975 = vmatpush.msra.mxu0 %v895
      %976 = vmatpush.msra.mxu0 %v893
      %977 = vmatpush.msra.mxu0 %v891
      %978 = vmatpush.msra.mxu0 %v889
      %979 = vmatmul.f32.gmra.mxu0 %v921
      %v980 = vpop.f32.mrf.mxu0
      %v981 = vadd.f32 0.0, %v980
      %982 = vdwg.mxu0
      %983 = vmatpush.msra.mxu0 0.0
      %984 = vmatpush.msra.mxu0 0.0
      %985 = vmatpush.msra.mxu0 0.0
      %986 = vmatpush.msra.mxu0 0.0
      %987 = vmatpush.msra.mxu0 0.0
      %988 = vmatpush.msra.mxu0 0.0
      %989 = vmatpush.msra.mxu0 0.0
      %990 = vmatpush.msra.mxu0 0.0
      %991 = vmatpush.msra.mxu0 0.0
      %992 = vmatpush.msra.mxu0 %v902
      %993 = vmatpush.msra.mxu0 %v900
      %994 = vmatpush.msra.mxu0 %v898
      %995 = vmatpush.msra.mxu0 %v896
      %996 = vmatpush.msra.mxu0 %v894
      %997 = vmatpush.msra.mxu0 %v892
      %998 = vmatpush.msra.mxu0 %v890
      %999 = vmatmul.f32.gmra.mxu0 %v921
      %v1000 = vpop.f32.mrf.mxu0
      %v1001 = vadd.f32 0.0, %v1000
      %1002 = vdwg.mxu0
      %v1004 = vsel %vm919, %v775, 0
      %1006 = vmatpush.msra.mxu0 0.0
      %1007 = vmatpush.msra.mxu0 0.0
      %1008 = vmatpush.msra.mxu0 0.0
      %1009 = vmatpush.msra.mxu0 0.0
      %1010 = vmatpush.msra.mxu0 0.0
      %1011 = vmatpush.msra.mxu0 0.0
      %1012 = vmatpush.msra.mxu0 0.0
      %1013 = vmatpush.msra.mxu0 0.0
      %1014 = vmatpush.msra.mxu0 0.0
      %1015 = vmatpush.msra.mxu0 %v708
      %1016 = vmatpush.msra.mxu0 %v697
      %1017 = vmatpush.msra.mxu0 %v686
      %1018 = vmatpush.msra.mxu0 %v675
      %1019 = vmatpush.msra.mxu0 %v664
      %1020 = vmatpush.msra.mxu0 %v653
      %1021 = vmatpush.msra.mxu0 %v636
      %1022 = vmatmul.f32.gmra.mxu0 %v1004
      %v1023 = vpop.f32.mrf.mxu0
      %v1024 = vadd.f32 %v941, %v1023
      %1025 = vdwg.mxu0
      %1026 = vmatpush.msra.mxu0 0.0
      %1027 = vmatpush.msra.mxu0 0.0
      %1028 = vmatpush.msra.mxu0 0.0
      %1029 = vmatpush.msra.mxu0 0.0
      %1030 = vmatpush.msra.mxu0 0.0
      %1031 = vmatpush.msra.mxu0 0.0
      %1032 = vmatpush.msra.mxu0 0.0
      %1033 = vmatpush.msra.mxu0 0.0
      %1034 = vmatpush.msra.mxu0 0.0
      %1035 = vmatpush.msra.mxu0 %v709
      %1036 = vmatpush.msra.mxu0 %v698
      %1037 = vmatpush.msra.mxu0 %v687
      %1038 = vmatpush.msra.mxu0 %v676
      %1039 = vmatpush.msra.mxu0 %v665
      %1040 = vmatpush.msra.mxu0 %v654
      %1041 = vmatpush.msra.mxu0 %v637
      %1042 = vmatmul.f32.gmra.mxu0 %v1004
      %v1043 = vpop.f32.mrf.mxu0
      %v1044 = vadd.f32 %v961, %v1043
      %1045 = vdwg.mxu0
      %1046 = vmatpush.msra.mxu0 0.0
      %1047 = vmatpush.msra.mxu0 0.0
      %1048 = vmatpush.msra.mxu0 0.0
      %1049 = vmatpush.msra.mxu0 0.0
      %1050 = vmatpush.msra.mxu0 0.0
      %1051 = vmatpush.msra.mxu0 0.0
      %1052 = vmatpush.msra.mxu0 0.0
      %1053 = vmatpush.msra.mxu0 0.0
      %1054 = vmatpush.msra.mxu0 0.0
      %1055 = vmatpush.msra.mxu0 %v771
      %1056 = vmatpush.msra.mxu0 %v761
      %1057 = vmatpush.msra.mxu0 %v751
      %1058 = vmatpush.msra.mxu0 %v741
      %1059 = vmatpush.msra.mxu0 %v731
      %1060 = vmatpush.msra.mxu0 %v721
      %1061 = vmatpush.msra.mxu0 %v640
      %1062 = vmatmul.f32.gmra.mxu0 %v1004
      %v1063 = vpop.f32.mrf.mxu0
      %v1064 = vadd.f32 %v981, %v1063
      %1065 = vdwg.mxu0
      %1066 = vmatpush.msra.mxu0 0.0
      %1067 = vmatpush.msra.mxu0 0.0
      %1068 = vmatpush.msra.mxu0 0.0
      %1069 = vmatpush.msra.mxu0 0.0
      %1070 = vmatpush.msra.mxu0 0.0
      %1071 = vmatpush.msra.mxu0 0.0
      %1072 = vmatpush.msra.mxu0 0.0
      %1073 = vmatpush.msra.mxu0 0.0
      %1074 = vmatpush.msra.mxu0 0.0
      %1075 = vmatpush.msra.mxu0 %v772
      %1076 = vmatpush.msra.mxu0 %v762
      %1077 = vmatpush.msra.mxu0 %v752
      %1078 = vmatpush.msra.mxu0 %v742
      %1079 = vmatpush.msra.mxu0 %v732
      %1080 = vmatpush.msra.mxu0 %v722
      %1081 = vmatpush.msra.mxu0 %v641
      %1082 = vmatmul.f32.gmra.mxu0 %v1004
      %v1083 = vpop.f32.mrf.mxu0
      %v1084 = vadd.f32 %v1001, %v1083
      %1085 = vdwg.mxu0
      %1086 = vrot.lane.b32.xlu0 %v636, 96
      %v1087 = vpop.permute.xlu0 %1086
      %1088 = vrot.lane.b32.xlu0 %v637, 96
      %v1089 = vpop.permute.xlu0 %1088
      %1090 = vrot.lane.b32.xlu0 %v638, 96
      %v1091 = vpop.permute.xlu0 %1090
      %1092 = vrot.lane.b32.xlu0 %v653, 96
      %v1093 = vpop.permute.xlu0 %1092
      %1094 = vrot.lane.b32.xlu0 %v654, 96
      %v1095 = vpop.permute.xlu0 %1094
      %1096 = vrot.lane.b32.xlu0 %v651, 96
      %v1097 = vpop.permute.xlu0 %1096
      %1098 = vrot.lane.b32.xlu0 %v664, 96
      %v1099 = vpop.permute.xlu0 %1098
      %1100 = vrot.lane.b32.xlu0 %v665, 96
      %v1101 = vpop.permute.xlu0 %1100
      %1102 = vrot.lane.b32.xlu0 %v662, 96
      %v1103 = vpop.permute.xlu0 %1102
      %1104 = vrot.lane.b32.xlu0 %v675, 96
      %v1105 = vpop.permute.xlu0 %1104
      %1106 = vrot.lane.b32.xlu0 %v676, 96
      %v1107 = vpop.permute.xlu0 %1106
      %1108 = vrot.lane.b32.xlu0 %v673, 96
      %v1109 = vpop.permute.xlu0 %1108
      %1110 = vrot.lane.b32.xlu0 %v686, 96
      %v1111 = vpop.permute.xlu0 %1110
      %1112 = vrot.lane.b32.xlu0 %v687, 96
      %v1113 = vpop.permute.xlu0 %1112
      %1114 = vrot.lane.b32.xlu0 %v684, 96
      %v1115 = vpop.permute.xlu0 %1114
      %1116 = vrot.lane.b32.xlu0 %v697, 96
      %v1117 = vpop.permute.xlu0 %1116
      %1118 = vrot.lane.b32.xlu0 %v698, 96
      %v1119 = vpop.permute.xlu0 %1118
      %1120 = vrot.lane.b32.xlu0 %v695, 96
      %v1121 = vpop.permute.xlu0 %1120
      %1122 = vrot.lane.b32.xlu0 %v708, 96
      %v1123 = vpop.permute.xlu0 %1122
      %1124 = vrot.lane.b32.xlu0 %v709, 96
      %v1125 = vpop.permute.xlu0 %1124
      %1126 = vrot.lane.b32.xlu0 %v706, 96
      %v1127 = vpop.permute.xlu0 %1126
      %vm1128 = vcmask 785408
      %v1129 = vsel %vm1128, %v1087, %v1089
      %v1130 = vsel %vm1128, %v1089, %v1091
      %v1131 = vsel %vm1128, %v1093, %v1095
      %v1132 = vsel %vm1128, %v1095, %v1097
      %v1133 = vsel %vm1128, %v1099, %v1101
      %v1134 = vsel %vm1128, %v1101, %v1103
      %v1135 = vsel %vm1128, %v1105, %v1107
      %v1136 = vsel %vm1128, %v1107, %v1109
      %v1137 = vsel %vm1128, %v1111, %v1113
      %v1138 = vsel %vm1128, %v1113, %v1115
      %v1139 = vsel %vm1128, %v1117, %v1119
      %v1140 = vsel %vm1128, %v1119, %v1121
      %v1141 = vsel %vm1128, %v1123, %v1125
      %v1142 = vsel %vm1128, %v1125, %v1127
      %1157 = vrot.lane.b32.xlu0 %v640, 96
      %v1158 = vpop.permute.xlu0 %1157
      %1159 = vrot.lane.b32.xlu0 %v641, 96
      %v1160 = vpop.permute.xlu0 %1159
      %1161 = vrot.lane.b32.xlu0 %v642, 96
      %v1162 = vpop.permute.xlu0 %1161
      %1163 = vrot.lane.b32.xlu0 %v721, 96
      %v1164 = vpop.permute.xlu0 %1163
      %1165 = vrot.lane.b32.xlu0 %v722, 96
      %v1166 = vpop.permute.xlu0 %1165
      %1167 = vrot.lane.b32.xlu0 %v720, 96
      %v1168 = vpop.permute.xlu0 %1167
      %1169 = vrot.lane.b32.xlu0 %v731, 96
      %v1170 = vpop.permute.xlu0 %1169
      %1171 = vrot.lane.b32.xlu0 %v732, 96
      %v1172 = vpop.permute.xlu0 %1171
      %1173 = vrot.lane.b32.xlu0 %v730, 96
      %v1174 = vpop.permute.xlu0 %1173
      %1175 = vrot.lane.b32.xlu0 %v741, 96
      %v1176 = vpop.permute.xlu0 %1175
      %1177 = vrot.lane.b32.xlu0 %v742, 96
      %v1178 = vpop.permute.xlu0 %1177
      %1179 = vrot.lane.b32.xlu0 %v740, 96
      %v1180 = vpop.permute.xlu0 %1179
      %1181 = vrot.lane.b32.xlu0 %v751, 96
      %v1182 = vpop.permute.xlu0 %1181
      %1183 = vrot.lane.b32.xlu0 %v752, 96
      %v1184 = vpop.permute.xlu0 %1183
      %1185 = vrot.lane.b32.xlu0 %v750, 96
      %v1186 = vpop.permute.xlu0 %1185
      %1187 = vrot.lane.b32.xlu0 %v761, 96
      %v1188 = vpop.permute.xlu0 %1187
      %1189 = vrot.lane.b32.xlu0 %v762, 96
      %v1190 = vpop.permute.xlu0 %1189
      %1191 = vrot.lane.b32.xlu0 %v760, 96
      %v1192 = vpop.permute.xlu0 %1191
      %1193 = vrot.lane.b32.xlu0 %v771, 96
      %v1194 = vpop.permute.xlu0 %1193
      %1195 = vrot.lane.b32.xlu0 %v772, 96
      %v1196 = vpop.permute.xlu0 %1195
      %1197 = vrot.lane.b32.xlu0 %v770, 96
      %v1198 = vpop.permute.xlu0 %1197
      %v1199 = vsel %vm1128, %v1158, %v1160
      %v1200 = vsel %vm1128, %v1160, %v1162
      %v1201 = vsel %vm1128, %v1164, %v1166
      %v1202 = vsel %vm1128, %v1166, %v1168
      %v1203 = vsel %vm1128, %v1170, %v1172
      %v1204 = vsel %vm1128, %v1172, %v1174
      %v1205 = vsel %vm1128, %v1176, %v1178
      %v1206 = vsel %vm1128, %v1178, %v1180
      %v1207 = vsel %vm1128, %v1182, %v1184
      %v1208 = vsel %vm1128, %v1184, %v1186
      %v1209 = vsel %vm1128, %v1188, %v1190
      %v1210 = vsel %vm1128, %v1190, %v1192
      %v1211 = vsel %vm1128, %v1194, %v1196
      %v1212 = vsel %vm1128, %v1196, %v1198
      %s1227 = scalar_lea.vmem %s3, 16
      %v1228 = vld [vmem:[%s1227] sm:$0xff]
      %v1230 = vsel %vm919, %v1228, 0
      %1232 = vmatpush.msra.mxu0 0.0
      %1233 = vmatpush.msra.mxu0 0.0
      %1234 = vmatpush.msra.mxu0 0.0
      %1235 = vmatpush.msra.mxu0 0.0
      %1236 = vmatpush.msra.mxu0 0.0
      %1237 = vmatpush.msra.mxu0 0.0
      %1238 = vmatpush.msra.mxu0 0.0
      %1239 = vmatpush.msra.mxu0 0.0
      %1240 = vmatpush.msra.mxu0 0.0
      %1241 = vmatpush.msra.mxu0 %v1141
      %1242 = vmatpush.msra.mxu0 %v1139
      %1243 = vmatpush.msra.mxu0 %v1137
      %1244 = vmatpush.msra.mxu0 %v1135
      %1245 = vmatpush.msra.mxu0 %v1133
      %1246 = vmatpush.msra.mxu0 %v1131
      %1247 = vmatpush.msra.mxu0 %v1129
      %1248 = vmatmul.f32.gmra.mxu0 %v1230
      %v1249 = vpop.f32.mrf.mxu0
      %v1250 = vadd.f32 0.0, %v1249
      %1251 = vdwg.mxu0
      %1252 = vmatpush.msra.mxu0 0.0
      %1253 = vmatpush.msra.mxu0 0.0
      %1254 = vmatpush.msra.mxu0 0.0
      %1255 = vmatpush.msra.mxu0 0.0
      %1256 = vmatpush.msra.mxu0 0.0
      %1257 = vmatpush.msra.mxu0 0.0
      %1258 = vmatpush.msra.mxu0 0.0
      %1259 = vmatpush.msra.mxu0 0.0
      %1260 = vmatpush.msra.mxu0 0.0
      %1261 = vmatpush.msra.mxu0 %v1142
      %1262 = vmatpush.msra.mxu0 %v1140
      %1263 = vmatpush.msra.mxu0 %v1138
      %1264 = vmatpush.msra.mxu0 %v1136
      %1265 = vmatpush.msra.mxu0 %v1134
      %1266 = vmatpush.msra.mxu0 %v1132
      %1267 = vmatpush.msra.mxu0 %v1130
      %1268 = vmatmul.f32.gmra.mxu0 %v1230
      %v1269 = vpop.f32.mrf.mxu0
      %v1270 = vadd.f32 0.0, %v1269
      %1271 = vdwg.mxu0
      %1272 = vmatpush.msra.mxu0 0.0
      %1273 = vmatpush.msra.mxu0 0.0
      %1274 = vmatpush.msra.mxu0 0.0
      %1275 = vmatpush.msra.mxu0 0.0
      %1276 = vmatpush.msra.mxu0 0.0
      %1277 = vmatpush.msra.mxu0 0.0
      %1278 = vmatpush.msra.mxu0 0.0
      %1279 = vmatpush.msra.mxu0 0.0
      %1280 = vmatpush.msra.mxu0 0.0
      %1281 = vmatpush.msra.mxu0 %v1211
      %1282 = vmatpush.msra.mxu0 %v1209
      %1283 = vmatpush.msra.mxu0 %v1207
      %1284 = vmatpush.msra.mxu0 %v1205
      %1285 = vmatpush.msra.mxu0 %v1203
      %1286 = vmatpush.msra.mxu0 %v1201
      %1287 = vmatpush.msra.mxu0 %v1199
      %1288 = vmatmul.f32.gmra.mxu0 %v1230
      %v1289 = vpop.f32.mrf.mxu0
      %v1290 = vadd.f32 0.0, %v1289
      %1291 = vdwg.mxu0
      %1292 = vmatpush.msra.mxu0 0.0
      %1293 = vmatpush.msra.mxu0 0.0
      %1294 = vmatpush.msra.mxu0 0.0
      %1295 = vmatpush.msra.mxu0 0.0
      %1296 = vmatpush.msra.mxu0 0.0
      %1297 = vmatpush.msra.mxu0 0.0
      %1298 = vmatpush.msra.mxu0 0.0
      %1299 = vmatpush.msra.mxu0 0.0
      %1300 = vmatpush.msra.mxu0 0.0
      %1301 = vmatpush.msra.mxu0 %v1212
      %1302 = vmatpush.msra.mxu0 %v1210
      %1303 = vmatpush.msra.mxu0 %v1208
      %1304 = vmatpush.msra.mxu0 %v1206
      %1305 = vmatpush.msra.mxu0 %v1204
      %1306 = vmatpush.msra.mxu0 %v1202
      %1307 = vmatpush.msra.mxu0 %v1200
      %1308 = vmatmul.f32.gmra.mxu0 %v1230
      %v1309 = vpop.f32.mrf.mxu0
      %v1310 = vadd.f32 0.0, %v1309
      %1311 = vdwg.mxu0
      %v1312 = vadd.f32 %v1024, %v1250
      %v1313 = vadd.f32 %v1044, %v1270
      %v1314 = vadd.f32 %v1064, %v1290
      %v1315 = vadd.f32 %v1084, %v1310
      %1316 = vrot.lane.b32.xlu0 %v636, 80
      %v1317 = vpop.permute.xlu0 %1316
      %1318 = vrot.lane.b32.xlu0 %v637, 80
      %v1319 = vpop.permute.xlu0 %1318
      %1320 = vrot.lane.b32.xlu0 %v638, 80
      %v1321 = vpop.permute.xlu0 %1320
      %1322 = vrot.lane.b32.xlu0 %v653, 80
      %v1323 = vpop.permute.xlu0 %1322
      %1324 = vrot.lane.b32.xlu0 %v654, 80
      %v1325 = vpop.permute.xlu0 %1324
      %1326 = vrot.lane.b32.xlu0 %v651, 80
      %v1327 = vpop.permute.xlu0 %1326
      %1328 = vrot.lane.b32.xlu0 %v664, 80
      %v1329 = vpop.permute.xlu0 %1328
      %1330 = vrot.lane.b32.xlu0 %v665, 80
      %v1331 = vpop.permute.xlu0 %1330
      %1332 = vrot.lane.b32.xlu0 %v662, 80
      %v1333 = vpop.permute.xlu0 %1332
      %1334 = vrot.lane.b32.xlu0 %v675, 80
      %v1335 = vpop.permute.xlu0 %1334
      %1336 = vrot.lane.b32.xlu0 %v676, 80
      %v1337 = vpop.permute.xlu0 %1336
      %1338 = vrot.lane.b32.xlu0 %v673, 80
      %v1339 = vpop.permute.xlu0 %1338
      %1340 = vrot.lane.b32.xlu0 %v686, 80
      %v1341 = vpop.permute.xlu0 %1340
      %1342 = vrot.lane.b32.xlu0 %v687, 80
      %v1343 = vpop.permute.xlu0 %1342
      %1344 = vrot.lane.b32.xlu0 %v684, 80
      %v1345 = vpop.permute.xlu0 %1344
      %1346 = vrot.lane.b32.xlu0 %v697, 80
      %v1347 = vpop.permute.xlu0 %1346
      %1348 = vrot.lane.b32.xlu0 %v698, 80
      %v1349 = vpop.permute.xlu0 %1348
      %1350 = vrot.lane.b32.xlu0 %v695, 80
      %v1351 = vpop.permute.xlu0 %1350
      %1352 = vrot.lane.b32.xlu0 %v708, 80
      %v1353 = vpop.permute.xlu0 %1352
      %1354 = vrot.lane.b32.xlu0 %v709, 80
      %v1355 = vpop.permute.xlu0 %1354
      %1356 = vrot.lane.b32.xlu0 %v706, 80
      %v1357 = vpop.permute.xlu0 %1356
      %vm1358 = vcmask 654336
      %v1359 = vsel %vm1358, %v1317, %v1319
      %v1360 = vsel %vm1358, %v1319, %v1321
      %v1361 = vsel %vm1358, %v1323, %v1325
      %v1362 = vsel %vm1358, %v1325, %v1327
      %v1363 = vsel %vm1358, %v1329, %v1331
      %v1364 = vsel %vm1358, %v1331, %v1333
      %v1365 = vsel %vm1358, %v1335, %v1337
      %v1366 = vsel %vm1358, %v1337, %v1339
      %v1367 = vsel %vm1358, %v1341, %v1343
      %v1368 = vsel %vm1358, %v1343, %v1345
      %v1369 = vsel %vm1358, %v1347, %v1349
      %v1370 = vsel %vm1358, %v1349, %v1351
      %v1371 = vsel %vm1358, %v1353, %v1355
      %v1372 = vsel %vm1358, %v1355, %v1357
      %1387 = vrot.lane.b32.xlu0 %v640, 80
      %v1388 = vpop.permute.xlu0 %1387
      %1389 = vrot.lane.b32.xlu0 %v641, 80
      %v1390 = vpop.permute.xlu0 %1389
      %1391 = vrot.lane.b32.xlu0 %v642, 80
      %v1392 = vpop.permute.xlu0 %1391
      %1393 = vrot.lane.b32.xlu0 %v721, 80
      %v1394 = vpop.permute.xlu0 %1393
      %1395 = vrot.lane.b32.xlu0 %v722, 80
      %v1396 = vpop.permute.xlu0 %1395
      %1397 = vrot.lane.b32.xlu0 %v720, 80
      %v1398 = vpop.permute.xlu0 %1397
      %1399 = vrot.lane.b32.xlu0 %v731, 80
      %v1400 = vpop.permute.xlu0 %1399
      %1401 = vrot.lane.b32.xlu0 %v732, 80
      %v1402 = vpop.permute.xlu0 %1401
      %1403 = vrot.lane.b32.xlu0 %v730, 80
      %v1404 = vpop.permute.xlu0 %1403
      %1405 = vrot.lane.b32.xlu0 %v741, 80
      %v1406 = vpop.permute.xlu0 %1405
      %1407 = vrot.lane.b32.xlu0 %v742, 80
      %v1408 = vpop.permute.xlu0 %1407
      %1409 = vrot.lane.b32.xlu0 %v740, 80
      %v1410 = vpop.permute.xlu0 %1409
      %1411 = vrot.lane.b32.xlu0 %v751, 80
      %v1412 = vpop.permute.xlu0 %1411
      %1413 = vrot.lane.b32.xlu0 %v752, 80
      %v1414 = vpop.permute.xlu0 %1413
      %1415 = vrot.lane.b32.xlu0 %v750, 80
      %v1416 = vpop.permute.xlu0 %1415
      %1417 = vrot.lane.b32.xlu0 %v761, 80
      %v1418 = vpop.permute.xlu0 %1417
      %1419 = vrot.lane.b32.xlu0 %v762, 80
      %v1420 = vpop.permute.xlu0 %1419
      %1421 = vrot.lane.b32.xlu0 %v760, 80
      %v1422 = vpop.permute.xlu0 %1421
      %1423 = vrot.lane.b32.xlu0 %v771, 80
      %v1424 = vpop.permute.xlu0 %1423
      %1425 = vrot.lane.b32.xlu0 %v772, 80
      %v1426 = vpop.permute.xlu0 %1425
      %1427 = vrot.lane.b32.xlu0 %v770, 80
      %v1428 = vpop.permute.xlu0 %1427
      %v1429 = vsel %vm1358, %v1388, %v1390
      %v1430 = vsel %vm1358, %v1390, %v1392
      %v1431 = vsel %vm1358, %v1394, %v1396
      %v1432 = vsel %vm1358, %v1396, %v1398
      %v1433 = vsel %vm1358, %v1400, %v1402
      %v1434 = vsel %vm1358, %v1402, %v1404
      %v1435 = vsel %vm1358, %v1406, %v1408
      %v1436 = vsel %vm1358, %v1408, %v1410
      %v1437 = vsel %vm1358, %v1412, %v1414
      %v1438 = vsel %vm1358, %v1414, %v1416
      %v1439 = vsel %vm1358, %v1418, %v1420
      %v1440 = vsel %vm1358, %v1420, %v1422
      %v1441 = vsel %vm1358, %v1424, %v1426
      %v1442 = vsel %vm1358, %v1426, %v1428
      %s1457 = scalar_lea.vmem %s3, 24
      %v1458 = vld [vmem:[%s1457] sm:$0xff]
      %v1460 = vsel %vm919, %v1458, 0
      %1462 = vmatpush.msra.mxu0 0.0
      %1463 = vmatpush.msra.mxu0 0.0
      %1464 = vmatpush.msra.mxu0 0.0
      %1465 = vmatpush.msra.mxu0 0.0
      %1466 = vmatpush.msra.mxu0 0.0
      %1467 = vmatpush.msra.mxu0 0.0
      %1468 = vmatpush.msra.mxu0 0.0
      %1469 = vmatpush.msra.mxu0 0.0
      %1470 = vmatpush.msra.mxu0 0.0
      %1471 = vmatpush.msra.mxu0 %v1371
      %1472 = vmatpush.msra.mxu0 %v1369
      %1473 = vmatpush.msra.mxu0 %v1367
      %1474 = vmatpush.msra.mxu0 %v1365
      %1475 = vmatpush.msra.mxu0 %v1363
      %1476 = vmatpush.msra.mxu0 %v1361
      %1477 = vmatpush.msra.mxu0 %v1359
      %1478 = vmatmul.f32.gmra.mxu0 %v1460
      %v1479 = vpop.f32.mrf.mxu0
      %v1480 = vadd.f32 0.0, %v1479
      %1481 = vdwg.mxu0
      %1482 = vmatpush.msra.mxu0 0.0
      %1483 = vmatpush.msra.mxu0 0.0
      %1484 = vmatpush.msra.mxu0 0.0
      %1485 = vmatpush.msra.mxu0 0.0
      %1486 = vmatpush.msra.mxu0 0.0
      %1487 = vmatpush.msra.mxu0 0.0
      %1488 = vmatpush.msra.mxu0 0.0
      %1489 = vmatpush.msra.mxu0 0.0
      %1490 = vmatpush.msra.mxu0 0.0
      %1491 = vmatpush.msra.mxu0 %v1372
      %1492 = vmatpush.msra.mxu0 %v1370
      %1493 = vmatpush.msra.mxu0 %v1368
      %1494 = vmatpush.msra.mxu0 %v1366
      %1495 = vmatpush.msra.mxu0 %v1364
      %1496 = vmatpush.msra.mxu0 %v1362
      %1497 = vmatpush.msra.mxu0 %v1360
      %1498 = vmatmul.f32.gmra.mxu0 %v1460
      %v1499 = vpop.f32.mrf.mxu0
      %v1500 = vadd.f32 0.0, %v1499
      %1501 = vdwg.mxu0
      %1502 = vmatpush.msra.mxu0 0.0
      %1503 = vmatpush.msra.mxu0 0.0
      %1504 = vmatpush.msra.mxu0 0.0
      %1505 = vmatpush.msra.mxu0 0.0
      %1506 = vmatpush.msra.mxu0 0.0
      %1507 = vmatpush.msra.mxu0 0.0
      %1508 = vmatpush.msra.mxu0 0.0
      %1509 = vmatpush.msra.mxu0 0.0
      %1510 = vmatpush.msra.mxu0 0.0
      %1511 = vmatpush.msra.mxu0 %v1441
      %1512 = vmatpush.msra.mxu0 %v1439
      %1513 = vmatpush.msra.mxu0 %v1437
      %1514 = vmatpush.msra.mxu0 %v1435
      %1515 = vmatpush.msra.mxu0 %v1433
      %1516 = vmatpush.msra.mxu0 %v1431
      %1517 = vmatpush.msra.mxu0 %v1429
      %1518 = vmatmul.f32.gmra.mxu0 %v1460
      %v1519 = vpop.f32.mrf.mxu0
      %v1520 = vadd.f32 0.0, %v1519
      %1521 = vdwg.mxu0
      %1522 = vmatpush.msra.mxu0 0.0
      %1523 = vmatpush.msra.mxu0 0.0
      %1524 = vmatpush.msra.mxu0 0.0
      %1525 = vmatpush.msra.mxu0 0.0
      %1526 = vmatpush.msra.mxu0 0.0
      %1527 = vmatpush.msra.mxu0 0.0
      %1528 = vmatpush.msra.mxu0 0.0
      %1529 = vmatpush.msra.mxu0 0.0
      %1530 = vmatpush.msra.mxu0 0.0
      %1531 = vmatpush.msra.mxu0 %v1442
      %1532 = vmatpush.msra.mxu0 %v1440
      %1533 = vmatpush.msra.mxu0 %v1438
      %1534 = vmatpush.msra.mxu0 %v1436
      %1535 = vmatpush.msra.mxu0 %v1434
      %1536 = vmatpush.msra.mxu0 %v1432
      %1537 = vmatpush.msra.mxu0 %v1430
      %1538 = vmatmul.f32.gmra.mxu0 %v1460
      %v1539 = vpop.f32.mrf.mxu0
      %v1540 = vadd.f32 0.0, %v1539
      %1541 = vdwg.mxu0
      %v1542 = vadd.f32 %v1312, %v1480
      %v1543 = vadd.f32 %v1313, %v1500
      %v1544 = vadd.f32 %v1314, %v1520
      %v1545 = vadd.f32 %v1315, %v1540
      %1546 = vrot.lane.b32.xlu0 %v636, 64
      %v1547 = vpop.permute.xlu0 %1546
      %1548 = vrot.lane.b32.xlu0 %v637, 64
      %v1549 = vpop.permute.xlu0 %1548
      %1550 = vrot.lane.b32.xlu0 %v638, 64
      %v1551 = vpop.permute.xlu0 %1550
      %1552 = vrot.lane.b32.xlu0 %v653, 64
      %v1553 = vpop.permute.xlu0 %1552
      %1554 = vrot.lane.b32.xlu0 %v654, 64
      %v1555 = vpop.permute.xlu0 %1554
      %1556 = vrot.lane.b32.xlu0 %v651, 64
      %v1557 = vpop.permute.xlu0 %1556
      %1558 = vrot.lane.b32.xlu0 %v664, 64
      %v1559 = vpop.permute.xlu0 %1558
      %1560 = vrot.lane.b32.xlu0 %v665, 64
      %v1561 = vpop.permute.xlu0 %1560
      %1562 = vrot.lane.b32.xlu0 %v662, 64
      %v1563 = vpop.permute.xlu0 %1562
      %1564 = vrot.lane.b32.xlu0 %v675, 64
      %v1565 = vpop.permute.xlu0 %1564
      %1566 = vrot.lane.b32.xlu0 %v676, 64
      %v1567 = vpop.permute.xlu0 %1566
      %1568 = vrot.lane.b32.xlu0 %v673, 64
      %v1569 = vpop.permute.xlu0 %1568
      %1570 = vrot.lane.b32.xlu0 %v686, 64
      %v1571 = vpop.permute.xlu0 %1570
      %1572 = vrot.lane.b32.xlu0 %v687, 64
      %v1573 = vpop.permute.xlu0 %1572
      %1574 = vrot.lane.b32.xlu0 %v684, 64
      %v1575 = vpop.permute.xlu0 %1574
      %1576 = vrot.lane.b32.xlu0 %v697, 64
      %v1577 = vpop.permute.xlu0 %1576
      %1578 = vrot.lane.b32.xlu0 %v698, 64
      %v1579 = vpop.permute.xlu0 %1578
      %1580 = vrot.lane.b32.xlu0 %v695, 64
      %v1581 = vpop.permute.xlu0 %1580
      %1582 = vrot.lane.b32.xlu0 %v708, 64
      %v1583 = vpop.permute.xlu0 %1582
      %1584 = vrot.lane.b32.xlu0 %v709, 64
      %v1585 = vpop.permute.xlu0 %1584
      %1586 = vrot.lane.b32.xlu0 %v706, 64
      %v1587 = vpop.permute.xlu0 %1586
      %vm1588 = vcmask 523264
      %v1589 = vsel %vm1588, %v1547, %v1549
      %v1590 = vsel %vm1588, %v1549, %v1551
      %v1591 = vsel %vm1588, %v1553, %v1555
      %v1592 = vsel %vm1588, %v1555, %v1557
      %v1593 = vsel %vm1588, %v1559, %v1561
      %v1594 = vsel %vm1588, %v1561, %v1563
      %v1595 = vsel %vm1588, %v1565, %v1567
      %v1596 = vsel %vm1588, %v1567, %v1569
      %v1597 = vsel %vm1588, %v1571, %v1573
      %v1598 = vsel %vm1588, %v1573, %v1575
      %v1599 = vsel %vm1588, %v1577, %v1579
      %v1600 = vsel %vm1588, %v1579, %v1581
      %v1601 = vsel %vm1588, %v1583, %v1585
      %v1602 = vsel %vm1588, %v1585, %v1587
      %1617 = vrot.lane.b32.xlu0 %v640, 64
      %v1618 = vpop.permute.xlu0 %1617
      %1619 = vrot.lane.b32.xlu0 %v641, 64
      %v1620 = vpop.permute.xlu0 %1619
      %1621 = vrot.lane.b32.xlu0 %v642, 64
      %v1622 = vpop.permute.xlu0 %1621
      %1623 = vrot.lane.b32.xlu0 %v721, 64
      %v1624 = vpop.permute.xlu0 %1623
      %1625 = vrot.lane.b32.xlu0 %v722, 64
      %v1626 = vpop.permute.xlu0 %1625
      %1627 = vrot.lane.b32.xlu0 %v720, 64
      %v1628 = vpop.permute.xlu0 %1627
      %1629 = vrot.lane.b32.xlu0 %v731, 64
      %v1630 = vpop.permute.xlu0 %1629
      %1631 = vrot.lane.b32.xlu0 %v732, 64
      %v1632 = vpop.permute.xlu0 %1631
      %1633 = vrot.lane.b32.xlu0 %v730, 64
      %v1634 = vpop.permute.xlu0 %1633
      %1635 = vrot.lane.b32.xlu0 %v741, 64
      %v1636 = vpop.permute.xlu0 %1635
      %1637 = vrot.lane.b32.xlu0 %v742, 64
      %v1638 = vpop.permute.xlu0 %1637
      %1639 = vrot.lane.b32.xlu0 %v740, 64
      %v1640 = vpop.permute.xlu0 %1639
      %1641 = vrot.lane.b32.xlu0 %v751, 64
      %v1642 = vpop.permute.xlu0 %1641
      %1643 = vrot.lane.b32.xlu0 %v752, 64
      %v1644 = vpop.permute.xlu0 %1643
      %1645 = vrot.lane.b32.xlu0 %v750, 64
      %v1646 = vpop.permute.xlu0 %1645
      %1647 = vrot.lane.b32.xlu0 %v761, 64
      %v1648 = vpop.permute.xlu0 %1647
      %1649 = vrot.lane.b32.xlu0 %v762, 64
      %v1650 = vpop.permute.xlu0 %1649
      %1651 = vrot.lane.b32.xlu0 %v760, 64
      %v1652 = vpop.permute.xlu0 %1651
      %1653 = vrot.lane.b32.xlu0 %v771, 64
      %v1654 = vpop.permute.xlu0 %1653
      %1655 = vrot.lane.b32.xlu0 %v772, 64
      %v1656 = vpop.permute.xlu0 %1655
      %1657 = vrot.lane.b32.xlu0 %v770, 64
      %v1658 = vpop.permute.xlu0 %1657
      %v1659 = vsel %vm1588, %v1618, %v1620
      %v1660 = vsel %vm1588, %v1620, %v1622
      %v1661 = vsel %vm1588, %v1624, %v1626
      %v1662 = vsel %vm1588, %v1626, %v1628
      %v1663 = vsel %vm1588, %v1630, %v1632
      %v1664 = vsel %vm1588, %v1632, %v1634
      %v1665 = vsel %vm1588, %v1636, %v1638
      %v1666 = vsel %vm1588, %v1638, %v1640
      %v1667 = vsel %vm1588, %v1642, %v1644
      %v1668 = vsel %vm1588, %v1644, %v1646
      %v1669 = vsel %vm1588, %v1648, %v1650
      %v1670 = vsel %vm1588, %v1650, %v1652
      %v1671 = vsel %vm1588, %v1654, %v1656
      %v1672 = vsel %vm1588, %v1656, %v1658
      %s1687 = scalar_lea.vmem %s3, 32
      %v1688 = vld [vmem:[%s1687] sm:$0xff]
      %v1690 = vsel %vm919, %v1688, 0
      %1692 = vmatpush.msra.mxu0 0.0
      %1693 = vmatpush.msra.mxu0 0.0
      %1694 = vmatpush.msra.mxu0 0.0
      %1695 = vmatpush.msra.mxu0 0.0
      %1696 = vmatpush.msra.mxu0 0.0
      %1697 = vmatpush.msra.mxu0 0.0
      %1698 = vmatpush.msra.mxu0 0.0
      %1699 = vmatpush.msra.mxu0 0.0
      %1700 = vmatpush.msra.mxu0 0.0
      %1701 = vmatpush.msra.mxu0 %v1601
      %1702 = vmatpush.msra.mxu0 %v1599
      %1703 = vmatpush.msra.mxu0 %v1597
      %1704 = vmatpush.msra.mxu0 %v1595
      %1705 = vmatpush.msra.mxu0 %v1593
      %1706 = vmatpush.msra.mxu0 %v1591
      %1707 = vmatpush.msra.mxu0 %v1589
      %1708 = vmatmul.f32.gmra.mxu0 %v1690
      %v1709 = vpop.f32.mrf.mxu0
      %v1710 = vadd.f32 0.0, %v1709
      %1711 = vdwg.mxu0
      %1712 = vmatpush.msra.mxu0 0.0
      %1713 = vmatpush.msra.mxu0 0.0
      %1714 = vmatpush.msra.mxu0 0.0
      %1715 = vmatpush.msra.mxu0 0.0
      %1716 = vmatpush.msra.mxu0 0.0
      %1717 = vmatpush.msra.mxu0 0.0
      %1718 = vmatpush.msra.mxu0 0.0
      %1719 = vmatpush.msra.mxu0 0.0
      %1720 = vmatpush.msra.mxu0 0.0
      %1721 = vmatpush.msra.mxu0 %v1602
      %1722 = vmatpush.msra.mxu0 %v1600
      %1723 = vmatpush.msra.mxu0 %v1598
      %1724 = vmatpush.msra.mxu0 %v1596
      %1725 = vmatpush.msra.mxu0 %v1594
      %1726 = vmatpush.msra.mxu0 %v1592
      %1727 = vmatpush.msra.mxu0 %v1590
      %1728 = vmatmul.f32.gmra.mxu0 %v1690
      %v1729 = vpop.f32.mrf.mxu0
      %v1730 = vadd.f32 0.0, %v1729
      %1731 = vdwg.mxu0
      %1732 = vmatpush.msra.mxu0 0.0
      %1733 = vmatpush.msra.mxu0 0.0
      %1734 = vmatpush.msra.mxu0 0.0
      %1735 = vmatpush.msra.mxu0 0.0
      %1736 = vmatpush.msra.mxu0 0.0
      %1737 = vmatpush.msra.mxu0 0.0
      %1738 = vmatpush.msra.mxu0 0.0
      %1739 = vmatpush.msra.mxu0 0.0
      %1740 = vmatpush.msra.mxu0 0.0
      %1741 = vmatpush.msra.mxu0 %v1671
      %1742 = vmatpush.msra.mxu0 %v1669
      %1743 = vmatpush.msra.mxu0 %v1667
      %1744 = vmatpush.msra.mxu0 %v1665
      %1745 = vmatpush.msra.mxu0 %v1663
      %1746 = vmatpush.msra.mxu0 %v1661
      %1747 = vmatpush.msra.mxu0 %v1659
      %1748 = vmatmul.f32.gmra.mxu0 %v1690
      %v1749 = vpop.f32.mrf.mxu0
      %v1750 = vadd.f32 0.0, %v1749
      %1751 = vdwg.mxu0
      %1752 = vmatpush.msra.mxu0 0.0
      %1753 = vmatpush.msra.mxu0 0.0
      %1754 = vmatpush.msra.mxu0 0.0
      %1755 = vmatpush.msra.mxu0 0.0
      %1756 = vmatpush.msra.mxu0 0.0
      %1757 = vmatpush.msra.mxu0 0.0
      %1758 = vmatpush.msra.mxu0 0.0
      %1759 = vmatpush.msra.mxu0 0.0
      %1760 = vmatpush.msra.mxu0 0.0
      %1761 = vmatpush.msra.mxu0 %v1672
      %1762 = vmatpush.msra.mxu0 %v1670
      %1763 = vmatpush.msra.mxu0 %v1668
      %1764 = vmatpush.msra.mxu0 %v1666
      %1765 = vmatpush.msra.mxu0 %v1664
      %1766 = vmatpush.msra.mxu0 %v1662
      %1767 = vmatpush.msra.mxu0 %v1660
      %1768 = vmatmul.f32.gmra.mxu0 %v1690
      %v1769 = vpop.f32.mrf.mxu0
      %v1770 = vadd.f32 0.0, %v1769
      %1771 = vdwg.mxu0
      %v1772 = vadd.f32 %v1542, %v1710
      %v1773 = vadd.f32 %v1543, %v1730
      %v1774 = vadd.f32 %v1544, %v1750
      %v1775 = vadd.f32 %v1545, %v1770
      %1776 = vrot.lane.b32.xlu0 %v636, 48
      %v1777 = vpop.permute.xlu0 %1776
      %1778 = vrot.lane.b32.xlu0 %v637, 48
      %v1779 = vpop.permute.xlu0 %1778
      %1780 = vrot.lane.b32.xlu0 %v638, 48
      %v1781 = vpop.permute.xlu0 %1780
      %1782 = vrot.lane.b32.xlu0 %v653, 48
      %v1783 = vpop.permute.xlu0 %1782
      %1784 = vrot.lane.b32.xlu0 %v654, 48
      %v1785 = vpop.permute.xlu0 %1784
      %1786 = vrot.lane.b32.xlu0 %v651, 48
      %v1787 = vpop.permute.xlu0 %1786
      %1788 = vrot.lane.b32.xlu0 %v664, 48
      %v1789 = vpop.permute.xlu0 %1788
      %1790 = vrot.lane.b32.xlu0 %v665, 48
      %v1791 = vpop.permute.xlu0 %1790
      %1792 = vrot.lane.b32.xlu0 %v662, 48
      %v1793 = vpop.permute.xlu0 %1792
      %1794 = vrot.lane.b32.xlu0 %v675, 48
      %v1795 = vpop.permute.xlu0 %1794
      %1796 = vrot.lane.b32.xlu0 %v676, 48
      %v1797 = vpop.permute.xlu0 %1796
      %1798 = vrot.lane.b32.xlu0 %v673, 48
      %v1799 = vpop.permute.xlu0 %1798
      %1800 = vrot.lane.b32.xlu0 %v686, 48
      %v1801 = vpop.permute.xlu0 %1800
      %1802 = vrot.lane.b32.xlu0 %v687, 48
      %v1803 = vpop.permute.xlu0 %1802
      %1804 = vrot.lane.b32.xlu0 %v684, 48
      %v1805 = vpop.permute.xlu0 %1804
      %1806 = vrot.lane.b32.xlu0 %v697, 48
      %v1807 = vpop.permute.xlu0 %1806
      %1808 = vrot.lane.b32.xlu0 %v698, 48
      %v1809 = vpop.permute.xlu0 %1808
      %1810 = vrot.lane.b32.xlu0 %v695, 48
      %v1811 = vpop.permute.xlu0 %1810
      %1812 = vrot.lane.b32.xlu0 %v708, 48
      %v1813 = vpop.permute.xlu0 %1812
      %1814 = vrot.lane.b32.xlu0 %v709, 48
      %v1815 = vpop.permute.xlu0 %1814
      %1816 = vrot.lane.b32.xlu0 %v706, 48
      %v1817 = vpop.permute.xlu0 %1816
      %vm1818 = vcmask 392192
      %v1819 = vsel %vm1818, %v1777, %v1779
      %v1820 = vsel %vm1818, %v1779, %v1781
      %v1821 = vsel %vm1818, %v1783, %v1785
      %v1822 = vsel %vm1818, %v1785, %v1787
      %v1823 = vsel %vm1818, %v1789, %v1791
      %v1824 = vsel %vm1818, %v1791, %v1793
      %v1825 = vsel %vm1818, %v1795, %v1797
      %v1826 = vsel %vm1818, %v1797, %v1799
      %v1827 = vsel %vm1818, %v1801, %v1803
      %v1828 = vsel %vm1818, %v1803, %v1805
      %v1829 = vsel %vm1818, %v1807, %v1809
      %v1830 = vsel %vm1818, %v1809, %v1811
      %v1831 = vsel %vm1818, %v1813, %v1815
      %v1832 = vsel %vm1818, %v1815, %v1817
      %1847 = vrot.lane.b32.xlu0 %v640, 48
      %v1848 = vpop.permute.xlu0 %1847
      %1849 = vrot.lane.b32.xlu0 %v641, 48
      %v1850 = vpop.permute.xlu0 %1849
      %1851 = vrot.lane.b32.xlu0 %v642, 48
      %v1852 = vpop.permute.xlu0 %1851
      %1853 = vrot.lane.b32.xlu0 %v721, 48
      %v1854 = vpop.permute.xlu0 %1853
      %1855 = vrot.lane.b32.xlu0 %v722, 48
      %v1856 = vpop.permute.xlu0 %1855
      %1857 = vrot.lane.b32.xlu0 %v720, 48
      %v1858 = vpop.permute.xlu0 %1857
      %1859 = vrot.lane.b32.xlu0 %v731, 48
      %v1860 = vpop.permute.xlu0 %1859
      %1861 = vrot.lane.b32.xlu0 %v732, 48
      %v1862 = vpop.permute.xlu0 %1861
      %1863 = vrot.lane.b32.xlu0 %v730, 48
      %v1864 = vpop.permute.xlu0 %1863
      %1865 = vrot.lane.b32.xlu0 %v741, 48
      %v1866 = vpop.permute.xlu0 %1865
      %1867 = vrot.lane.b32.xlu0 %v742, 48
      %v1868 = vpop.permute.xlu0 %1867
      %1869 = vrot.lane.b32.xlu0 %v740, 48
      %v1870 = vpop.permute.xlu0 %1869
      %1871 = vrot.lane.b32.xlu0 %v751, 48
      %v1872 = vpop.permute.xlu0 %1871
      %1873 = vrot.lane.b32.xlu0 %v752, 48
      %v1874 = vpop.permute.xlu0 %1873
      %1875 = vrot.lane.b32.xlu0 %v750, 48
      %v1876 = vpop.permute.xlu0 %1875
      %1877 = vrot.lane.b32.xlu0 %v761, 48
      %v1878 = vpop.permute.xlu0 %1877
      %1879 = vrot.lane.b32.xlu0 %v762, 48
      %v1880 = vpop.permute.xlu0 %1879
      %1881 = vrot.lane.b32.xlu0 %v760, 48
      %v1882 = vpop.permute.xlu0 %1881
      %1883 = vrot.lane.b32.xlu0 %v771, 48
      %v1884 = vpop.permute.xlu0 %1883
      %1885 = vrot.lane.b32.xlu0 %v772, 48
      %v1886 = vpop.permute.xlu0 %1885
      %1887 = vrot.lane.b32.xlu0 %v770, 48
      %v1888 = vpop.permute.xlu0 %1887
      %v1889 = vsel %vm1818, %v1848, %v1850
      %v1890 = vsel %vm1818, %v1850, %v1852
      %v1891 = vsel %vm1818, %v1854, %v1856
      %v1892 = vsel %vm1818, %v1856, %v1858
      %v1893 = vsel %vm1818, %v1860, %v1862
      %v1894 = vsel %vm1818, %v1862, %v1864
      %v1895 = vsel %vm1818, %v1866, %v1868
      %v1896 = vsel %vm1818, %v1868, %v1870
      %v1897 = vsel %vm1818, %v1872, %v1874
      %v1898 = vsel %vm1818, %v1874, %v1876
      %v1899 = vsel %vm1818, %v1878, %v1880
      %v1900 = vsel %vm1818, %v1880, %v1882
      %v1901 = vsel %vm1818, %v1884, %v1886
      %v1902 = vsel %vm1818, %v1886, %v1888
      %s1917 = scalar_lea.vmem %s3, 40
      %v1918 = vld [vmem:[%s1917] sm:$0xff]
      %v1920 = vsel %vm919, %v1918, 0
      %1922 = vmatpush.msra.mxu0 0.0
      %1923 = vmatpush.msra.mxu0 0.0
      %1924 = vmatpush.msra.mxu0 0.0
      %1925 = vmatpush.msra.mxu0 0.0
      %1926 = vmatpush.msra.mxu0 0.0
      %1927 = vmatpush.msra.mxu0 0.0
      %1928 = vmatpush.msra.mxu0 0.0
      %1929 = vmatpush.msra.mxu0 0.0
      %1930 = vmatpush.msra.mxu0 0.0
      %1931 = vmatpush.msra.mxu0 %v1831
      %1932 = vmatpush.msra.mxu0 %v1829
      %1933 = vmatpush.msra.mxu0 %v1827
      %1934 = vmatpush.msra.mxu0 %v1825
      %1935 = vmatpush.msra.mxu0 %v1823
      %1936 = vmatpush.msra.mxu0 %v1821
      %1937 = vmatpush.msra.mxu0 %v1819
      %1938 = vmatmul.f32.gmra.mxu0 %v1920
      %v1939 = vpop.f32.mrf.mxu0
      %v1940 = vadd.f32 0.0, %v1939
      %1941 = vdwg.mxu0
      %1942 = vmatpush.msra.mxu0 0.0
      %1943 = vmatpush.msra.mxu0 0.0
      %1944 = vmatpush.msra.mxu0 0.0
      %1945 = vmatpush.msra.mxu0 0.0
      %1946 = vmatpush.msra.mxu0 0.0
      %1947 = vmatpush.msra.mxu0 0.0
      %1948 = vmatpush.msra.mxu0 0.0
      %1949 = vmatpush.msra.mxu0 0.0
      %1950 = vmatpush.msra.mxu0 0.0
      %1951 = vmatpush.msra.mxu0 %v1832
      %1952 = vmatpush.msra.mxu0 %v1830
      %1953 = vmatpush.msra.mxu0 %v1828
      %1954 = vmatpush.msra.mxu0 %v1826
      %1955 = vmatpush.msra.mxu0 %v1824
      %1956 = vmatpush.msra.mxu0 %v1822
      %1957 = vmatpush.msra.mxu0 %v1820
      %1958 = vmatmul.f32.gmra.mxu0 %v1920
      %v1959 = vpop.f32.mrf.mxu0
      %v1960 = vadd.f32 0.0, %v1959
      %1961 = vdwg.mxu0
      %1962 = vmatpush.msra.mxu0 0.0
      %1963 = vmatpush.msra.mxu0 0.0
      %1964 = vmatpush.msra.mxu0 0.0
      %1965 = vmatpush.msra.mxu0 0.0
      %1966 = vmatpush.msra.mxu0 0.0
      %1967 = vmatpush.msra.mxu0 0.0
      %1968 = vmatpush.msra.mxu0 0.0
      %1969 = vmatpush.msra.mxu0 0.0
      %1970 = vmatpush.msra.mxu0 0.0
      %1971 = vmatpush.msra.mxu0 %v1901
      %1972 = vmatpush.msra.mxu0 %v1899
      %1973 = vmatpush.msra.mxu0 %v1897
      %1974 = vmatpush.msra.mxu0 %v1895
      %1975 = vmatpush.msra.mxu0 %v1893
      %1976 = vmatpush.msra.mxu0 %v1891
      %1977 = vmatpush.msra.mxu0 %v1889
      %1978 = vmatmul.f32.gmra.mxu0 %v1920
      %v1979 = vpop.f32.mrf.mxu0
      %v1980 = vadd.f32 0.0, %v1979
      %1981 = vdwg.mxu0
      %1982 = vmatpush.msra.mxu0 0.0
      %1983 = vmatpush.msra.mxu0 0.0
      %1984 = vmatpush.msra.mxu0 0.0
      %1985 = vmatpush.msra.mxu0 0.0
      %1986 = vmatpush.msra.mxu0 0.0
      %1987 = vmatpush.msra.mxu0 0.0
      %1988 = vmatpush.msra.mxu0 0.0
      %1989 = vmatpush.msra.mxu0 0.0
      %1990 = vmatpush.msra.mxu0 0.0
      %1991 = vmatpush.msra.mxu0 %v1902
      %1992 = vmatpush.msra.mxu0 %v1900
      %1993 = vmatpush.msra.mxu0 %v1898
      %1994 = vmatpush.msra.mxu0 %v1896
      %1995 = vmatpush.msra.mxu0 %v1894
      %1996 = vmatpush.msra.mxu0 %v1892
      %1997 = vmatpush.msra.mxu0 %v1890
      %1998 = vmatmul.f32.gmra.mxu0 %v1920
      %v1999 = vpop.f32.mrf.mxu0
      %v2000 = vadd.f32 0.0, %v1999
      %2001 = vdwg.mxu0
      %v2002 = vadd.f32 %v1772, %v1940
      %v2003 = vadd.f32 %v1773, %v1960
      %v2004 = vadd.f32 %v1774, %v1980
      %v2005 = vadd.f32 %v1775, %v2000
      %2006 = vrot.lane.b32.xlu0 %v636, 32
      %v2007 = vpop.permute.xlu0 %2006
      %2008 = vrot.lane.b32.xlu0 %v637, 32
      %v2009 = vpop.permute.xlu0 %2008
      %2010 = vrot.lane.b32.xlu0 %v638, 32
      %v2011 = vpop.permute.xlu0 %2010
      %2012 = vrot.lane.b32.xlu0 %v653, 32
      %v2013 = vpop.permute.xlu0 %2012
      %2014 = vrot.lane.b32.xlu0 %v654, 32
      %v2015 = vpop.permute.xlu0 %2014
      %2016 = vrot.lane.b32.xlu0 %v651, 32
      %v2017 = vpop.permute.xlu0 %2016
      %2018 = vrot.lane.b32.xlu0 %v664, 32
      %v2019 = vpop.permute.xlu0 %2018
      %2020 = vrot.lane.b32.xlu0 %v665, 32
      %v2021 = vpop.permute.xlu0 %2020
      %2022 = vrot.lane.b32.xlu0 %v662, 32
      %v2023 = vpop.permute.xlu0 %2022
      %2024 = vrot.lane.b32.xlu0 %v675, 32
      %v2025 = vpop.permute.xlu0 %2024
      %2026 = vrot.lane.b32.xlu0 %v676, 32
      %v2027 = vpop.permute.xlu0 %2026
      %2028 = vrot.lane.b32.xlu0 %v673, 32
      %v2029 = vpop.permute.xlu0 %2028
      %2030 = vrot.lane.b32.xlu0 %v686, 32
      %v2031 = vpop.permute.xlu0 %2030
      %2032 = vrot.lane.b32.xlu0 %v687, 32
      %v2033 = vpop.permute.xlu0 %2032
      %2034 = vrot.lane.b32.xlu0 %v684, 32
      %v2035 = vpop.permute.xlu0 %2034
      %2036 = vrot.lane.b32.xlu0 %v697, 32
      %v2037 = vpop.permute.xlu0 %2036
      %2038 = vrot.lane.b32.xlu0 %v698, 32
      %v2039 = vpop.permute.xlu0 %2038
      %2040 = vrot.lane.b32.xlu0 %v695, 32
      %v2041 = vpop.permute.xlu0 %2040
      %2042 = vrot.lane.b32.xlu0 %v708, 32
      %v2043 = vpop.permute.xlu0 %2042
      %2044 = vrot.lane.b32.xlu0 %v709, 32
      %v2045 = vpop.permute.xlu0 %2044
      %2046 = vrot.lane.b32.xlu0 %v706, 32
      %v2047 = vpop.permute.xlu0 %2046
      %vm2048 = vcmask 261120
      %v2049 = vsel %vm2048, %v2007, %v2009
      %v2050 = vsel %vm2048, %v2009, %v2011
      %v2051 = vsel %vm2048, %v2013, %v2015
      %v2052 = vsel %vm2048, %v2015, %v2017
      %v2053 = vsel %vm2048, %v2019, %v2021
      %v2054 = vsel %vm2048, %v2021, %v2023
      %v2055 = vsel %vm2048, %v2025, %v2027
      %v2056 = vsel %vm2048, %v2027, %v2029
      %v2057 = vsel %vm2048, %v2031, %v2033
      %v2058 = vsel %vm2048, %v2033, %v2035
      %v2059 = vsel %vm2048, %v2037, %v2039
      %v2060 = vsel %vm2048, %v2039, %v2041
      %v2061 = vsel %vm2048, %v2043, %v2045
      %v2062 = vsel %vm2048, %v2045, %v2047
      %2077 = vrot.lane.b32.xlu0 %v640, 32
      %v2078 = vpop.permute.xlu0 %2077
      %2079 = vrot.lane.b32.xlu0 %v641, 32
      %v2080 = vpop.permute.xlu0 %2079
      %2081 = vrot.lane.b32.xlu0 %v642, 32
      %v2082 = vpop.permute.xlu0 %2081
      %2083 = vrot.lane.b32.xlu0 %v721, 32
      %v2084 = vpop.permute.xlu0 %2083
      %2085 = vrot.lane.b32.xlu0 %v722, 32
      %v2086 = vpop.permute.xlu0 %2085
      %2087 = vrot.lane.b32.xlu0 %v720, 32
      %v2088 = vpop.permute.xlu0 %2087
      %2089 = vrot.lane.b32.xlu0 %v731, 32
      %v2090 = vpop.permute.xlu0 %2089
      %2091 = vrot.lane.b32.xlu0 %v732, 32
      %v2092 = vpop.permute.xlu0 %2091
      %2093 = vrot.lane.b32.xlu0 %v730, 32
      %v2094 = vpop.permute.xlu0 %2093
      %2095 = vrot.lane.b32.xlu0 %v741, 32
      %v2096 = vpop.permute.xlu0 %2095
      %2097 = vrot.lane.b32.xlu0 %v742, 32
      %v2098 = vpop.permute.xlu0 %2097
      %2099 = vrot.lane.b32.xlu0 %v740, 32
      %v2100 = vpop.permute.xlu0 %2099
      %2101 = vrot.lane.b32.xlu0 %v751, 32
      %v2102 = vpop.permute.xlu0 %2101
      %2103 = vrot.lane.b32.xlu0 %v752, 32
      %v2104 = vpop.permute.xlu0 %2103
      %2105 = vrot.lane.b32.xlu0 %v750, 32
      %v2106 = vpop.permute.xlu0 %2105
      %2107 = vrot.lane.b32.xlu0 %v761, 32
      %v2108 = vpop.permute.xlu0 %2107
      %2109 = vrot.lane.b32.xlu0 %v762, 32
      %v2110 = vpop.permute.xlu0 %2109
      %2111 = vrot.lane.b32.xlu0 %v760, 32
      %v2112 = vpop.permute.xlu0 %2111
      %2113 = vrot.lane.b32.xlu0 %v771, 32
      %v2114 = vpop.permute.xlu0 %2113
      %2115 = vrot.lane.b32.xlu0 %v772, 32
      %v2116 = vpop.permute.xlu0 %2115
      %2117 = vrot.lane.b32.xlu0 %v770, 32
      %v2118 = vpop.permute.xlu0 %2117
      %v2119 = vsel %vm2048, %v2078, %v2080
      %v2120 = vsel %vm2048, %v2080, %v2082
      %v2121 = vsel %vm2048, %v2084, %v2086
      %v2122 = vsel %vm2048, %v2086, %v2088
      %v2123 = vsel %vm2048, %v2090, %v2092
      %v2124 = vsel %vm2048, %v2092, %v2094
      %v2125 = vsel %vm2048, %v2096, %v2098
      %v2126 = vsel %vm2048, %v2098, %v2100
      %v2127 = vsel %vm2048, %v2102, %v2104
      %v2128 = vsel %vm2048, %v2104, %v2106
      %v2129 = vsel %vm2048, %v2108, %v2110
      %v2130 = vsel %vm2048, %v2110, %v2112
      %v2131 = vsel %vm2048, %v2114, %v2116
      %v2132 = vsel %vm2048, %v2116, %v2118
      %s2147 = scalar_lea.vmem %s3, 48
      %v2148 = vld [vmem:[%s2147] sm:$0xff]
      %v2150 = vsel %vm919, %v2148, 0
      %2152 = vmatpush.msra.mxu0 0.0
      %2153 = vmatpush.msra.mxu0 0.0
      %2154 = vmatpush.msra.mxu0 0.0
      %2155 = vmatpush.msra.mxu0 0.0
      %2156 = vmatpush.msra.mxu0 0.0
      %2157 = vmatpush.msra.mxu0 0.0
      %2158 = vmatpush.msra.mxu0 0.0
      %2159 = vmatpush.msra.mxu0 0.0
      %2160 = vmatpush.msra.mxu0 0.0
      %2161 = vmatpush.msra.mxu0 %v2061
      %2162 = vmatpush.msra.mxu0 %v2059
      %2163 = vmatpush.msra.mxu0 %v2057
      %2164 = vmatpush.msra.mxu0 %v2055
      %2165 = vmatpush.msra.mxu0 %v2053
      %2166 = vmatpush.msra.mxu0 %v2051
      %2167 = vmatpush.msra.mxu0 %v2049
      %2168 = vmatmul.f32.gmra.mxu0 %v2150
      %v2169 = vpop.f32.mrf.mxu0
      %v2170 = vadd.f32 0.0, %v2169
      %2171 = vdwg.mxu0
      %2172 = vmatpush.msra.mxu0 0.0
      %2173 = vmatpush.msra.mxu0 0.0
      %2174 = vmatpush.msra.mxu0 0.0
      %2175 = vmatpush.msra.mxu0 0.0
      %2176 = vmatpush.msra.mxu0 0.0
      %2177 = vmatpush.msra.mxu0 0.0
      %2178 = vmatpush.msra.mxu0 0.0
      %2179 = vmatpush.msra.mxu0 0.0
      %2180 = vmatpush.msra.mxu0 0.0
      %2181 = vmatpush.msra.mxu0 %v2062
      %2182 = vmatpush.msra.mxu0 %v2060
      %2183 = vmatpush.msra.mxu0 %v2058
      %2184 = vmatpush.msra.mxu0 %v2056
      %2185 = vmatpush.msra.mxu0 %v2054
      %2186 = vmatpush.msra.mxu0 %v2052
      %2187 = vmatpush.msra.mxu0 %v2050
      %2188 = vmatmul.f32.gmra.mxu0 %v2150
      %v2189 = vpop.f32.mrf.mxu0
      %v2190 = vadd.f32 0.0, %v2189
      %2191 = vdwg.mxu0
      %2192 = vmatpush.msra.mxu0 0.0
      %2193 = vmatpush.msra.mxu0 0.0
      %2194 = vmatpush.msra.mxu0 0.0
      %2195 = vmatpush.msra.mxu0 0.0
      %2196 = vmatpush.msra.mxu0 0.0
      %2197 = vmatpush.msra.mxu0 0.0
      %2198 = vmatpush.msra.mxu0 0.0
      %2199 = vmatpush.msra.mxu0 0.0
      %2200 = vmatpush.msra.mxu0 0.0
      %2201 = vmatpush.msra.mxu0 %v2131
      %2202 = vmatpush.msra.mxu0 %v2129
      %2203 = vmatpush.msra.mxu0 %v2127
      %2204 = vmatpush.msra.mxu0 %v2125
      %2205 = vmatpush.msra.mxu0 %v2123
      %2206 = vmatpush.msra.mxu0 %v2121
      %2207 = vmatpush.msra.mxu0 %v2119
      %2208 = vmatmul.f32.gmra.mxu0 %v2150
      %v2209 = vpop.f32.mrf.mxu0
      %v2210 = vadd.f32 0.0, %v2209
      %2211 = vdwg.mxu0
      %2212 = vmatpush.msra.mxu0 0.0
      %2213 = vmatpush.msra.mxu0 0.0
      %2214 = vmatpush.msra.mxu0 0.0
      %2215 = vmatpush.msra.mxu0 0.0
      %2216 = vmatpush.msra.mxu0 0.0
      %2217 = vmatpush.msra.mxu0 0.0
      %2218 = vmatpush.msra.mxu0 0.0
      %2219 = vmatpush.msra.mxu0 0.0
      %2220 = vmatpush.msra.mxu0 0.0
      %2221 = vmatpush.msra.mxu0 %v2132
      %2222 = vmatpush.msra.mxu0 %v2130
      %2223 = vmatpush.msra.mxu0 %v2128
      %2224 = vmatpush.msra.mxu0 %v2126
      %2225 = vmatpush.msra.mxu0 %v2124
      %2226 = vmatpush.msra.mxu0 %v2122
      %2227 = vmatpush.msra.mxu0 %v2120
      %2228 = vmatmul.f32.gmra.mxu0 %v2150
      %v2229 = vpop.f32.mrf.mxu0
      %v2230 = vadd.f32 0.0, %v2229
      %2231 = vdwg.mxu0
      %v2232 = vadd.f32 %v2002, %v2170
      %v2233 = vadd.f32 %v2003, %v2190
      %v2234 = vadd.f32 %v2004, %v2210
      %v2235 = vadd.f32 %v2005, %v2230
      %v2236 = vld [vmem:[%s607] sm:$0xff]
      %v2237 = vld [vmem:[%s607 + $0x8] sm:$0xff]
      %s2238 = scalar_lea.vmem %s607, 16
      %v2239 = vld [vmem:[%s2238] sm:$0xff]
      %v2240 = vld [vmem:[%s2238 + $0x8] sm:$0xff]
      %v2241 = vld [vmem:[%s4] sm:$0xff]
      %2243 = vset.pattern.permute.xlu0 0
      %2244 = vperm.xlu0 %2243, %v2241
      %v2245 = vpop.permute.xlu0 %2244
      %v2247 = vadd.f32 %v2232, %v2245
      %v2248 = vadd.f32 %v2233, %v2245
      %v2249 = vadd.f32 %v2234, %v2245
      %v2250 = vadd.f32 %v2235, %v2245
      %v2251 = vadd.f32 %v2247, %v2236
      %v2252 = vadd.f32 %v2248, %v2237
      %v2253 = vadd.f32 %v2249, %v2239
      %v2254 = vadd.f32 %v2250, %v2240
      %v2255 = vmax.f32 %v2251, 0.0
      %v2256 = vmax.f32 %v2252, 0.0
      %v2257 = vmax.f32 %v2253, 0.0
      %v2258 = vmax.f32 %v2254, 0.0
      %v2259 = vld [vmem:[%s614] sm:$0xf]
      %s2260 = scalar_lea.vmem %s614, 4
      %v2261 = vld [vmem:[%s2260] sm:$0xf]
      %2263 = vst [vmem:[#allocation1] ss:$4 sm:$0xff] %v2259
      %v2264 = vld.sshfl [vmem:[#allocation1] sm:$0xff pattern:$0x73625140]
      %v2265 = vld.sshfl [vmem:[#allocation1 + $0x8] sm:$0xff pattern:$0x73625140]
      %2269 = vst [vmem:[#allocation1] ss:$4 sm:$0xff] %v2261
      %v2270 = vld.sshfl [vmem:[#allocation1] sm:$0xff pattern:$0x73625140]
      %v2271 = vld.sshfl [vmem:[#allocation1 + $0x8] sm:$0xff pattern:$0x73625140]
      %v2274 = vld [vmem:[%s7] sm:$0x3]
      %2276 = vset.pattern.permute.xlu0 0
      %2277 = vperm.xlu0 %2276, %v2274
      %v2278 = vpop.permute.xlu0 %2277
      %v2280 = vperm.slane %v2255, 0
      %v2281 = vperm.slane %v2256, 0
      %v2282 = vperm.slane %v2257, 0
      %v2283 = vperm.slane %v2258, 0
      %v2284 = vmul.f32 %v2278, %v2280
      %v2285 = vmul.f32 %v2278, %v2281
      %v2286 = vmul.f32 %v2278, %v2282
      %v2287 = vmul.f32 %v2278, %v2283
      %2288 = vset.pattern.permute.xlu0 1
      %2289 = vperm.xlu0 %2288, %v2274
      %v2290 = vpop.permute.xlu0 %2289
      %v2292 = vperm.slane %v2255, 1
      %v2293 = vperm.slane %v2256, 1
      %v2294 = vperm.slane %v2257, 1
      %v2295 = vperm.slane %v2258, 1
      %v2296 = vmul.f32 %v2290, %v2292
      %v2297 = vmul.f32 %v2290, %v2293
      %v2298 = vmul.f32 %v2290, %v2294
      %v2299 = vmul.f32 %v2290, %v2295
      %v2300 = vadd.f32 %v2284, %v2296
      %v2301 = vadd.f32 %v2285, %v2297
      %v2302 = vadd.f32 %v2286, %v2298
      %v2303 = vadd.f32 %v2287, %v2299
      %2304 = vset.pattern.permute.xlu0 2
      %2305 = vperm.xlu0 %2304, %v2274
      %v2306 = vpop.permute.xlu0 %2305
      %v2308 = vperm.slane %v2255, 2
      %v2309 = vperm.slane %v2256, 2
      %v2310 = vperm.slane %v2257, 2
      %v2311 = vperm.slane %v2258, 2
      %v2312 = vmul.f32 %v2306, %v2308
      %v2313 = vmul.f32 %v2306, %v2309
      %v2314 = vmul.f32 %v2306, %v2310
      %v2315 = vmul.f32 %v2306, %v2311
      %v2316 = vadd.f32 %v2300, %v2312
      %v2317 = vadd.f32 %v2301, %v2313
      %v2318 = vadd.f32 %v2302, %v2314
      %v2319 = vadd.f32 %v2303, %v2315
      %2320 = vset.pattern.permute.xlu0 3
      %2321 = vperm.xlu0 %2320, %v2274
      %v2322 = vpop.permute.xlu0 %2321
      %v2324 = vperm.slane %v2255, 3
      %v2325 = vperm.slane %v2256, 3
      %v2326 = vperm.slane %v2257, 3
      %v2327 = vperm.slane %v2258, 3
      %v2328 = vmul.f32 %v2322, %v2324
      %v2329 = vmul.f32 %v2322, %v2325
      %v2330 = vmul.f32 %v2322, %v2326
      %v2331 = vmul.f32 %v2322, %v2327
      %v2332 = vadd.f32 %v2316, %v2328
      %v2333 = vadd.f32 %v2317, %v2329
      %v2334 = vadd.f32 %v2318, %v2330
      %v2335 = vadd.f32 %v2319, %v2331
      %2336 = vset.pattern.permute.xlu0 4
      %2337 = vperm.xlu0 %2336, %v2274
      %v2338 = vpop.permute.xlu0 %2337
      %v2340 = vperm.slane %v2255, 4
      %v2341 = vperm.slane %v2256, 4
      %v2342 = vperm.slane %v2257, 4
      %v2343 = vperm.slane %v2258, 4
      %v2344 = vmul.f32 %v2338, %v2340
      %v2345 = vmul.f32 %v2338, %v2341
      %v2346 = vmul.f32 %v2338, %v2342
      %v2347 = vmul.f32 %v2338, %v2343
      %v2348 = vadd.f32 %v2332, %v2344
      %v2349 = vadd.f32 %v2333, %v2345
      %v2350 = vadd.f32 %v2334, %v2346
      %v2351 = vadd.f32 %v2335, %v2347
      %2352 = vset.pattern.permute.xlu0 5
      %2353 = vperm.xlu0 %2352, %v2274
      %v2354 = vpop.permute.xlu0 %2353
      %v2356 = vperm.slane %v2255, 5
      %v2357 = vperm.slane %v2256, 5
      %v2358 = vperm.slane %v2257, 5
      %v2359 = vperm.slane %v2258, 5
      %v2360 = vmul.f32 %v2354, %v2356
      %v2361 = vmul.f32 %v2354, %v2357
      %v2362 = vmul.f32 %v2354, %v2358
      %v2363 = vmul.f32 %v2354, %v2359
      %v2364 = vadd.f32 %v2348, %v2360
      %v2365 = vadd.f32 %v2349, %v2361
      %v2366 = vadd.f32 %v2350, %v2362
      %v2367 = vadd.f32 %v2351, %v2363
      %2368 = vset.pattern.permute.xlu0 6
      %2369 = vperm.xlu0 %2368, %v2274
      %v2370 = vpop.permute.xlu0 %2369
      %v2372 = vperm.slane %v2255, 6
      %v2373 = vperm.slane %v2256, 6
      %v2374 = vperm.slane %v2257, 6
      %v2375 = vperm.slane %v2258, 6
      %v2376 = vmul.f32 %v2370, %v2372
      %v2377 = vmul.f32 %v2370, %v2373
      %v2378 = vmul.f32 %v2370, %v2374
      %v2379 = vmul.f32 %v2370, %v2375
      %v2380 = vadd.f32 %v2364, %v2376
      %v2381 = vadd.f32 %v2365, %v2377
      %v2382 = vadd.f32 %v2366, %v2378
      %v2383 = vadd.f32 %v2367, %v2379
      %2384 = vset.pattern.permute.xlu0 7
      %2385 = vperm.xlu0 %2384, %v2274
      %v2386 = vpop.permute.xlu0 %2385
      %v2388 = vperm.slane %v2255, 7
      %v2389 = vperm.slane %v2256, 7
      %v2390 = vperm.slane %v2257, 7
      %v2391 = vperm.slane %v2258, 7
      %v2392 = vmul.f32 %v2386, %v2388
      %v2393 = vmul.f32 %v2386, %v2389
      %v2394 = vmul.f32 %v2386, %v2390
      %v2395 = vmul.f32 %v2386, %v2391
      %v2396 = vadd.f32 %v2380, %v2392
      %v2397 = vadd.f32 %v2381, %v2393
      %v2398 = vadd.f32 %v2382, %v2394
      %v2399 = vadd.f32 %v2383, %v2395
      %v2400 = vld [vmem:[%s8] sm:$0x3]
      %2402 = vset.pattern.permute.xlu0 0
      %2403 = vperm.xlu0 %2402, %v2400
      %v2404 = vpop.permute.xlu0 %2403
      %v2406 = vperm.slane %v2264, 0
      %v2407 = vperm.slane %v2265, 0
      %v2408 = vperm.slane %v2270, 0
      %v2409 = vperm.slane %v2271, 0
      %v2410 = vmul.f32 %v2404, %v2406
      %v2411 = vmul.f32 %v2404, %v2407
      %v2412 = vmul.f32 %v2404, %v2408
      %v2413 = vmul.f32 %v2404, %v2409
      %2414 = vset.pattern.permute.xlu0 1
      %2415 = vperm.xlu0 %2414, %v2400
      %v2416 = vpop.permute.xlu0 %2415
      %v2418 = vperm.slane %v2264, 1
      %v2419 = vperm.slane %v2265, 1
      %v2420 = vperm.slane %v2270, 1
      %v2421 = vperm.slane %v2271, 1
      %v2422 = vmul.f32 %v2416, %v2418
      %v2423 = vmul.f32 %v2416, %v2419
      %v2424 = vmul.f32 %v2416, %v2420
      %v2425 = vmul.f32 %v2416, %v2421
      %v2426 = vadd.f32 %v2410, %v2422
      %v2427 = vadd.f32 %v2411, %v2423
      %v2428 = vadd.f32 %v2412, %v2424
      %v2429 = vadd.f32 %v2413, %v2425
      %v2430 = vadd.f32 %v2396, %v2426
      %v2431 = vadd.f32 %v2397, %v2427
      %v2432 = vadd.f32 %v2398, %v2428
      %v2433 = vadd.f32 %v2399, %v2429
      %v2434 = vld [vmem:[%s9] sm:$0x3]
      %2436 = vset.pattern.permute.xlu0 0
      %2437 = vperm.xlu0 %2436, %v2434
      %v2438 = vpop.permute.xlu0 %2437
      %v2440 = vadd.f32 %v2430, %v2438
      %v2441 = vadd.f32 %v2431, %v2438
      %v2442 = vadd.f32 %v2432, %v2438
      %v2443 = vadd.f32 %v2433, %v2438
      %v2444 = vtanh.pop %v2440
      %v2445 = vtanh.pop %v2441
      %v2446 = vtanh.pop %v2442
      %v2447 = vtanh.pop %v2443
      %v2448 = vld [vmem:[%s10] sm:$0xff]
      %2450 = vset.pattern.permute.xlu0 0
      %2451 = vperm.xlu0 %2450, %v2448
      %v2452 = vpop.permute.xlu0 %2451
      %v2454 = vperm.slane %v2444, 0
      %v2455 = vperm.slane %v2445, 0
      %v2456 = vperm.slane %v2446, 0
      %v2457 = vperm.slane %v2447, 0
      %v2458 = vmul.f32 %v2452, %v2454
      %v2459 = vmul.f32 %v2452, %v2455
      %v2460 = vmul.f32 %v2452, %v2456
      %v2461 = vmul.f32 %v2452, %v2457
      %2462 = vset.pattern.permute.xlu0 1
      %2463 = vperm.xlu0 %2462, %v2448
      %v2464 = vpop.permute.xlu0 %2463
      %v2466 = vperm.slane %v2444, 1
      %v2467 = vperm.slane %v2445, 1
      %v2468 = vperm.slane %v2446, 1
      %v2469 = vperm.slane %v2447, 1
      %v2470 = vmul.f32 %v2464, %v2466
      %v2471 = vmul.f32 %v2464, %v2467
      %v2472 = vmul.f32 %v2464, %v2468
      %v2473 = vmul.f32 %v2464, %v2469
      %v2474 = vadd.f32 %v2458, %v2470
      %v2475 = vadd.f32 %v2459, %v2471
      %v2476 = vadd.f32 %v2460, %v2472
      %v2477 = vadd.f32 %v2461, %v2473
      %v2478 = vld [vmem:[%s11] sm:$0xff]
      %2480 = vset.pattern.permute.xlu0 0
      %2481 = vperm.xlu0 %2480, %v2478
      %v2482 = vpop.permute.xlu0 %2481
      %v2484 = vadd.f32 %v2474, %v2482
      %v2485 = vadd.f32 %v2475, %v2482
      %v2486 = vadd.f32 %v2476, %v2482
      %v2487 = vadd.f32 %v2477, %v2482
      %v2490 = vrot.slane %v2445, 6
      %vm2491 = vcmask 1041408
      %v2492 = vsel %vm2491, %v2444, %v2490
      %2494 = vst [vmem:[%s634] sm:$0xf] %v2492
      %2495 = vst [vmem:[%s627] sm:$0xff] %v2484
      %2496 = vst [vmem:[%s627 + $0x8] sm:$0xff] %v2485
      %v2499 = vrot.slane %v2447, 6
      %v2500 = vsel %vm2491, %v2446, %v2499
      %s2502 = scalar_lea.vmem %s634, 4
      %2503 = vst [vmem:[%s2502] sm:$0xf] %v2500
      %s2504 = scalar_lea.vmem %s627, 16
      %2505 = vst [vmem:[%s2504] sm:$0xff] %v2486
      %2506 = vst [vmem:[%s2504 + $0x8] sm:$0xff] %v2487
      %2509 = vrot.lane.b32.xlu0 %v2255, 127
      %v2510 = vpop.permute.xlu0 %2509
      %2511 = vrot.lane.b32.xlu0 %v2256, 127
      %v2512 = vpop.permute.xlu0 %2511
      %v2513 = vsel %vm652, %v2510, %v2512
      %2515 = vrot.lane.b32.xlu0 %v2255, 126
      %v2516 = vpop.permute.xlu0 %2515
      %2517 = vrot.lane.b32.xlu0 %v2256, 126
      %v2518 = vpop.permute.xlu0 %2517
      %v2519 = vsel %vm663, %v2516, %v2518
      %2521 = vrot.lane.b32.xlu0 %v2255, 125
      %v2522 = vpop.permute.xlu0 %2521
      %2523 = vrot.lane.b32.xlu0 %v2256, 125
      %v2524 = vpop.permute.xlu0 %2523
      %v2525 = vsel %vm674, %v2522, %v2524
      %2527 = vrot.lane.b32.xlu0 %v2255, 124
      %v2528 = vpop.permute.xlu0 %2527
      %2529 = vrot.lane.b32.xlu0 %v2256, 124
      %v2530 = vpop.permute.xlu0 %2529
      %v2531 = vsel %vm685, %v2528, %v2530
      %2535 = vrot.lane.b32.xlu0 %v2257, 127
      %v2536 = vpop.permute.xlu0 %2535
      %2537 = vrot.lane.b32.xlu0 %v2258, 127
      %v2538 = vpop.permute.xlu0 %2537
      %v2539 = vsel %vm652, %v2536, %v2538
      %2541 = vrot.lane.b32.xlu0 %v2257, 126
      %v2542 = vpop.permute.xlu0 %2541
      %2543 = vrot.lane.b32.xlu0 %v2258, 126
      %v2544 = vpop.permute.xlu0 %2543
      %v2545 = vsel %vm663, %v2542, %v2544
      %2547 = vrot.lane.b32.xlu0 %v2257, 125
      %v2548 = vpop.permute.xlu0 %2547
      %2549 = vrot.lane.b32.xlu0 %v2258, 125
      %v2550 = vpop.permute.xlu0 %2549
      %v2551 = vsel %vm674, %v2548, %v2550
      %2553 = vrot.lane.b32.xlu0 %v2257, 124
      %v2554 = vpop.permute.xlu0 %2553
      %2555 = vrot.lane.b32.xlu0 %v2258, 124
      %v2556 = vpop.permute.xlu0 %2555
      %v2557 = vsel %vm685, %v2554, %v2556
      %v2559 = vld [vmem:[%s5] sm:$0xff]
      %2560 = vrot.lane.b32.xlu0 %v2255, 112
      %v2561 = vpop.permute.xlu0 %2560
      %2562 = vrot.lane.b32.xlu0 %v2256, 112
      %v2563 = vpop.permute.xlu0 %2562
      %2564 = vrot.lane.b32.xlu0 %v2513, 112
      %v2565 = vpop.permute.xlu0 %2564
      %2566 = vrot.lane.b32.xlu0 %v2512, 112
      %v2567 = vpop.permute.xlu0 %2566
      %2568 = vrot.lane.b32.xlu0 %v2519, 112
      %v2569 = vpop.permute.xlu0 %2568
      %2570 = vrot.lane.b32.xlu0 %v2518, 112
      %v2571 = vpop.permute.xlu0 %2570
      %2572 = vrot.lane.b32.xlu0 %v2525, 112
      %v2573 = vpop.permute.xlu0 %2572
      %2574 = vrot.lane.b32.xlu0 %v2524, 112
      %v2575 = vpop.permute.xlu0 %2574
      %2576 = vrot.lane.b32.xlu0 %v2531, 112
      %v2577 = vpop.permute.xlu0 %2576
      %2578 = vrot.lane.b32.xlu0 %v2530, 112
      %v2579 = vpop.permute.xlu0 %2578
      %v2580 = vsel %vm818, %v2561, %v2563
      %v2581 = vsel %vm818, %v2565, %v2567
      %v2582 = vsel %vm818, %v2569, %v2571
      %v2583 = vsel %vm818, %v2573, %v2575
      %v2584 = vsel %vm818, %v2577, %v2579
      %2590 = vrot.lane.b32.xlu0 %v2257, 112
      %v2591 = vpop.permute.xlu0 %2590
      %2592 = vrot.lane.b32.xlu0 %v2258, 112
      %v2593 = vpop.permute.xlu0 %2592
      %2594 = vrot.lane.b32.xlu0 %v2539, 112
      %v2595 = vpop.permute.xlu0 %2594
      %2596 = vrot.lane.b32.xlu0 %v2538, 112
      %v2597 = vpop.permute.xlu0 %2596
      %2598 = vrot.lane.b32.xlu0 %v2545, 112
      %v2599 = vpop.permute.xlu0 %2598
      %2600 = vrot.lane.b32.xlu0 %v2544, 112
      %v2601 = vpop.permute.xlu0 %2600
      %2602 = vrot.lane.b32.xlu0 %v2551, 112
      %v2603 = vpop.permute.xlu0 %2602
      %2604 = vrot.lane.b32.xlu0 %v2550, 112
      %v2605 = vpop.permute.xlu0 %2604
      %2606 = vrot.lane.b32.xlu0 %v2557, 112
      %v2607 = vpop.permute.xlu0 %2606
      %2608 = vrot.lane.b32.xlu0 %v2556, 112
      %v2609 = vpop.permute.xlu0 %2608
      %v2610 = vsel %vm818, %v2591, %v2593
      %v2611 = vsel %vm818, %v2595, %v2597
      %v2612 = vsel %vm818, %v2599, %v2601
      %v2613 = vsel %vm818, %v2603, %v2605
      %v2614 = vsel %vm818, %v2607, %v2609
      %s2620 = scalar_lea.vmem %s5, 8
      %v2621 = vld [vmem:[%s2620] sm:$0xff]
      %vm2622 = vcmask 326656
      %v2624 = vsel %vm2622, %v2621, 0
      %2626 = vmatpush.msra.mxu0 0.0
      %2627 = vmatpush.msra.mxu0 0.0
      %2628 = vmatpush.msra.mxu0 0.0
      %2629 = vmatpush.msra.mxu0 0.0
      %2630 = vmatpush.msra.mxu0 0.0
      %2631 = vmatpush.msra.mxu0 0.0
      %2632 = vmatpush.msra.mxu0 0.0
      %2633 = vmatpush.msra.mxu0 0.0
      %2634 = vmatpush.msra.mxu0 0.0
      %2635 = vmatpush.msra.mxu0 0.0
      %2636 = vmatpush.msra.mxu0 0.0
      %2637 = vmatpush.msra.mxu0 %v2584
      %2638 = vmatpush.msra.mxu0 %v2583
      %2639 = vmatpush.msra.mxu0 %v2582
      %2640 = vmatpush.msra.mxu0 %v2581
      %2641 = vmatpush.msra.mxu0 %v2580
      %2642 = vmatmul.f32.gmra.mxu0 %v2624
      %v2643 = vpop.f32.mrf.mxu0
      %v2644 = vadd.f32 0.0, %v2643
      %2645 = vdwg.mxu0
      %2646 = vmatpush.msra.mxu0 0.0
      %2647 = vmatpush.msra.mxu0 0.0
      %2648 = vmatpush.msra.mxu0 0.0
      %2649 = vmatpush.msra.mxu0 0.0
      %2650 = vmatpush.msra.mxu0 0.0
      %2651 = vmatpush.msra.mxu0 0.0
      %2652 = vmatpush.msra.mxu0 0.0
      %2653 = vmatpush.msra.mxu0 0.0
      %2654 = vmatpush.msra.mxu0 0.0
      %2655 = vmatpush.msra.mxu0 0.0
      %2656 = vmatpush.msra.mxu0 0.0
      %2657 = vmatpush.msra.mxu0 %v2614
      %2658 = vmatpush.msra.mxu0 %v2613
      %2659 = vmatpush.msra.mxu0 %v2612
      %2660 = vmatpush.msra.mxu0 %v2611
      %2661 = vmatpush.msra.mxu0 %v2610
      %2662 = vmatmul.f32.gmra.mxu0 %v2624
      %v2663 = vpop.f32.mrf.mxu0
      %v2664 = vadd.f32 0.0, %v2663
      %2665 = vdwg.mxu0
      %v2667 = vsel %vm2622, %v2559, 0
      %2669 = vmatpush.msra.mxu0 0.0
      %2670 = vmatpush.msra.mxu0 0.0
      %2671 = vmatpush.msra.mxu0 0.0
      %2672 = vmatpush.msra.mxu0 0.0
      %2673 = vmatpush.msra.mxu0 0.0
      %2674 = vmatpush.msra.mxu0 0.0
      %2675 = vmatpush.msra.mxu0 0.0
      %2676 = vmatpush.msra.mxu0 0.0
      %2677 = vmatpush.msra.mxu0 0.0
      %2678 = vmatpush.msra.mxu0 0.0
      %2679 = vmatpush.msra.mxu0 0.0
      %2680 = vmatpush.msra.mxu0 %v2531
      %2681 = vmatpush.msra.mxu0 %v2525
      %2682 = vmatpush.msra.mxu0 %v2519
      %2683 = vmatpush.msra.mxu0 %v2513
      %2684 = vmatpush.msra.mxu0 %v2255
      %2685 = vmatmul.f32.gmra.mxu0 %v2667
      %v2686 = vpop.f32.mrf.mxu0
      %v2687 = vadd.f32 %v2644, %v2686
      %2688 = vdwg.mxu0
      %2689 = vmatpush.msra.mxu0 0.0
      %2690 = vmatpush.msra.mxu0 0.0
      %2691 = vmatpush.msra.mxu0 0.0
      %2692 = vmatpush.msra.mxu0 0.0
      %2693 = vmatpush.msra.mxu0 0.0
      %2694 = vmatpush.msra.mxu0 0.0
      %2695 = vmatpush.msra.mxu0 0.0
      %2696 = vmatpush.msra.mxu0 0.0
      %2697 = vmatpush.msra.mxu0 0.0
      %2698 = vmatpush.msra.mxu0 0.0
      %2699 = vmatpush.msra.mxu0 0.0
      %2700 = vmatpush.msra.mxu0 %v2557
      %2701 = vmatpush.msra.mxu0 %v2551
      %2702 = vmatpush.msra.mxu0 %v2545
      %2703 = vmatpush.msra.mxu0 %v2539
      %2704 = vmatpush.msra.mxu0 %v2257
      %2705 = vmatmul.f32.gmra.mxu0 %v2667
      %v2706 = vpop.f32.mrf.mxu0
      %v2707 = vadd.f32 %v2664, %v2706
      %2708 = vdwg.mxu0
      %2709 = vrot.lane.b32.xlu0 %v2255, 96
      %v2710 = vpop.permute.xlu0 %2709
      %2711 = vrot.lane.b32.xlu0 %v2256, 96
      %v2712 = vpop.permute.xlu0 %2711
      %2713 = vrot.lane.b32.xlu0 %v2513, 96
      %v2714 = vpop.permute.xlu0 %2713
      %2715 = vrot.lane.b32.xlu0 %v2512, 96
      %v2716 = vpop.permute.xlu0 %2715
      %2717 = vrot.lane.b32.xlu0 %v2519, 96
      %v2718 = vpop.permute.xlu0 %2717
      %2719 = vrot.lane.b32.xlu0 %v2518, 96
      %v2720 = vpop.permute.xlu0 %2719
      %2721 = vrot.lane.b32.xlu0 %v2525, 96
      %v2722 = vpop.permute.xlu0 %2721
      %2723 = vrot.lane.b32.xlu0 %v2524, 96
      %v2724 = vpop.permute.xlu0 %2723
      %2725 = vrot.lane.b32.xlu0 %v2531, 96
      %v2726 = vpop.permute.xlu0 %2725
      %2727 = vrot.lane.b32.xlu0 %v2530, 96
      %v2728 = vpop.permute.xlu0 %2727
      %v2729 = vsel %vm1128, %v2710, %v2712
      %v2730 = vsel %vm1128, %v2714, %v2716
      %v2731 = vsel %vm1128, %v2718, %v2720
      %v2732 = vsel %vm1128, %v2722, %v2724
      %v2733 = vsel %vm1128, %v2726, %v2728
      %2739 = vrot.lane.b32.xlu0 %v2257, 96
      %v2740 = vpop.permute.xlu0 %2739
      %2741 = vrot.lane.b32.xlu0 %v2258, 96
      %v2742 = vpop.permute.xlu0 %2741
      %2743 = vrot.lane.b32.xlu0 %v2539, 96
      %v2744 = vpop.permute.xlu0 %2743
      %2745 = vrot.lane.b32.xlu0 %v2538, 96
      %v2746 = vpop.permute.xlu0 %2745
      %2747 = vrot.lane.b32.xlu0 %v2545, 96
      %v2748 = vpop.permute.xlu0 %2747
      %2749 = vrot.lane.b32.xlu0 %v2544, 96
      %v2750 = vpop.permute.xlu0 %2749
      %2751 = vrot.lane.b32.xlu0 %v2551, 96
      %v2752 = vpop.permute.xlu0 %2751
      %2753 = vrot.lane.b32.xlu0 %v2550, 96
      %v2754 = vpop.permute.xlu0 %2753
      %2755 = vrot.lane.b32.xlu0 %v2557, 96
      %v2756 = vpop.permute.xlu0 %2755
      %2757 = vrot.lane.b32.xlu0 %v2556, 96
      %v2758 = vpop.permute.xlu0 %2757
      %v2759 = vsel %vm1128, %v2740, %v2742
      %v2760 = vsel %vm1128, %v2744, %v2746
      %v2761 = vsel %vm1128, %v2748, %v2750
      %v2762 = vsel %vm1128, %v2752, %v2754
      %v2763 = vsel %vm1128, %v2756, %v2758
      %s2769 = scalar_lea.vmem %s5, 16
      %v2770 = vld [vmem:[%s2769] sm:$0xff]
      %v2772 = vsel %vm2622, %v2770, 0
      %2774 = vmatpush.msra.mxu0 0.0
      %2775 = vmatpush.msra.mxu0 0.0
      %2776 = vmatpush.msra.mxu0 0.0
      %2777 = vmatpush.msra.mxu0 0.0
      %2778 = vmatpush.msra.mxu0 0.0
      %2779 = vmatpush.msra.mxu0 0.0
      %2780 = vmatpush.msra.mxu0 0.0
      %2781 = vmatpush.msra.mxu0 0.0
      %2782 = vmatpush.msra.mxu0 0.0
      %2783 = vmatpush.msra.mxu0 0.0
      %2784 = vmatpush.msra.mxu0 0.0
      %2785 = vmatpush.msra.mxu0 %v2733
      %2786 = vmatpush.msra.mxu0 %v2732
      %2787 = vmatpush.msra.mxu0 %v2731
      %2788 = vmatpush.msra.mxu0 %v2730
      %2789 = vmatpush.msra.mxu0 %v2729
      %2790 = vmatmul.f32.gmra.mxu0 %v2772
      %v2791 = vpop.f32.mrf.mxu0
      %v2792 = vadd.f32 0.0, %v2791
      %2793 = vdwg.mxu0
      %2794 = vmatpush.msra.mxu0 0.0
      %2795 = vmatpush.msra.mxu0 0.0
      %2796 = vmatpush.msra.mxu0 0.0
      %2797 = vmatpush.msra.mxu0 0.0
      %2798 = vmatpush.msra.mxu0 0.0
      %2799 = vmatpush.msra.mxu0 0.0
      %2800 = vmatpush.msra.mxu0 0.0
      %2801 = vmatpush.msra.mxu0 0.0
      %2802 = vmatpush.msra.mxu0 0.0
      %2803 = vmatpush.msra.mxu0 0.0
      %2804 = vmatpush.msra.mxu0 0.0
      %2805 = vmatpush.msra.mxu0 %v2763
      %2806 = vmatpush.msra.mxu0 %v2762
      %2807 = vmatpush.msra.mxu0 %v2761
      %2808 = vmatpush.msra.mxu0 %v2760
      %2809 = vmatpush.msra.mxu0 %v2759
      %2810 = vmatmul.f32.gmra.mxu0 %v2772
      %v2811 = vpop.f32.mrf.mxu0
      %v2812 = vadd.f32 0.0, %v2811
      %2813 = vdwg.mxu0
      %v2814 = vadd.f32 %v2687, %v2792
      %v2815 = vadd.f32 %v2707, %v2812
      %2816 = vrot.lane.b32.xlu0 %v2255, 80
      %v2817 = vpop.permute.xlu0 %2816
      %2818 = vrot.lane.b32.xlu0 %v2256, 80
      %v2819 = vpop.permute.xlu0 %2818
      %2820 = vrot.lane.b32.xlu0 %v2513, 80
      %v2821 = vpop.permute.xlu0 %2820
      %2822 = vrot.lane.b32.xlu0 %v2512, 80
      %v2823 = vpop.permute.xlu0 %2822
      %2824 = vrot.lane.b32.xlu0 %v2519, 80
      %v2825 = vpop.permute.xlu0 %2824
      %2826 = vrot.lane.b32.xlu0 %v2518, 80
      %v2827 = vpop.permute.xlu0 %2826
      %2828 = vrot.lane.b32.xlu0 %v2525, 80
      %v2829 = vpop.permute.xlu0 %2828
      %2830 = vrot.lane.b32.xlu0 %v2524, 80
      %v2831 = vpop.permute.xlu0 %2830
      %2832 = vrot.lane.b32.xlu0 %v2531, 80
      %v2833 = vpop.permute.xlu0 %2832
      %2834 = vrot.lane.b32.xlu0 %v2530, 80
      %v2835 = vpop.permute.xlu0 %2834
      %v2836 = vsel %vm1358, %v2817, %v2819
      %v2837 = vsel %vm1358, %v2821, %v2823
      %v2838 = vsel %vm1358, %v2825, %v2827
      %v2839 = vsel %vm1358, %v2829, %v2831
      %v2840 = vsel %vm1358, %v2833, %v2835
      %2846 = vrot.lane.b32.xlu0 %v2257, 80
      %v2847 = vpop.permute.xlu0 %2846
      %2848 = vrot.lane.b32.xlu0 %v2258, 80
      %v2849 = vpop.permute.xlu0 %2848
      %2850 = vrot.lane.b32.xlu0 %v2539, 80
      %v2851 = vpop.permute.xlu0 %2850
      %2852 = vrot.lane.b32.xlu0 %v2538, 80
      %v2853 = vpop.permute.xlu0 %2852
      %2854 = vrot.lane.b32.xlu0 %v2545, 80
      %v2855 = vpop.permute.xlu0 %2854
      %2856 = vrot.lane.b32.xlu0 %v2544, 80
      %v2857 = vpop.permute.xlu0 %2856
      %2858 = vrot.lane.b32.xlu0 %v2551, 80
      %v2859 = vpop.permute.xlu0 %2858
      %2860 = vrot.lane.b32.xlu0 %v2550, 80
      %v2861 = vpop.permute.xlu0 %2860
      %2862 = vrot.lane.b32.xlu0 %v2557, 80
      %v2863 = vpop.permute.xlu0 %2862
      %2864 = vrot.lane.b32.xlu0 %v2556, 80
      %v2865 = vpop.permute.xlu0 %2864
      %v2866 = vsel %vm1358, %v2847, %v2849
      %v2867 = vsel %vm1358, %v2851, %v2853
      %v2868 = vsel %vm1358, %v2855, %v2857
      %v2869 = vsel %vm1358, %v2859, %v2861
      %v2870 = vsel %vm1358, %v2863, %v2865
      %s2876 = scalar_lea.vmem %s5, 24
      %v2877 = vld [vmem:[%s2876] sm:$0xff]
      %v2879 = vsel %vm2622, %v2877, 0
      %2881 = vmatpush.msra.mxu0 0.0
      %2882 = vmatpush.msra.mxu0 0.0
      %2883 = vmatpush.msra.mxu0 0.0
      %2884 = vmatpush.msra.mxu0 0.0
      %2885 = vmatpush.msra.mxu0 0.0
      %2886 = vmatpush.msra.mxu0 0.0
      %2887 = vmatpush.msra.mxu0 0.0
      %2888 = vmatpush.msra.mxu0 0.0
      %2889 = vmatpush.msra.mxu0 0.0
      %2890 = vmatpush.msra.mxu0 0.0
      %2891 = vmatpush.msra.mxu0 0.0
      %2892 = vmatpush.msra.mxu0 %v2840
      %2893 = vmatpush.msra.mxu0 %v2839
      %2894 = vmatpush.msra.mxu0 %v2838
      %2895 = vmatpush.msra.mxu0 %v2837
      %2896 = vmatpush.msra.mxu0 %v2836
      %2897 = vmatmul.f32.gmra.mxu0 %v2879
      %v2898 = vpop.f32.mrf.mxu0
      %v2899 = vadd.f32 0.0, %v2898
      %2900 = vdwg.mxu0
      %2901 = vmatpush.msra.mxu0 0.0
      %2902 = vmatpush.msra.mxu0 0.0
      %2903 = vmatpush.msra.mxu0 0.0
      %2904 = vmatpush.msra.mxu0 0.0
      %2905 = vmatpush.msra.mxu0 0.0
      %2906 = vmatpush.msra.mxu0 0.0
      %2907 = vmatpush.msra.mxu0 0.0
      %2908 = vmatpush.msra.mxu0 0.0
      %2909 = vmatpush.msra.mxu0 0.0
      %2910 = vmatpush.msra.mxu0 0.0
      %2911 = vmatpush.msra.mxu0 0.0
      %2912 = vmatpush.msra.mxu0 %v2870
      %2913 = vmatpush.msra.mxu0 %v2869
      %2914 = vmatpush.msra.mxu0 %v2868
      %2915 = vmatpush.msra.mxu0 %v2867
      %2916 = vmatpush.msra.mxu0 %v2866
      %2917 = vmatmul.f32.gmra.mxu0 %v2879
      %v2918 = vpop.f32.mrf.mxu0
      %v2919 = vadd.f32 0.0, %v2918
      %2920 = vdwg.mxu0
      %v2921 = vadd.f32 %v2814, %v2899
      %v2922 = vadd.f32 %v2815, %v2919
      %2923 = vrot.lane.b32.xlu0 %v2255, 64
      %v2924 = vpop.permute.xlu0 %2923
      %2925 = vrot.lane.b32.xlu0 %v2256, 64
      %v2926 = vpop.permute.xlu0 %2925
      %2927 = vrot.lane.b32.xlu0 %v2513, 64
      %v2928 = vpop.permute.xlu0 %2927
      %2929 = vrot.lane.b32.xlu0 %v2512, 64
      %v2930 = vpop.permute.xlu0 %2929
      %2931 = vrot.lane.b32.xlu0 %v2519, 64
      %v2932 = vpop.permute.xlu0 %2931
      %2933 = vrot.lane.b32.xlu0 %v2518, 64
      %v2934 = vpop.permute.xlu0 %2933
      %2935 = vrot.lane.b32.xlu0 %v2525, 64
      %v2936 = vpop.permute.xlu0 %2935
      %2937 = vrot.lane.b32.xlu0 %v2524, 64
      %v2938 = vpop.permute.xlu0 %2937
      %2939 = vrot.lane.b32.xlu0 %v2531, 64
      %v2940 = vpop.permute.xlu0 %2939
      %2941 = vrot.lane.b32.xlu0 %v2530, 64
      %v2942 = vpop.permute.xlu0 %2941
      %v2943 = vsel %vm1588, %v2924, %v2926
      %v2944 = vsel %vm1588, %v2928, %v2930
      %v2945 = vsel %vm1588, %v2932, %v2934
      %v2946 = vsel %vm1588, %v2936, %v2938
      %v2947 = vsel %vm1588, %v2940, %v2942
      %2953 = vrot.lane.b32.xlu0 %v2257, 64
      %v2954 = vpop.permute.xlu0 %2953
      %2955 = vrot.lane.b32.xlu0 %v2258, 64
      %v2956 = vpop.permute.xlu0 %2955
      %2957 = vrot.lane.b32.xlu0 %v2539, 64
      %v2958 = vpop.permute.xlu0 %2957
      %2959 = vrot.lane.b32.xlu0 %v2538, 64
      %v2960 = vpop.permute.xlu0 %2959
      %2961 = vrot.lane.b32.xlu0 %v2545, 64
      %v2962 = vpop.permute.xlu0 %2961
      %2963 = vrot.lane.b32.xlu0 %v2544, 64
      %v2964 = vpop.permute.xlu0 %2963
      %2965 = vrot.lane.b32.xlu0 %v2551, 64
      %v2966 = vpop.permute.xlu0 %2965
      %2967 = vrot.lane.b32.xlu0 %v2550, 64
      %v2968 = vpop.permute.xlu0 %2967
      %2969 = vrot.lane.b32.xlu0 %v2557, 64
      %v2970 = vpop.permute.xlu0 %2969
      %2971 = vrot.lane.b32.xlu0 %v2556, 64
      %v2972 = vpop.permute.xlu0 %2971
      %v2973 = vsel %vm1588, %v2954, %v2956
      %v2974 = vsel %vm1588, %v2958, %v2960
      %v2975 = vsel %vm1588, %v2962, %v2964
      %v2976 = vsel %vm1588, %v2966, %v2968
      %v2977 = vsel %vm1588, %v2970, %v2972
      %s2983 = scalar_lea.vmem %s5, 32
      %v2984 = vld [vmem:[%s2983] sm:$0xff]
      %v2986 = vsel %vm2622, %v2984, 0
      %2988 = vmatpush.msra.mxu0 0.0
      %2989 = vmatpush.msra.mxu0 0.0
      %2990 = vmatpush.msra.mxu0 0.0
      %2991 = vmatpush.msra.mxu0 0.0
      %2992 = vmatpush.msra.mxu0 0.0
      %2993 = vmatpush.msra.mxu0 0.0
      %2994 = vmatpush.msra.mxu0 0.0
      %2995 = vmatpush.msra.mxu0 0.0
      %2996 = vmatpush.msra.mxu0 0.0
      %2997 = vmatpush.msra.mxu0 0.0
      %2998 = vmatpush.msra.mxu0 0.0
      %2999 = vmatpush.msra.mxu0 %v2947
      %3000 = vmatpush.msra.mxu0 %v2946
      %3001 = vmatpush.msra.mxu0 %v2945
      %3002 = vmatpush.msra.mxu0 %v2944
      %3003 = vmatpush.msra.mxu0 %v2943
      %3004 = vmatmul.f32.gmra.mxu0 %v2986
      %v3005 = vpop.f32.mrf.mxu0
      %v3006 = vadd.f32 0.0, %v3005
      %3007 = vdwg.mxu0
      %3008 = vmatpush.msra.mxu0 0.0
      %3009 = vmatpush.msra.mxu0 0.0
      %3010 = vmatpush.msra.mxu0 0.0
      %3011 = vmatpush.msra.mxu0 0.0
      %3012 = vmatpush.msra.mxu0 0.0
      %3013 = vmatpush.msra.mxu0 0.0
      %3014 = vmatpush.msra.mxu0 0.0
      %3015 = vmatpush.msra.mxu0 0.0
      %3016 = vmatpush.msra.mxu0 0.0
      %3017 = vmatpush.msra.mxu0 0.0
      %3018 = vmatpush.msra.mxu0 0.0
      %3019 = vmatpush.msra.mxu0 %v2977
      %3020 = vmatpush.msra.mxu0 %v2976
      %3021 = vmatpush.msra.mxu0 %v2975
      %3022 = vmatpush.msra.mxu0 %v2974
      %3023 = vmatpush.msra.mxu0 %v2973
      %3024 = vmatmul.f32.gmra.mxu0 %v2986
      %v3025 = vpop.f32.mrf.mxu0
      %v3026 = vadd.f32 0.0, %v3025
      %3027 = vdwg.mxu0
      %v3028 = vadd.f32 %v2921, %v3006
      %v3029 = vadd.f32 %v2922, %v3026
      %v3030 = vld [vmem:[%s6] sm:$0xff]
      %3032 = vset.pattern.permute.xlu0 0
      %3033 = vperm.xlu0 %3032, %v3030
      %v3034 = vpop.permute.xlu0 %3033
      %v3036 = vadd.f32 %v3028, %v3034
      %v3037 = vadd.f32 %v3029, %v3034
      %v3038 = vmax.f32 %v3036, 0.0
      %v3039 = vmax.f32 %v3037, 0.0
      %v3040 = vsub.f32 0.0, %v3038
      %v3041 = vsub.f32 0.0, %v3039
      %v3042 = vld [vmem:[%s12] sm:$0x1f]
      %v3043 = vld [vmem:[%s12 + $0x8] sm:$0x1f]
      %v3044 = vmul.f32 %v3042, %v2280
      %v3045 = vmul.f32 %v3043, %v2281
      %s3046 = scalar_lea.vmem %s12, 16
      %v3047 = vld [vmem:[%s3046] sm:$0x1f]
      %v3048 = vld [vmem:[%s3046 + $0x8] sm:$0x1f]
      %v3049 = vmul.f32 %v3047, %v2292
      %v3050 = vmul.f32 %v3048, %v2293
      %v3051 = vadd.f32 %v3044, %v3049
      %v3052 = vadd.f32 %v3045, %v3050
      %s3053 = scalar_lea.vmem %s12, 32
      %v3054 = vld [vmem:[%s3053] sm:$0x1f]
      %v3055 = vld [vmem:[%s3053 + $0x8] sm:$0x1f]
      %v3056 = vmul.f32 %v3054, %v2308
      %v3057 = vmul.f32 %v3055, %v2309
      %v3058 = vadd.f32 %v3051, %v3056
      %v3059 = vadd.f32 %v3052, %v3057
      %s3060 = scalar_lea.vmem %s12, 48
      %v3061 = vld [vmem:[%s3060] sm:$0x1f]
      %v3062 = vld [vmem:[%s3060 + $0x8] sm:$0x1f]
      %v3063 = vmul.f32 %v3061, %v2324
      %v3064 = vmul.f32 %v3062, %v2325
      %v3065 = vadd.f32 %v3058, %v3063
      %v3066 = vadd.f32 %v3059, %v3064
      %s3067 = scalar_lea.vmem %s12, 64
      %v3068 = vld [vmem:[%s3067] sm:$0x1f]
      %v3069 = vld [vmem:[%s3067 + $0x8] sm:$0x1f]
      %v3070 = vmul.f32 %v3068, %v2340
      %v3071 = vmul.f32 %v3069, %v2341
      %v3072 = vadd.f32 %v3065, %v3070
      %v3073 = vadd.f32 %v3066, %v3071
      %s3074 = scalar_lea.vmem %s12, 80
      %v3075 = vld [vmem:[%s3074] sm:$0x1f]
      %v3076 = vld [vmem:[%s3074 + $0x8] sm:$0x1f]
      %v3077 = vmul.f32 %v3075, %v2356
      %v3078 = vmul.f32 %v3076, %v2357
      %v3079 = vadd.f32 %v3072, %v3077
      %v3080 = vadd.f32 %v3073, %v3078
      %s3081 = scalar_lea.vmem %s12, 96
      %v3082 = vld [vmem:[%s3081] sm:$0x1f]
      %v3083 = vld [vmem:[%s3081 + $0x8] sm:$0x1f]
      %v3084 = vmul.f32 %v3082, %v2372
      %v3085 = vmul.f32 %v3083, %v2373
      %v3086 = vadd.f32 %v3079, %v3084
      %v3087 = vadd.f32 %v3080, %v3085
      %s3088 = scalar_lea.vmem %s12, 112
      %v3089 = vld [vmem:[%s3088] sm:$0x1f]
      %v3090 = vld [vmem:[%s3088 + $0x8] sm:$0x1f]
      %v3091 = vmul.f32 %v3089, %v2388
      %v3092 = vmul.f32 %v3090, %v2389
      %v3093 = vadd.f32 %v3086, %v3091
      %v3094 = vadd.f32 %v3087, %v3092
      %v3095 = vld [vmem:[%s13] sm:$0x1f]
      %v3096 = vperm.slane %v3040, 0
      %v3097 = vmul.f32 %v3095, %v3096
      %s3098 = scalar_lea.vmem %s13, 8
      %v3099 = vld [vmem:[%s3098] sm:$0x1f]
      %v3100 = vperm.slane %v3040, 1
      %v3101 = vmul.f32 %v3099, %v3100
      %v3102 = vadd.f32 %v3097, %v3101
      %s3103 = scalar_lea.vmem %s13, 16
      %v3104 = vld [vmem:[%s3103] sm:$0x1f]
      %v3105 = vperm.slane %v3040, 2
      %v3106 = vmul.f32 %v3104, %v3105
      %v3107 = vadd.f32 %v3102, %v3106
      %s3108 = scalar_lea.vmem %s13, 24
      %v3109 = vld [vmem:[%s3108] sm:$0x1f]
      %v3110 = vperm.slane %v3040, 3
      %v3111 = vmul.f32 %v3109, %v3110
      %v3112 = vadd.f32 %v3107, %v3111
      %s3113 = scalar_lea.vmem %s13, 32
      %v3114 = vld [vmem:[%s3113] sm:$0x1f]
      %v3115 = vperm.slane %v3040, 4
      %v3116 = vmul.f32 %v3114, %v3115
      %v3117 = vadd.f32 %v3112, %v3116
      %s3118 = scalar_lea.vmem %s13, 40
      %v3119 = vld [vmem:[%s3118] sm:$0x1f]
      %v3120 = vperm.slane %v3040, 5
      %v3121 = vmul.f32 %v3119, %v3120
      %v3122 = vadd.f32 %v3117, %v3121
      %s3123 = scalar_lea.vmem %s13, 48
      %v3124 = vld [vmem:[%s3123] sm:$0x1f]
      %v3125 = vperm.slane %v3040, 6
      %v3126 = vmul.f32 %v3124, %v3125
      %v3127 = vadd.f32 %v3122, %v3126
      %s3128 = scalar_lea.vmem %s13, 56
      %v3129 = vld [vmem:[%s3128] sm:$0x1f]
      %v3130 = vperm.slane %v3040, 7
      %v3131 = vmul.f32 %v3129, %v3130
      %v3132 = vadd.f32 %v3127, %v3131
      %vm3133 = vcmask 1044480
      %v3134 = vsel %vm3133, %v3093, 0.0
      %v3135 = vsel %vm3133, %v3094, 0.0
      %v3136 = vadd.f32 %v3134, %v3135
      %3137 = vadd.xlane.f32.xlu0 %v3136
      %v3138 = vpop.xlane.xlu0 %3137
      %v3139 = vsel %vm3133, %v3132, 0.0
      %3140 = vadd.xlane.f32.xlu0 %v3139
      %v3141 = vpop.xlane.xlu0 %3140
      %v3142 = vadd.f32 %v3138, %v3141
      %v3143 = vld [vmem:[%s14] sm:$0x1f]
      %v3144 = vadd.f32 %v3142, %v3143
      %vm3145 = vcmp.gt.f32.partialorder %v3144, 20.0
      %v3146 = vmin.f32 %v3144, 20.0
      %v3147 = vmul.f32 %v3146, 1.442695
      %v3148 = vpow.pop %v3147
      %v3149 = vadd.f32 %v3148, 1.0
      %v3150 = vlog2.pop %v3149
      %v3151 = vmul.f32 %v3150, 0.6931472
      %v3152 = vmul.f32 -0.5, %v3148
      %v3153 = vadd.f32 %v3152, 1.0
      %v3154 = vmul.f32 %v3153, %v3148
      %v3155 = vand.u32 2147483647, %v3148
      %vm3156 = vcmp.lt.f32.partialorder %v3155, 0.0004427343
      %v3157 = vsel %vm3156, %v3154, %v3151
      %v3158 = vsel %vm3145, %v3144, %v3157
      %vm3159 = vcmask 4096
      %3160 = vst.msk [vmem:[%s620] sm:$0x1f] %vm3159, %v3158
      %v3161 = vld [vmem:[%s12] sm:$0x1f]
      %v3162 = vld [vmem:[%s12 + $0x8] sm:$0x1f]
      %v3163 = vmul.f32 %v3161, %v2282
      %v3164 = vmul.f32 %v3162, %v2283
      %v3165 = vld [vmem:[%s3046] sm:$0x1f]
      %v3166 = vld [vmem:[%s3046 + $0x8] sm:$0x1f]
      %v3167 = vmul.f32 %v3165, %v2294
      %v3168 = vmul.f32 %v3166, %v2295
      %v3169 = vadd.f32 %v3163, %v3167
      %v3170 = vadd.f32 %v3164, %v3168
      %v3171 = vld [vmem:[%s3053] sm:$0x1f]
      %v3172 = vld [vmem:[%s3053 + $0x8] sm:$0x1f]
      %v3173 = vmul.f32 %v3171, %v2310
      %v3174 = vmul.f32 %v3172, %v2311
      %v3175 = vadd.f32 %v3169, %v3173
      %v3176 = vadd.f32 %v3170, %v3174
      %v3177 = vld [vmem:[%s3060] sm:$0x1f]
      %v3178 = vld [vmem:[%s3060 + $0x8] sm:$0x1f]
      %v3179 = vmul.f32 %v3177, %v2326
      %v3180 = vmul.f32 %v3178, %v2327
      %v3181 = vadd.f32 %v3175, %v3179
      %v3182 = vadd.f32 %v3176, %v3180
      %v3183 = vld [vmem:[%s3067] sm:$0x1f]
      %v3184 = vld [vmem:[%s3067 + $0x8] sm:$0x1f]
      %v3185 = vmul.f32 %v3183, %v2342
      %v3186 = vmul.f32 %v3184, %v2343
      %v3187 = vadd.f32 %v3181, %v3185
      %v3188 = vadd.f32 %v3182, %v3186
      %v3189 = vld [vmem:[%s3074] sm:$0x1f]
      %v3190 = vld [vmem:[%s3074 + $0x8] sm:$0x1f]
      %v3191 = vmul.f32 %v3189, %v2358
      %v3192 = vmul.f32 %v3190, %v2359
      %v3193 = vadd.f32 %v3187, %v3191
      %v3194 = vadd.f32 %v3188, %v3192
      %v3195 = vld [vmem:[%s3081] sm:$0x1f]
      %v3196 = vld [vmem:[%s3081 + $0x8] sm:$0x1f]
      %v3197 = vmul.f32 %v3195, %v2374
      %v3198 = vmul.f32 %v3196, %v2375
      %v3199 = vadd.f32 %v3193, %v3197
      %v3200 = vadd.f32 %v3194, %v3198
      %v3201 = vld [vmem:[%s3088] sm:$0x1f]
      %v3202 = vld [vmem:[%s3088 + $0x8] sm:$0x1f]
      %v3203 = vmul.f32 %v3201, %v2390
      %v3204 = vmul.f32 %v3202, %v2391
      %v3205 = vadd.f32 %v3199, %v3203
      %v3206 = vadd.f32 %v3200, %v3204
      %v3207 = vld [vmem:[%s13] sm:$0x1f]
      %v3208 = vperm.slane %v3041, 0
      %v3209 = vmul.f32 %v3207, %v3208
      %v3210 = vld [vmem:[%s3098] sm:$0x1f]
      %v3211 = vperm.slane %v3041, 1
      %v3212 = vmul.f32 %v3210, %v3211
      %v3213 = vadd.f32 %v3209, %v3212
      %v3214 = vld [vmem:[%s3103] sm:$0x1f]
      %v3215 = vperm.slane %v3041, 2
      %v3216 = vmul.f32 %v3214, %v3215
      %v3217 = vadd.f32 %v3213, %v3216
      %v3218 = vld [vmem:[%s3108] sm:$0x1f]
      %v3219 = vperm.slane %v3041, 3
      %v3220 = vmul.f32 %v3218, %v3219
      %v3221 = vadd.f32 %v3217, %v3220
      %v3222 = vld [vmem:[%s3113] sm:$0x1f]
      %v3223 = vperm.slane %v3041, 4
      %v3224 = vmul.f32 %v3222, %v3223
      %v3225 = vadd.f32 %v3221, %v3224
      %v3226 = vld [vmem:[%s3118] sm:$0x1f]
      %v3227 = vperm.slane %v3041, 5
      %v3228 = vmul.f32 %v3226, %v3227
      %v3229 = vadd.f32 %v3225, %v3228
      %v3230 = vld [vmem:[%s3123] sm:$0x1f]
      %v3231 = vperm.slane %v3041, 6
      %v3232 = vmul.f32 %v3230, %v3231
      %v3233 = vadd.f32 %v3229, %v3232
      %v3234 = vld [vmem:[%s3128] sm:$0x1f]
      %v3235 = vperm.slane %v3041, 7
      %v3236 = vmul.f32 %v3234, %v3235
      %v3237 = vadd.f32 %v3233, %v3236
      %v3238 = vsel %vm3133, %v3205, 0.0
      %v3239 = vsel %vm3133, %v3206, 0.0
      %v3240 = vadd.f32 %v3238, %v3239
      %3241 = vadd.xlane.f32.xlu0 %v3240
      %v3242 = vpop.xlane.xlu0 %3241
      %v3243 = vsel %vm3133, %v3237, 0.0
      %3244 = vadd.xlane.f32.xlu0 %v3243
      %v3245 = vpop.xlane.xlu0 %3244
      %v3246 = vadd.f32 %v3242, %v3245
      %v3247 = vld [vmem:[%s14] sm:$0x1f]
      %v3248 = vadd.f32 %v3246, %v3247
      %vm3249 = vcmp.gt.f32.partialorder %v3248, 20.0
      %v3250 = vmin.f32 %v3248, 20.0
      %v3251 = vmul.f32 %v3250, 1.442695
      %v3252 = vpow.pop %v3251
      %v3253 = vadd.f32 %v3252, 1.0
      %v3254 = vlog2.pop %v3253
      %v3255 = vmul.f32 %v3254, 0.6931472
      %v3256 = vmul.f32 -0.5, %v3252
      %v3257 = vadd.f32 %v3256, 1.0
      %v3258 = vmul.f32 %v3257, %v3252
      %v3259 = vand.u32 2147483647, %v3252
      %vm3260 = vcmp.lt.f32.partialorder %v3259, 0.0004427343
      %v3261 = vsel %vm3260, %v3258, %v3255
      %v3262 = vsel %vm3249, %v3248, %v3261
      %s3263 = scalar_lea.vmem %s620, 8
      %3264 = vst.msk [vmem:[%s3263] sm:$0x1f] %vm3159, %v3262
      %s3265 = smul.u32 2, %s29
      %p3266 = scmp.lt.s32.totalorder %s3265, 3
      %s3267 = scalar_select %p3266, %s3265, 3
      %s3268 = smul.addr %s3267, 8
      %s3269 = scalar_lea.vmem %s15, %s3268
      %s3270 = smul.u32 2, %s29
      %p3271 = scmp.lt.s32.totalorder %s3270, 3
      %s3272 = scalar_select %p3271, %s3270, 3
      %s3273 = smul.addr %s3272, 2
      %s3274 = smul.addr %s3273, 8
      %s3275 = scalar_lea.vmem %s16, %s3274
      %s3276 = smul.u32 2, %s29
      %p3277 = scmp.lt.s32.totalorder %s3276, 3
      %s3278 = scalar_select %p3277, %s3276, 3
      %s3279 = smul.addr %s3278, 2
      %s3280 = smul.addr %s3279, 2
      %s3281 = scalar_lea.vmem %s17, %s3280
      // Predicated region
      $region81: #{proto_amac_rnn_forward.1} parent=79 // pred_check
        %p3282 = pneg %p377
      $region82: #{proto_amac_rnn_forward.1} parent=79 // pred_check_branch
        %3284 = sbr.rel (%p3282) target = $region84
      $region83: #{proto_amac_rnn_forward.1} parent=79 // pred_region
        %s3285 = smul.u32 2, %s29
      $region84: #{proto_amac_rnn_forward.1} parent=79 // pred_fallthru
        _
      // Predicated region
      $region85: #{proto_amac_rnn_forward.1} parent=79 // pred_check
        %p3286 = pneg %p403
      $region86: #{proto_amac_rnn_forward.1} parent=79 // pred_check_branch
        %3288 = sbr.rel (%p3286) target = $region88
      $region87: #{proto_amac_rnn_forward.1} parent=79 // pred_region
        %s3289 = smul.u32 2, %s29
      $region88: #{proto_amac_rnn_forward.1} parent=79 // pred_fallthru
        _
      // Predicated region
      $region89: #{proto_amac_rnn_forward.1} parent=79 // pred_check
        %p3290 = pneg %p429
      $region90: #{proto_amac_rnn_forward.1} parent=79 // pred_check_branch
        %3292 = sbr.rel (%p3290) target = $region92
      $region91: #{proto_amac_rnn_forward.1} parent=79 // pred_region
        %s3293 = smul.u32 2, %s29
      $region92: #{proto_amac_rnn_forward.1} parent=79 // pred_fallthru
        _
    $region80: #{proto_amac_rnn_forward.1} parent=5 // pred_fallthru
      _
    %p3294 = scmp.le.s32.totalorder 2, %s24
    // Predicated region
    $region93: #{proto_amac_rnn_forward.1} parent=5 // pred_check
      %p3295 = pneg %p3294
    $region94: #{proto_amac_rnn_forward.1} parent=5 // pred_check_branch
      %3297 = sbr.rel (%p3295) target = $region96
    $region95: #{proto_amac_rnn_forward.1} parent=5 // pred_region
      %s3298 = ssub.s32 %s24, 2
      // Predicated region
      $region97: #{proto_amac_rnn_forward.1} parent=95 // pred_check
        %p3299 = pneg %p383
      $region98: #{proto_amac_rnn_forward.1} parent=95 // pred_check_branch
        %3301 = sbr.rel (%p3299) target = $region100
      $region99: #{proto_amac_rnn_forward.1} parent=95 // pred_region
        %s3302 = smul.u32 2, %s30
        %p3303 = scmp.lt.s32.totalorder %s3302, 3
        %s3304 = scalar_select %p3303, %s3302, 3
        %s3305 = smul.addr %s3304, 8
        %s3306 = scalar_lea.vmem %s15, %s3305
      $region100: #{proto_amac_rnn_forward.1} parent=95 // pred_fallthru
        _
      // Predicated region
      $region101: #{proto_amac_rnn_forward.1} parent=95 // pred_check
        %p3307 = pneg %p409
      $region102: #{proto_amac_rnn_forward.1} parent=95 // pred_check_branch
        %3309 = sbr.rel (%p3307) target = $region104
      $region103: #{proto_amac_rnn_forward.1} parent=95 // pred_region
        %s3310 = smul.u32 2, %s30
        %p3311 = scmp.lt.s32.totalorder %s3310, 3
        %s3312 = scalar_select %p3311, %s3310, 3
        %s3313 = smul.addr %s3312, 2
        %s3314 = smul.addr %s3313, 8
        %s3315 = scalar_lea.vmem %s16, %s3314
      $region104: #{proto_amac_rnn_forward.1} parent=95 // pred_fallthru
        _
      // Predicated region
      $region105: #{proto_amac_rnn_forward.1} parent=95 // pred_check
        %p3316 = pneg %p435
      $region106: #{proto_amac_rnn_forward.1} parent=95 // pred_check_branch
        %3318 = sbr.rel (%p3316) target = $region108
      $region107: #{proto_amac_rnn_forward.1} parent=95 // pred_region
        %s3319 = smul.u32 2, %s30
        %p3320 = scmp.lt.s32.totalorder %s3319, 3
        %s3321 = scalar_select %p3320, %s3319, 3
        %s3322 = smul.addr %s3321, 2
        %s3323 = smul.addr %s3322, 2
        %s3324 = scalar_lea.vmem %s17, %s3323
      $region108: #{proto_amac_rnn_forward.1} parent=95 // pred_fallthru
        _
    $region96: #{proto_amac_rnn_forward.1} parent=5 // pred_fallthru
      _
  $region6: #{proto_amac_rnn_forward.1} parent=0 // loop_footer
    %s28 = sadd.s32 1, %s24
  $region7: #{proto_amac_rnn_forward.1} parent=0 // loop_footer_branch
    %23 = sbr.rel target = $region3
  $region8: #{proto_amac_rnn_forward.1} parent=0 // loop_exit
    _

</llo_original>
